<compile_context>
chip_gen: v7x
topology: tpu7x:2x2x1
jax: 0.10.0
libtpu: 0.0.40
codegen_flags: <defaults>
</compile_context>

<pallas_src>
import functools

import numpy as np
import jax
import jax.numpy as jnp
from jax.experimental import pallas as pl
from jax.experimental.pallas import tpu as pltpu


# ----------------------------------------------------------------------------
# Pallas kernel: one grid step == TB batch-rows x TW windows
# ----------------------------------------------------------------------------
def _window_attn_kernel(x_ref, wqkv_ref, bqkv_ref, bias_ref, wp_ref, bp_ref,
                        o_ref, qkv_buf, head_buf, *, num_heads, compute_dtype):
    TB, TW, N, C = x_ref.shape
    H = num_heads
    hd = C // H
    G = TB * TW          # windows in this block
    M = G * N            # total tokens in this block

    # (TB, TW, N, C) -> (M, C): merges only leading dims (lane dim untouched).
    x2 = x_ref[...].reshape(M, C).astype(compute_dtype)

    # ---- (1) Fused QKV projection: ONE (M, C) @ (C, 3C) matmul, f32 acc. ----
    # `scale` is already folded into the q columns of wqkv / bqkv.
    qkv = jnp.dot(x2, wqkv_ref[...], preferred_element_type=jnp.float32)
    qkv = qkv + bqkv_ref[...]                                   # (M, 3C) f32
    qkv_buf[...] = qkv.astype(compute_dtype)                    # bound live range

    # ---- (2) Per-head attention over G windows (static head loop). ----------
    for h in range(H):
        q3 = qkv_buf[:, h * hd:(h + 1) * hd].reshape(G, N, hd)
        k3 = qkv_buf[:, C + h * hd:C + (h + 1) * hd].reshape(G, N, hd)
        v3 = qkv_buf[:, 2 * C + h * hd:2 * C + (h + 1) * hd].reshape(G, N, hd)

        # Window-batched QK^T: (G, N, N), f32 scores.
        s = jnp.einsum('gqd,gkd->gqk', q3, k3,
                       preferred_element_type=jnp.float32)
        # + relative position bias (+ shifted-window mask), pre-combined per head.
        # bias_ref[h] is (TW, N, N); broadcasts across the TB batch rows.
        s = s.reshape(TB, TW, N, N) + bias_ref[h]

        # Numerically-stable softmax in f32 over the key axis.
        s = s - jnp.max(s, axis=-1, keepdims=True)
        p = jnp.exp(s)
        p = p * pl.reciprocal(jnp.sum(p, axis=-1, keepdims=True), approx=True)

        p3 = p.reshape(G, N, N).astype(compute_dtype)
        o = jnp.einsum('gqk,gkd->gqd', p3, v3,
                       preferred_element_type=jnp.float32)      # (G, N, hd)

        # Stack this head's output into its lane range of the (M, C) scratch.
        head_buf[:, h * hd:(h + 1) * hd] = o.reshape(M, hd).astype(head_buf.dtype)

    # ---- (3) Single full-depth output projection: (M, C) @ (C, C). ----------
    y = jnp.dot(head_buf[...], wp_ref[...], preferred_element_type=jnp.float32)
    y = y + bp_ref[...]                                          # (M, C) f32
    o_ref[...] = y.reshape(TB, TW, N, C).astype(o_ref.dtype)


def _largest_divisor_leq(n, cap):
    cap = max(1, min(cap, n))
    for d in range(cap, 0, -1):
        if n % d == 0:
            return d
    return 1


def _pick_vmem_limit():
    """Best-effort per-chip VMEM budget; None -> leave compiler default."""
    try:
        info = pltpu.get_tpu_info()
        cap = getattr(info, "vmem_capacity_bytes", None)
        if cap is None:
            return None
        return int(min(cap * 3 // 4, 96 * 1024 * 1024))
    except Exception:
        return None


# ----------------------------------------------------------------------------
# Wrapper
# ----------------------------------------------------------------------------
def window_attention_pallas(x, w_qkv, b_qkv, rel_bias, mask, w_proj, b_proj,
                            *, num_heads, scale, block_b=8, block_w=8,
                            compute_dtype=jnp.bfloat16):
    """
    x        : (B_, N, C) float32, B_ = B * nW (windows vary fastest, as in Swin)
    w_qkv    : (C, 3C)  (JAX convention: W_jax = W_pytorch.T), b_qkv : (3C,)
    rel_bias : (num_heads, N, N)   -- relative position bias (already gathered)
    mask     : (nW, N, N) or None  -- 0 / -inf style additive mask
    w_proj   : (C, C),  b_proj : (C,)
    compute_dtype : dtype fed to the MXU matmuls (bf16 default — MXU-native on
                    v5e/v6e/v7x); accumulation and softmax always stay in f32.
    """
    B_, N, C = x.shape
    H = num_heads
    hd = C // H
    assert C % H == 0

    # Pre-combine relative-position bias and mask once: (H, nW, N, N).
    if mask is None:
        nW = 1
        bias = rel_bias[:, None, :, :]
    else:
        nW = mask.shape[0]
        assert B_ % nW == 0, "B_ must be a multiple of the number of windows"
        bias = rel_bias[:, None, :, :] + mask[None, :, :, :]
    bias = bias.astype(jnp.float32)

    B = B_ // nW
    x4 = x.reshape(B, nW, N, C)      # free view: window index is the fast axis

    # Fused QKV weight/bias with `scale` pre-folded into the q columns.
    scale_cols = jnp.concatenate(
        [jnp.full((C,), scale, jnp.float32), jnp.ones((2 * C,), jnp.float32)])
    wqkv = (w_qkv.astype(jnp.float32) * scale_cols[None, :]).astype(compute_dtype)
    bqkv = (b_qkv.astype(jnp.float32) * scale_cols).reshape(1, 3 * C)   # f32 add
    wp = w_proj.astype(compute_dtype)                                   # (C, C)
    bp = b_proj.reshape(1, C).astype(jnp.float32)

    TB = _largest_divisor_leq(B, block_b)        # batch rows per block
    TW = _largest_divisor_leq(nW, block_w)       # windows (mask indices) per block
    # v7x has 2 TensorCores: make sure the ("parallel","parallel") grid has
    # >= 2 steps whenever the problem allows it.
    if (nW // TW) * (B // TB) < 2:
        if B >= 2 and TB >= 2:
            TB = _largest_divisor_leq(B, TB // 2)
        elif nW >= 2 and TW >= 2:
            TW = _largest_divisor_leq(nW, TW // 2)

    grid = (nW // TW, B // TB)                   # outer = window axis, inner = batch
    M_blk = TB * TW * N

    # Advisory cost estimate so XLA can schedule neighbors around the call.
    flops = int(2 * B_ * N * C * 3 * C            # fused QKV projection
                + 4 * B_ * H * N * N * hd         # QK^T and P@V
                + 2 * B_ * N * C * C)             # output projection
    transcendentals = int(B_ * H * N * N)         # exp in softmax
    bytes_accessed = int(4 * (2 * B_ * N * C + bias.size)
                         + 2 * (wqkv.size + wp.size) + 4 * (3 * C + C))

    kernel = functools.partial(_window_attn_kernel, num_heads=H,
                               compute_dtype=compute_dtype)

    cparams = dict(dimension_semantics=("parallel", "parallel"))
    vlim = _pick_vmem_limit()
    if vlim is not None:
        cparams["vmem_limit_bytes"] = vlim

    out4 = pl.pallas_call(
        kernel,
        out_shape=jax.ShapeDtypeStruct((B, nW, N, C), x.dtype),
        grid_spec=pltpu.PrefetchScalarGridSpec(
            num_scalar_prefetch=0,
            grid=grid,
            in_specs=[
                pl.BlockSpec((TB, TW, N, C), lambda w, b: (b, w, 0, 0)),   # x
                pl.BlockSpec((C, 3 * C), lambda w, b: (0, 0)),             # wqkv
                pl.BlockSpec((1, 3 * C), lambda w, b: (0, 0)),             # bqkv
                # bias(+mask): index depends only on the OUTER grid axis ->
                # not re-DMA'd while the inner batch axis iterates.
                pl.BlockSpec((H, TW, N, N), lambda w, b: (0, w, 0, 0)),
                pl.BlockSpec((C, C), lambda w, b: (0, 0)),                 # wp
                pl.BlockSpec((1, C), lambda w, b: (0, 0)),                 # bp
            ],
            out_specs=pl.BlockSpec((TB, TW, N, C), lambda w, b: (b, w, 0, 0)),
            scratch_shapes=[
                pltpu.VMEM((M_blk, 3 * C), compute_dtype),   # fused qkv result
                pltpu.VMEM((M_blk, C), compute_dtype),       # stacked head outputs
            ],
        ),
        compiler_params=pltpu.CompilerParams(**cparams),
        cost_estimate=pl.CostEstimate(flops=flops,
                                      transcendentals=transcendentals,
                                      bytes_accessed=bytes_accessed),
    )(x4, wqkv, bqkv, bias, wp, bp)

    return out4.reshape(B_, N, C)


# ----------------------------------------------------------------------------
# Relative position index (identical to the PyTorch buffer construction)
# ----------------------------------------------------------------------------
def make_relative_position_index(window_size):
    Wh, Ww = window_size
    coords_h = np.arange(Wh)
    coords_w = np.arange(Ww)
    coords = np.stack(np.meshgrid(coords_h, coords_w, indexing="ij"))   # (2, Wh, Ww)
    coords_flatten = coords.reshape(2, -1)                              # (2, Wh*Ww)
    relative_coords = coords_flatten[:, :, None] - coords_flatten[:, None, :]
    relative_coords = relative_coords.transpose(1, 2, 0).copy()         # (N, N, 2)
    relative_coords[:, :, 0] += Wh - 1
    relative_coords[:, :, 1] += Ww - 1
    relative_coords[:, :, 0] *= 2 * Ww - 1
    return relative_coords.sum(-1)                                      # (N, N)


# ----------------------------------------------------------------------------
# Pure-JAX reference (mirrors the PyTorch forward exactly)
# ----------------------------------------------------------------------------
def window_attention_ref(x, w_qkv, b_qkv, rel_bias, mask, w_proj, b_proj,
                         *, num_heads, scale):
    B_, N, C = x.shape
    hd = C // num_heads
    qkv = (x @ w_qkv + b_qkv).reshape(B_, N, 3, num_heads, hd).transpose(2, 0, 3, 1, 4)
    q, k, v = qkv[0], qkv[1], qkv[2]
    q = q * scale
    attn = jnp.einsum("bhqd,bhkd->bhqk", q, k)
    attn = attn + rel_bias[None]
    if mask is not None:
        nW = mask.shape[0]
        attn = attn.reshape(B_ // nW, nW, num_heads, N, N) + mask[None, :, None]
        attn = attn.reshape(B_, num_heads, N, N)
    attn = jax.nn.softmax(attn, axis=-1)
    out = jnp.einsum("bhqk,bhkd->bhqd", attn, v).transpose(0, 2, 1, 3).reshape(B_, N, C)
    return out @ w_proj + b_proj


# ----------------------------------------------------------------------------
# Main
# ----------------------------------------------------------------------------
if __name__ == "__main__":
    # Small, module-consistent shapes
    dim = 32
    num_heads = 4
    window_size = (4, 4)
    N = window_size[0] * window_size[1]        # 16 tokens per window
    nW = 2                                     # number of windows per image (mask rows)
    B = 4                                      # batch
    B_ = B * nW                                # num_windows * B
    head_dim = dim // num_heads
    scale = head_dim ** (-0.5)

    key = jax.random.PRNGKey(0)
    k_x, k_t, k_wqkv, k_bqkv, k_wp, k_bp, k_m = jax.random.split(key, 7)

    # Input: (num_windows*B, Wh*Ww, C)
    x = jax.random.normal(k_x, (B_, N, dim), dtype=jnp.float32)

    # Parameters (deterministic synthetic init; trunc_normal(std=0.02) ~ normal*0.02)
    num_rel = (2 * window_size[0] - 1) * (2 * window_size[1] - 1)
    rel_table = 0.02 * jax.random.normal(k_t, (num_rel, num_heads), dtype=jnp.float32)
    w_qkv = 0.05 * jax.random.normal(k_wqkv, (dim, 3 * dim), dtype=jnp.float32)
    b_qkv = 0.05 * jax.random.normal(k_bqkv, (3 * dim,), dtype=jnp.float32)
    w_proj = 0.05 * jax.random.normal(k_wp, (dim, dim), dtype=jnp.float32)
    b_proj = 0.05 * jax.random.normal(k_bp, (dim,), dtype=jnp.float32)

    # Gather the relative position bias -> (num_heads, N, N)  (glue, done once)
    rel_idx = make_relative_position_index(window_size)            # (N, N) int
    rel_bias = rel_table[rel_idx.reshape(-1)].reshape(N, N, num_heads)
    rel_bias = jnp.transpose(rel_bias, (2, 0, 1))                  # (H, N, N)

    # Shifted-window style 0 / -100 additive mask of shape (nW, N, N)
    mask_bits = jax.random.bernoulli(k_m, 0.25, (nW, N, N))
    mask = jnp.where(mask_bits, -100.0, 0.0).astype(jnp.float32)

    ref = window_attention_ref(x, w_qkv, b_qkv, rel_bias, mask, w_proj, b_proj,
                               num_heads=num_heads, scale=scale)
    ref = jax.block_until_ready(ref)

    # 1) default: bf16 MXU operands (MXU-native on all generations), f32 acc/softmax
    out_bf = jax.block_until_ready(
        window_attention_pallas(x, w_qkv, b_qkv, rel_bias, mask, w_proj, b_proj,
                                num_heads=num_heads, scale=scale))
    np.testing.assert_allclose(np.asarray(out_bf), np.asarray(ref),
                               rtol=5e-2, atol=5e-2)

    # 2) f32-operand parity path, default blocks
    out_f32 = jax.block_until_ready(
        window_attention_pallas(x, w_qkv, b_qkv, rel_bias, mask, w_proj, b_proj,
                                num_heads=num_heads, scale=scale,
                                compute_dtype=jnp.float32))
    np.testing.assert_allclose(np.asarray(out_f32), np.asarray(ref),
                               rtol=2e-3, atol=2e-3)

    # 3) smaller blocks -> multi-step grid (exercises pipelining + bias index_map reuse)
    out_g = jax.block_until_ready(
        window_attention_pallas(x, w_qkv, b_qkv, rel_bias, mask, w_proj, b_proj,
                                num_heads=num_heads, scale=scale,
                                block_b=2, block_w=1, compute_dtype=jnp.float32))
    np.testing.assert_allclose(np.asarray(out_g), np.asarray(ref), rtol=2e-3, atol=2e-3)

    # 4) mask=None path
    ref_nm = window_attention_ref(x, w_qkv, b_qkv, rel_bias, None, w_proj, b_proj,
                                  num_heads=num_heads, scale=scale)
    out_nm = jax.block_until_ready(
        window_attention_pallas(x, w_qkv, b_qkv, rel_bias, None, w_proj, b_proj,
                                num_heads=num_heads, scale=scale,
                                compute_dtype=jnp.float32))
    np.testing.assert_allclose(np.asarray(out_nm), np.asarray(ref_nm),
                               rtol=2e-3, atol=2e-3)

    print("KERNEL_OK")
</pallas_src>

<mosaic_0001>
module attributes {stable_mosaic.version = 11 : i64} {
  func.func @_window_attn_kernel(%arg0: i32, %arg1: i32, %arg2: memref<2x2x16x32xf32, #tpu.memory_space<vmem>>, %arg3: memref<32x96xbf16, #tpu.memory_space<vmem>>, %arg4: memref<1x96xf32, #tpu.memory_space<vmem>>, %arg5: memref<4x2x16x16xf32, #tpu.memory_space<vmem>>, %arg6: memref<32x32xbf16, #tpu.memory_space<vmem>>, %arg7: memref<1x32xf32, #tpu.memory_space<vmem>>, %arg8: memref<2x2x16x32xf32, #tpu.memory_space<vmem>>, %arg9: memref<64x96xbf16, #tpu.memory_space<vmem>>, %arg10: memref<64x32xbf16, #tpu.memory_space<vmem>>) attributes {dimension_semantics = [#tpu.dimension_semantics<parallel>, #tpu.dimension_semantics<parallel>], iteration_bounds = array<i64: 1, 2>, scalar_prefetch = 0 : i64, scratch_operands = 2 : i64, tpu.core_type = #tpu.core_type<tc>, window_params = [{transform_indices = @transform_0, window_bounds = array<i64: 2, 2, 16, 32>}, {pipeline_mode = #tpu.pipeline_mode<synchronous>, transform_indices = @transform_1, window_bounds = array<i64: 32, 96>}, {pipeline_mode = #tpu.pipeline_mode<synchronous>, transform_indices = @transform_2, window_bounds = array<i64: 1, 96>}, {transform_indices = @transform_3, window_bounds = array<i64: 4, 2, 16, 16>}, {pipeline_mode = #tpu.pipeline_mode<synchronous>, transform_indices = @transform_4, window_bounds = array<i64: 32, 32>}, {pipeline_mode = #tpu.pipeline_mode<synchronous>, transform_indices = @transform_5, window_bounds = array<i64: 1, 32>}, {transform_indices = @transform_6, window_bounds = array<i64: 2, 2, 16, 32>}]} {
    %c0 = arith.constant 0 : index
    %c0_0 = arith.constant 0 : index
    %c0_1 = arith.constant 0 : index
    %c0_2 = arith.constant 0 : index
    %0 = vector.load %arg2[%c0, %c0_0, %c0_1, %c0_2] : memref<2x2x16x32xf32, #tpu.memory_space<vmem>>, vector<2x2x16x32xf32>
    %1 = vector.shape_cast %0 : vector<2x2x16x32xf32> to vector<64x32xf32>
    %2 = arith.truncf %1 : vector<64x32xf32> to vector<64x32xbf16>
    %c0_3 = arith.constant 0 : index
    %c0_4 = arith.constant 0 : index
    %3 = vector.load %arg3[%c0_3, %c0_4] : memref<32x96xbf16, #tpu.memory_space<vmem>>, vector<32x96xbf16>
    %cst = arith.constant dense<0.000000e+00> : vector<64x96xf32>
    %4 = tpu.matmul %2, %3, %cst {dimension_numbers = #tpu.dot_dimension_numbers<[1], [0], [0], [1], [0, 0, 1, 1], [], []>} : vector<64x32xbf16>, vector<32x96xbf16>, vector<64x96xf32> -> vector<64x96xf32>
    %c0_5 = arith.constant 0 : index
    %c0_6 = arith.constant 0 : index
    %5 = vector.load %arg4[%c0_5, %c0_6] : memref<1x96xf32, #tpu.memory_space<vmem>>, vector<1x96xf32>
    %6 = vector.broadcast %5 : vector<1x96xf32> to vector<64x96xf32>
    %7 = arith.addf %4, %6 : vector<64x96xf32>
    %8 = arith.truncf %7 : vector<64x96xf32> to vector<64x96xbf16>
    %c0_7 = arith.constant 0 : index
    %c0_8 = arith.constant 0 : index
    %9 = vector.load %arg9[%c0_7, %c0_8] : memref<64x96xbf16, #tpu.memory_space<vmem>>, vector<64x96xbf16>
    tpu.vector_store %arg9[%c0_7, %c0_8], %8 {strides = array<i32>} : memref<64x96xbf16, #tpu.memory_space<vmem>>, vector<64x96xbf16>,
    %c0_9 = arith.constant 0 : index
    %c0_10 = arith.constant 0 : index
    %10 = vector.load %arg9[%c0_9, %c0_10] : memref<64x96xbf16, #tpu.memory_space<vmem>>, vector<64x8xbf16>
    %11 = vector.shape_cast %10 : vector<64x8xbf16> to vector<4x16x8xbf16>
    %c0_11 = arith.constant 0 : index
    %c32 = arith.constant 32 : index
    %12 = vector.load %arg9[%c0_11, %c32] : memref<64x96xbf16, #tpu.memory_space<vmem>>, vector<64x8xbf16>
    %13 = vector.shape_cast %12 : vector<64x8xbf16> to vector<4x16x8xbf16>
    %c0_12 = arith.constant 0 : index
    %c64 = arith.constant 64 : index
    %14 = vector.load %arg9[%c0_12, %c64] : memref<64x96xbf16, #tpu.memory_space<vmem>>, vector<64x8xbf16>
    %15 = vector.shape_cast %14 : vector<64x8xbf16> to vector<4x16x8xbf16>
    "tpu.trace_start"() <{level = 10 : i32, message = "gqd,gkd->gqk"}> : () -> ()
    %cst_13 = arith.constant dense<0.000000e+00> : vector<4x16x16xf32>
    %16 = tpu.matmul %11, %13, %cst_13 {dimension_numbers = #tpu.dot_dimension_numbers<[2], [2], [1], [1], [0, 0, 0, 1, 1, 1], [0], [0]>} : vector<4x16x8xbf16>, vector<4x16x8xbf16>, vector<4x16x16xf32> -> vector<4x16x16xf32>
    "tpu.trace_stop"() : () -> ()
    %17 = vector.shape_cast %16 : vector<4x16x16xf32> to vector<2x2x16x16xf32>
    %c0_14 = arith.constant 0 : index
    %c0_15 = arith.constant 0 : index
    %c0_16 = arith.constant 0 : index
    %c0_17 = arith.constant 0 : index
    %18 = vector.load %arg5[%c0_14, %c0_15, %c0_16, %c0_17] : memref<4x2x16x16xf32, #tpu.memory_space<vmem>>, vector<1x2x16x16xf32>
    %19 = vector.shape_cast %18 : vector<1x2x16x16xf32> to vector<2x16x16xf32>
    %20 = vector.shape_cast %19 : vector<2x16x16xf32> to vector<1x2x16x16xf32>
    %21 = vector.broadcast %20 : vector<1x2x16x16xf32> to vector<2x2x16x16xf32>
    %22 = arith.addf %17, %21 : vector<2x2x16x16xf32>
    %cst_18 = arith.constant dense<0xFF800000> : vector<2x2x16xf32>
    %23 = vector.multi_reduction <maximumf>, %22, %cst_18 [3] : vector<2x2x16x16xf32> to vector<2x2x16xf32>
    %24 = vector.shape_cast %23 : vector<2x2x16xf32> to vector<2x2x16x1xf32>
    %25 = vector.broadcast %24 : vector<2x2x16x1xf32> to vector<2x2x16x16xf32>
    %26 = arith.subf %22, %25 : vector<2x2x16x16xf32>
    %27 = math.exp %26 : vector<2x2x16x16xf32>
    %cst_19 = arith.constant dense<0.000000e+00> : vector<2x2x16xf32>
    %28 = vector.multi_reduction <add>, %27, %cst_19 [3] : vector<2x2x16x16xf32> to vector<2x2x16xf32>
    %29 = vector.shape_cast %28 : vector<2x2x16xf32> to vector<2x2x16x1xf32>
    %30 = tpu.reciprocal %29 {approx = true} : vector<2x2x16x1xf32> -> vector<2x2x16x1xf32>
    %31 = vector.broadcast %30 : vector<2x2x16x1xf32> to vector<2x2x16x16xf32>
    %32 = arith.mulf %27, %31 : vector<2x2x16x16xf32>
    %33 = vector.shape_cast %32 : vector<2x2x16x16xf32> to vector<4x16x16xf32>
    %34 = arith.truncf %33 : vector<4x16x16xf32> to vector<4x16x16xbf16>
    "tpu.trace_start"() <{level = 10 : i32, message = "gqk,gkd->gqd"}> : () -> ()
    %cst_20 = arith.constant dense<0.000000e+00> : vector<4x16x8xf32>
    %35 = tpu.matmul %34, %15, %cst_20 {dimension_numbers = #tpu.dot_dimension_numbers<[2], [1], [1], [2], [0, 0, 0, 1, 1, 2], [0], [0]>} : vector<4x16x16xbf16>, vector<4x16x8xbf16>, vector<4x16x8xf32> -> vector<4x16x8xf32>
    "tpu.trace_stop"() : () -> ()
    %36 = vector.shape_cast %35 : vector<4x16x8xf32> to vector<64x8xf32>
    %37 = arith.truncf %36 : vector<64x8xf32> to vector<64x8xbf16>
    %c0_21 = arith.constant 0 : index
    %c0_22 = arith.constant 0 : index
    %38 = vector.load %arg10[%c0_21, %c0_22] : memref<64x32xbf16, #tpu.memory_space<vmem>>, vector<64x8xbf16>
    tpu.vector_store %arg10[%c0_21, %c0_22], %37 {strides = array<i32>} : memref<64x32xbf16, #tpu.memory_space<vmem>>, vector<64x8xbf16>,
    %c0_23 = arith.constant 0 : index
    %c8 = arith.constant 8 : index
    %39 = vector.load %arg9[%c0_23, %c8] : memref<64x96xbf16, #tpu.memory_space<vmem>>, vector<64x8xbf16>
    %40 = vector.shape_cast %39 : vector<64x8xbf16> to vector<4x16x8xbf16>
    %c0_24 = arith.constant 0 : index
    %c40 = arith.constant 40 : index
    %41 = vector.load %arg9[%c0_24, %c40] : memref<64x96xbf16, #tpu.memory_space<vmem>>, vector<64x8xbf16>
    %42 = vector.shape_cast %41 : vector<64x8xbf16> to vector<4x16x8xbf16>
    %c0_25 = arith.constant 0 : index
    %c72 = arith.constant 72 : index
    %43 = vector.load %arg9[%c0_25, %c72] : memref<64x96xbf16, #tpu.memory_space<vmem>>, vector<64x8xbf16>
    %44 = vector.shape_cast %43 : vector<64x8xbf16> to vector<4x16x8xbf16>
    "tpu.trace_start"() <{level = 10 : i32, message = "gqd,gkd->gqk"}> : () -> ()
    %cst_26 = arith.constant dense<0.000000e+00> : vector<4x16x16xf32>
    %45 = tpu.matmul %40, %42, %cst_26 {dimension_numbers = #tpu.dot_dimension_numbers<[2], [2], [1], [1], [0, 0, 0, 1, 1, 1], [0], [0]>} : vector<4x16x8xbf16>, vector<4x16x8xbf16>, vector<4x16x16xf32> -> vector<4x16x16xf32>
    "tpu.trace_stop"() : () -> ()
    %46 = vector.shape_cast %45 : vector<4x16x16xf32> to vector<2x2x16x16xf32>
    %c1 = arith.constant 1 : index
    %c0_27 = arith.constant 0 : index
    %c0_28 = arith.constant 0 : index
    %c0_29 = arith.constant 0 : index
    %47 = vector.load %arg5[%c1, %c0_27, %c0_28, %c0_29] : memref<4x2x16x16xf32, #tpu.memory_space<vmem>>, vector<1x2x16x16xf32>
    %48 = vector.shape_cast %47 : vector<1x2x16x16xf32> to vector<2x16x16xf32>
    %49 = vector.shape_cast %48 : vector<2x16x16xf32> to vector<1x2x16x16xf32>
    %50 = vector.broadcast %49 : vector<1x2x16x16xf32> to vector<2x2x16x16xf32>
    %51 = arith.addf %46, %50 : vector<2x2x16x16xf32>
    %cst_30 = arith.constant dense<0xFF800000> : vector<2x2x16xf32>
    %52 = vector.multi_reduction <maximumf>, %51, %cst_30 [3] : vector<2x2x16x16xf32> to vector<2x2x16xf32>
    %53 = vector.shape_cast %52 : vector<2x2x16xf32> to vector<2x2x16x1xf32>
    %54 = vector.broadcast %53 : vector<2x2x16x1xf32> to vector<2x2x16x16xf32>
    %55 = arith.subf %51, %54 : vector<2x2x16x16xf32>
    %56 = math.exp %55 : vector<2x2x16x16xf32>
    %cst_31 = arith.constant dense<0.000000e+00> : vector<2x2x16xf32>
    %57 = vector.multi_reduction <add>, %56, %cst_31 [3] : vector<2x2x16x16xf32> to vector<2x2x16xf32>
    %58 = vector.shape_cast %57 : vector<2x2x16xf32> to vector<2x2x16x1xf32>
    %59 = tpu.reciprocal %58 {approx = true} : vector<2x2x16x1xf32> -> vector<2x2x16x1xf32>
    %60 = vector.broadcast %59 : vector<2x2x16x1xf32> to vector<2x2x16x16xf32>
    %61 = arith.mulf %56, %60 : vector<2x2x16x16xf32>
    %62 = vector.shape_cast %61 : vector<2x2x16x16xf32> to vector<4x16x16xf32>
    %63 = arith.truncf %62 : vector<4x16x16xf32> to vector<4x16x16xbf16>
    "tpu.trace_start"() <{level = 10 : i32, message = "gqk,gkd->gqd"}> : () -> ()
    %cst_32 = arith.constant dense<0.000000e+00> : vector<4x16x8xf32>
    %64 = tpu.matmul %63, %44, %cst_32 {dimension_numbers = #tpu.dot_dimension_numbers<[2], [1], [1], [2], [0, 0, 0, 1, 1, 2], [0], [0]>} : vector<4x16x16xbf16>, vector<4x16x8xbf16>, vector<4x16x8xf32> -> vector<4x16x8xf32>
    "tpu.trace_stop"() : () -> ()
    %65 = vector.shape_cast %64 : vector<4x16x8xf32> to vector<64x8xf32>
    %66 = arith.truncf %65 : vector<64x8xf32> to vector<64x8xbf16>
    %c0_33 = arith.constant 0 : index
    %c8_34 = arith.constant 8 : index
    %67 = vector.load %arg10[%c0_33, %c8_34] : memref<64x32xbf16, #tpu.memory_space<vmem>>, vector<64x8xbf16>
    tpu.vector_store %arg10[%c0_33, %c8_34], %66 {strides = array<i32>} : memref<64x32xbf16, #tpu.memory_space<vmem>>, vector<64x8xbf16>,
    %c0_35 = arith.constant 0 : index
    %c16 = arith.constant 16 : index
    %68 = vector.load %arg9[%c0_35, %c16] : memref<64x96xbf16, #tpu.memory_space<vmem>>, vector<64x8xbf16>
    %69 = vector.shape_cast %68 : vector<64x8xbf16> to vector<4x16x8xbf16>
    %c0_36 = arith.constant 0 : index
    %c48 = arith.constant 48 : index
    %70 = vector.load %arg9[%c0_36, %c48] : memref<64x96xbf16, #tpu.memory_space<vmem>>, vector<64x8xbf16>
    %71 = vector.shape_cast %70 : vector<64x8xbf16> to vector<4x16x8xbf16>
    %c0_37 = arith.constant 0 : index
    %c80 = arith.constant 80 : index
    %72 = vector.load %arg9[%c0_37, %c80] : memref<64x96xbf16, #tpu.memory_space<vmem>>, vector<64x8xbf16>
    %73 = vector.shape_cast %72 : vector<64x8xbf16> to vector<4x16x8xbf16>
    "tpu.trace_start"() <{level = 10 : i32, message = "gqd,gkd->gqk"}> : () -> ()
    %cst_38 = arith.constant dense<0.000000e+00> : vector<4x16x16xf32>
    %74 = tpu.matmul %69, %71, %cst_38 {dimension_numbers = #tpu.dot_dimension_numbers<[2], [2], [1], [1], [0, 0, 0, 1, 1, 1], [0], [0]>} : vector<4x16x8xbf16>, vector<4x16x8xbf16>, vector<4x16x16xf32> -> vector<4x16x16xf32>
    "tpu.trace_stop"() : () -> ()
    %75 = vector.shape_cast %74 : vector<4x16x16xf32> to vector<2x2x16x16xf32>
    %c2 = arith.constant 2 : index
    %c0_39 = arith.constant 0 : index
    %c0_40 = arith.constant 0 : index
    %c0_41 = arith.constant 0 : index
    %76 = vector.load %arg5[%c2, %c0_39, %c0_40, %c0_41] : memref<4x2x16x16xf32, #tpu.memory_space<vmem>>, vector<1x2x16x16xf32>
    %77 = vector.shape_cast %76 : vector<1x2x16x16xf32> to vector<2x16x16xf32>
    %78 = vector.shape_cast %77 : vector<2x16x16xf32> to vector<1x2x16x16xf32>
    %79 = vector.broadcast %78 : vector<1x2x16x16xf32> to vector<2x2x16x16xf32>
    %80 = arith.addf %75, %79 : vector<2x2x16x16xf32>
    %cst_42 = arith.constant dense<0xFF800000> : vector<2x2x16xf32>
    %81 = vector.multi_reduction <maximumf>, %80, %cst_42 [3] : vector<2x2x16x16xf32> to vector<2x2x16xf32>
    %82 = vector.shape_cast %81 : vector<2x2x16xf32> to vector<2x2x16x1xf32>
    %83 = vector.broadcast %82 : vector<2x2x16x1xf32> to vector<2x2x16x16xf32>
    %84 = arith.subf %80, %83 : vector<2x2x16x16xf32>
    %85 = math.exp %84 : vector<2x2x16x16xf32>
    %cst_43 = arith.constant dense<0.000000e+00> : vector<2x2x16xf32>
    %86 = vector.multi_reduction <add>, %85, %cst_43 [3] : vector<2x2x16x16xf32> to vector<2x2x16xf32>
    %87 = vector.shape_cast %86 : vector<2x2x16xf32> to vector<2x2x16x1xf32>
    %88 = tpu.reciprocal %87 {approx = true} : vector<2x2x16x1xf32> -> vector<2x2x16x1xf32>
    %89 = vector.broadcast %88 : vector<2x2x16x1xf32> to vector<2x2x16x16xf32>
    %90 = arith.mulf %85, %89 : vector<2x2x16x16xf32>
    %91 = vector.shape_cast %90 : vector<2x2x16x16xf32> to vector<4x16x16xf32>
    %92 = arith.truncf %91 : vector<4x16x16xf32> to vector<4x16x16xbf16>
    "tpu.trace_start"() <{level = 10 : i32, message = "gqk,gkd->gqd"}> : () -> ()
    %cst_44 = arith.constant dense<0.000000e+00> : vector<4x16x8xf32>
    %93 = tpu.matmul %92, %73, %cst_44 {dimension_numbers = #tpu.dot_dimension_numbers<[2], [1], [1], [2], [0, 0, 0, 1, 1, 2], [0], [0]>} : vector<4x16x16xbf16>, vector<4x16x8xbf16>, vector<4x16x8xf32> -> vector<4x16x8xf32>
    "tpu.trace_stop"() : () -> ()
    %94 = vector.shape_cast %93 : vector<4x16x8xf32> to vector<64x8xf32>
    %95 = arith.truncf %94 : vector<64x8xf32> to vector<64x8xbf16>
    %c0_45 = arith.constant 0 : index
    %c16_46 = arith.constant 16 : index
    %96 = vector.load %arg10[%c0_45, %c16_46] : memref<64x32xbf16, #tpu.memory_space<vmem>>, vector<64x8xbf16>
    tpu.vector_store %arg10[%c0_45, %c16_46], %95 {strides = array<i32>} : memref<64x32xbf16, #tpu.memory_space<vmem>>, vector<64x8xbf16>,
    %c0_47 = arith.constant 0 : index
    %c24 = arith.constant 24 : index
    %97 = vector.load %arg9[%c0_47, %c24] : memref<64x96xbf16, #tpu.memory_space<vmem>>, vector<64x8xbf16>
    %98 = vector.shape_cast %97 : vector<64x8xbf16> to vector<4x16x8xbf16>
    %c0_48 = arith.constant 0 : index
    %c56 = arith.constant 56 : index
    %99 = vector.load %arg9[%c0_48, %c56] : memref<64x96xbf16, #tpu.memory_space<vmem>>, vector<64x8xbf16>
    %100 = vector.shape_cast %99 : vector<64x8xbf16> to vector<4x16x8xbf16>
    %c0_49 = arith.constant 0 : index
    %c88 = arith.constant 88 : index
    %101 = vector.load %arg9[%c0_49, %c88] : memref<64x96xbf16, #tpu.memory_space<vmem>>, vector<64x8xbf16>
    %102 = vector.shape_cast %101 : vector<64x8xbf16> to vector<4x16x8xbf16>
    "tpu.trace_start"() <{level = 10 : i32, message = "gqd,gkd->gqk"}> : () -> ()
    %cst_50 = arith.constant dense<0.000000e+00> : vector<4x16x16xf32>
    %103 = tpu.matmul %98, %100, %cst_50 {dimension_numbers = #tpu.dot_dimension_numbers<[2], [2], [1], [1], [0, 0, 0, 1, 1, 1], [0], [0]>} : vector<4x16x8xbf16>, vector<4x16x8xbf16>, vector<4x16x16xf32> -> vector<4x16x16xf32>
    "tpu.trace_stop"() : () -> ()
    %104 = vector.shape_cast %103 : vector<4x16x16xf32> to vector<2x2x16x16xf32>
    %c3 = arith.constant 3 : index
    %c0_51 = arith.constant 0 : index
    %c0_52 = arith.constant 0 : index
    %c0_53 = arith.constant 0 : index
    %105 = vector.load %arg5[%c3, %c0_51, %c0_52, %c0_53] : memref<4x2x16x16xf32, #tpu.memory_space<vmem>>, vector<1x2x16x16xf32>
    %106 = vector.shape_cast %105 : vector<1x2x16x16xf32> to vector<2x16x16xf32>
    %107 = vector.shape_cast %106 : vector<2x16x16xf32> to vector<1x2x16x16xf32>
    %108 = vector.broadcast %107 : vector<1x2x16x16xf32> to vector<2x2x16x16xf32>
    %109 = arith.addf %104, %108 : vector<2x2x16x16xf32>
    %cst_54 = arith.constant dense<0xFF800000> : vector<2x2x16xf32>
    %110 = vector.multi_reduction <maximumf>, %109, %cst_54 [3] : vector<2x2x16x16xf32> to vector<2x2x16xf32>
    %111 = vector.shape_cast %110 : vector<2x2x16xf32> to vector<2x2x16x1xf32>
    %112 = vector.broadcast %111 : vector<2x2x16x1xf32> to vector<2x2x16x16xf32>
    %113 = arith.subf %109, %112 : vector<2x2x16x16xf32>
    %114 = math.exp %113 : vector<2x2x16x16xf32>
    %cst_55 = arith.constant dense<0.000000e+00> : vector<2x2x16xf32>
    %115 = vector.multi_reduction <add>, %114, %cst_55 [3] : vector<2x2x16x16xf32> to vector<2x2x16xf32>
    %116 = vector.shape_cast %115 : vector<2x2x16xf32> to vector<2x2x16x1xf32>
    %117 = tpu.reciprocal %116 {approx = true} : vector<2x2x16x1xf32> -> vector<2x2x16x1xf32>
    %118 = vector.broadcast %117 : vector<2x2x16x1xf32> to vector<2x2x16x16xf32>
    %119 = arith.mulf %114, %118 : vector<2x2x16x16xf32>
    %120 = vector.shape_cast %119 : vector<2x2x16x16xf32> to vector<4x16x16xf32>
    %121 = arith.truncf %120 : vector<4x16x16xf32> to vector<4x16x16xbf16>
    "tpu.trace_start"() <{level = 10 : i32, message = "gqk,gkd->gqd"}> : () -> ()
    %cst_56 = arith.constant dense<0.000000e+00> : vector<4x16x8xf32>
    %122 = tpu.matmul %121, %102, %cst_56 {dimension_numbers = #tpu.dot_dimension_numbers<[2], [1], [1], [2], [0, 0, 0, 1, 1, 2], [0], [0]>} : vector<4x16x16xbf16>, vector<4x16x8xbf16>, vector<4x16x8xf32> -> vector<4x16x8xf32>
    "tpu.trace_stop"() : () -> ()
    %123 = vector.shape_cast %122 : vector<4x16x8xf32> to vector<64x8xf32>
    %124 = arith.truncf %123 : vector<64x8xf32> to vector<64x8xbf16>
    %c0_57 = arith.constant 0 : index
    %c24_58 = arith.constant 24 : index
    %125 = vector.load %arg10[%c0_57, %c24_58] : memref<64x32xbf16, #tpu.memory_space<vmem>>, vector<64x8xbf16>
    tpu.vector_store %arg10[%c0_57, %c24_58], %124 {strides = array<i32>} : memref<64x32xbf16, #tpu.memory_space<vmem>>, vector<64x8xbf16>,
    %c0_59 = arith.constant 0 : index
    %c0_60 = arith.constant 0 : index
    %126 = vector.load %arg10[%c0_59, %c0_60] : memref<64x32xbf16, #tpu.memory_space<vmem>>, vector<64x32xbf16>
    %c0_61 = arith.constant 0 : index
    %c0_62 = arith.constant 0 : index
    %127 = vector.load %arg6[%c0_61, %c0_62] : memref<32x32xbf16, #tpu.memory_space<vmem>>, vector<32x32xbf16>
    %cst_63 = arith.constant dense<0.000000e+00> : vector<64x32xf32>
    %128 = tpu.matmul %126, %127, %cst_63 {dimension_numbers = #tpu.dot_dimension_numbers<[1], [0], [0], [1], [0, 0, 1, 1], [], []>} : vector<64x32xbf16>, vector<32x32xbf16>, vector<64x32xf32> -> vector<64x32xf32>
    %c0_64 = arith.constant 0 : index
    %c0_65 = arith.constant 0 : index
    %129 = vector.load %arg7[%c0_64, %c0_65] : memref<1x32xf32, #tpu.memory_space<vmem>>, vector<1x32xf32>
    %130 = vector.broadcast %129 : vector<1x32xf32> to vector<64x32xf32>
    %131 = arith.addf %128, %130 : vector<64x32xf32>
    %132 = vector.shape_cast %131 : vector<64x32xf32> to vector<2x2x16x32xf32>
    %c0_66 = arith.constant 0 : index
    %c0_67 = arith.constant 0 : index
    %c0_68 = arith.constant 0 : index
    %c0_69 = arith.constant 0 : index
    %133 = vector.load %arg8[%c0_66, %c0_67, %c0_68, %c0_69] : memref<2x2x16x32xf32, #tpu.memory_space<vmem>>, vector<2x2x16x32xf32>
    tpu.vector_store %arg8[%c0_66, %c0_67, %c0_68, %c0_69], %132 {strides = array<i32>} : memref<2x2x16x32xf32, #tpu.memory_space<vmem>>, vector<2x2x16x32xf32>,
    return
  }
  func.func @transform_0(%arg0: i32, %arg1: i32) -> (i32, i32, i32, i32) {
    %c0_i32 = arith.constant 0 : i32
    %c0_i32_0 = arith.constant 0 : i32
    %c0_i32_1 = arith.constant 0 : i32
    return %arg1, %arg0, %c0_i32, %c0_i32_0 : i32, i32, i32, i32
  }
  func.func @transform_1(%arg0: i32, %arg1: i32) -> (i32, i32) {
    %c0_i32 = arith.constant 0 : i32
    %c0_i32_0 = arith.constant 0 : i32
    %c0_i32_1 = arith.constant 0 : i32
    return %c0_i32, %c0_i32_0 : i32, i32
  }
  func.func @transform_2(%arg0: i32, %arg1: i32) -> (i32, i32) {
    %c0_i32 = arith.constant 0 : i32
    %c0_i32_0 = arith.constant 0 : i32
    %c0_i32_1 = arith.constant 0 : i32
    return %c0_i32, %c0_i32_0 : i32, i32
  }
  func.func @transform_3(%arg0: i32, %arg1: i32) -> (i32, i32, i32, i32) {
    %c0_i32 = arith.constant 0 : i32
    %c0_i32_0 = arith.constant 0 : i32
    %c0_i32_1 = arith.constant 0 : i32
    %c0_i32_2 = arith.constant 0 : i32
    return %c0_i32, %arg0, %c0_i32_0, %c0_i32_1 : i32, i32, i32, i32
  }
  func.func @transform_4(%arg0: i32, %arg1: i32) -> (i32, i32) {
    %c0_i32 = arith.constant 0 : i32
    %c0_i32_0 = arith.constant 0 : i32
    %c0_i32_1 = arith.constant 0 : i32
    return %c0_i32, %c0_i32_0 : i32, i32
  }
  func.func @transform_5(%arg0: i32, %arg1: i32) -> (i32, i32) {
    %c0_i32 = arith.constant 0 : i32
    %c0_i32_0 = arith.constant 0 : i32
    %c0_i32_1 = arith.constant 0 : i32
    return %c0_i32, %c0_i32_0 : i32, i32
  }
  func.func @transform_6(%arg0: i32, %arg1: i32) -> (i32, i32, i32, i32) {
    %c0_i32 = arith.constant 0 : i32
    %c0_i32_0 = arith.constant 0 : i32
    %c0_i32_1 = arith.constant 0 : i32
    return %arg1, %arg0, %c0_i32, %c0_i32_0 : i32, i32, i32, i32
  }
}

</mosaic_0001>

<llo_original>
// kernel: tpu_custom_call.1
$region0: #{tpu_custom_call.1}
  #allocation0 [shape = 'u32[]', space=smem, size = 0x4, offset = 0x4, fixed_abs, tag = 'smem constant byte address 0x4 - core index']
  #allocation1 [shape = 'u32[144,128]{1,0:T(1,128)}', space=vmem, size = 0x12000, scoped, tag = 'internal scratch']
  #allocation2 [shape = 'bf16[64,96]{1,0:T(16,128)(2,1)}', space=vmem, size = 0x4000, scoped, tag = 'scratch operand']
  #allocation3 [shape = 'bf16[64,32]{1,0:T(16,128)(2,1)}', space=vmem, size = 0x4000, scoped, tag = 'scratch operand']
  %s0 = inlined_call_operand.hbm [shape: f32[4,2,16,32], index: 0, kind: input, shape index: {}]
  %s1 = inlined_call_operand.hbm [shape: bf16[32,96], index: 1, kind: input, shape index: {}]
  %s2 = inlined_call_operand.vmem [shape: f32[1,96], index: 2, kind: input, shape index: {}]
  %s3 = inlined_call_operand.hbm [shape: f32[4,2,16,16], index: 3, kind: input, shape index: {}]
  %s4 = inlined_call_operand.hbm [shape: bf16[32,32], index: 4, kind: input, shape index: {}]
  %s5 = inlined_call_operand.vmem [shape: f32[1,32], index: 5, kind: input, shape index: {}]
  %s6 = inlined_call_operand.hbm [shape: f32[4,2,16,32], index: 6, kind: output, shape index: {}]
  %s7 = sld [smem:[#allocation0]]
  $region73: #{tpu_custom_call.1} parent=0
    _
  %s9 = ssub.s32 1, %s7
  %s10 = scalar_select 0, %s9, %s7
  $region1: #{tpu_custom_call.1} parent=0
    #allocation4 [shape = 'u8[65536]{0}', space=vmem, size = 0x10000, scoped, tag = 'input window, operand 0']
    #allocation5 [shape = 's32[2]{0}', space=sflag, size = 0x8, scoped, tag = 'scoped memory for tpu_custom_call.1']
    #allocation6 [shape = 's32[2]{0}', space=sflag, size = 0x8, scoped, tag = 'scoped memory for tpu_custom_call.1']
    #allocation7 [shape = 'u8[8192]{0}', space=vmem, size = 0x2000, scoped, tag = 'input window, operand 1, single buffered']
    #allocation8 [shape = 's32[1]{0}', space=sflag, size = 0x4, scoped, tag = 'scoped memory for tpu_custom_call.1']
    #allocation9 [shape = 'u8[65536]{0}', space=vmem, size = 0x10000, scoped, tag = 'input window, operand 3, single buffered']
    #allocation10 [shape = 'u8[8192]{0}', space=vmem, size = 0x2000, scoped, tag = 'input window, operand 4, single buffered']
    #allocation11 [shape = 's32[1]{0}', space=sflag, size = 0x4, scoped, tag = 'scoped memory for tpu_custom_call.1']
    #allocation12 [shape = 'u8[65536]{0}', space=vmem, size = 0x10000, scoped, tag = 'output window, operand 0']
    %11 = vsyncpa [#allocation5], 0
    %s12 = scalar_lea.sflag [#allocation5], 1
    %13 = vsyncpa %s12, 0
    %14 = vsyncpa [#allocation8], 0
    %15 = vsyncpa [#allocation11], 0
    %16 = vsyncpa [#allocation6], 0
    %s17 = scalar_lea.sflag [#allocation6], 1
    %18 = vsyncpa %s17, 0
    loop: start=0, step=1, limit=4
    $region2: #{tpu_custom_call.1} parent=1 // loop_pre_header
      _
    $region3: #{tpu_custom_call.1} parent=1 // loop_header
      %s20 = sphi 0, %s24
      %p21 = scmp.ge.s32.totalorder %s20, 4
      %s27 = sphi 0, %s39
      %s28 = sphi 0, %s35
      %s29 = sphi 0, %s27
      %s30 = sphi 0, %s28
      %s31 = sphi 0, %s29
      %s32 = sphi 0, %s30
      %s44 = sphi 0, %s46
      %s47 = sphi 0, %s44
      %s48 = sphi 0, %s47
      %s64 = sphi 0, %s48
      %s68 = sphi 0, %s68
      %s70 = sphi 0, %s68
      %s71 = sphi 0, %s70
      %s85 = sphi 0, %s71
      %s89 = sphi 0, %s89
      %s91 = sphi 0, %s89
      %s92 = sphi 0, %s91
      %s106 = sphi 0, %s92
      %s112 = sphi 0, %s114
      %s115 = sphi 0, %s112
      %s116 = sphi 0, %s115
      %s132 = sphi 0, %s116
      %s136 = sphi 0, %s136
      %s138 = sphi 0, %s136
      %s139 = sphi 0, %s138
      %s153 = sphi 0, %s139
      %s157 = sphi 0, %s157
      %s159 = sphi 0, %s157
      %s160 = sphi 0, %s159
      %s174 = sphi 0, %s160
      %s182 = sphi 0, %s184
      %s185 = sphi 0, %s182
      %s186 = sphi 0, %s185
      %s202 = sphi 0, %s186
    $region4: #{tpu_custom_call.1} parent=1 // loop_header_branch
      %23 = sbr.rel (%p21) target = $region8
    $region5: #{tpu_custom_call.1} parent=1 // loop_body
      %s25 = ssub.s32 %s20, 1
      %s26 = ssub.s32 %s20, 2
      %s33 = sadd.s32 1, %s28
      %p34 = scmp.ge.s32.totalorder %s33, 2
      %s35 = scalar_select %p34, 0, %s33
      %s36 = sadd.s32 1, %s27
      %s37 = scalar_select %p34, %s36, %s27
      %p38 = scmp.ge.s32.totalorder %s37, 1
      %s39 = scalar_select %p38, 0, %s37
      %s40 = ssub.s32 %s28, %s35
      %s41 = ssub.s32 %s27, %s39
      %s42 = sor.u32 %s40, %s41
      %p43 = scmp.eq.s32.totalorder %s42, 0
      %s45 = sadd.s32 %s44, 1
      %s46 = scalar_select %p43, %s44, %s45
      %p49 = pneg %p43
      %p50 = scmp.eq.s32.totalorder %s20, 1
      %p51 = por %p49, %p50
      %p52 = scmp.ne.s32.totalorder %s44, %s47
      %p53 = scmp.eq.s32.totalorder %s20, 0
      %p54 = por %p52, %p53
      %p55 = scmp.ne.s32.totalorder %s44, %s47
      %p56 = scmp.eq.s32.totalorder %s25, 1
      %p57 = por %p55, %p56
      %p58 = scmp.ne.s32.totalorder %s47, %s48
      %p59 = scmp.eq.s32.totalorder %s25, 0
      %p60 = por %p58, %p59
      %p61 = scmp.ne.s32.totalorder %s47, %s48
      %p62 = scmp.eq.s32.totalorder %s26, 1
      %p63 = por %p61, %p62
      %p65 = scmp.ne.s32.totalorder %s48, %s64
      %p66 = scmp.eq.s32.totalorder %s26, 0
      %p67 = por %p65, %p66
      %s69 = sadd.s32 %s68, 1
      %p72 = scmp.eq.s32.totalorder %s20, 1
      %p73 = scmp.ne.s32.totalorder %s68, %s70
      %p74 = scmp.eq.s32.totalorder %s20, 0
      %p75 = por %p73, %p74
      %p76 = scmp.ne.s32.totalorder %s68, %s70
      %p77 = scmp.eq.s32.totalorder %s25, 1
      %p78 = por %p76, %p77
      %p79 = scmp.ne.s32.totalorder %s70, %s71
      %p80 = scmp.eq.s32.totalorder %s25, 0
      %p81 = por %p79, %p80
      %p82 = scmp.ne.s32.totalorder %s70, %s71
      %p83 = scmp.eq.s32.totalorder %s26, 1
      %p84 = por %p82, %p83
      %p86 = scmp.ne.s32.totalorder %s71, %s85
      %p87 = scmp.eq.s32.totalorder %s26, 0
      %p88 = por %p86, %p87
      %s90 = sadd.s32 %s89, 1
      %p93 = scmp.eq.s32.totalorder %s20, 1
      %p94 = scmp.ne.s32.totalorder %s89, %s91
      %p95 = scmp.eq.s32.totalorder %s20, 0
      %p96 = por %p94, %p95
      %p97 = scmp.ne.s32.totalorder %s89, %s91
      %p98 = scmp.eq.s32.totalorder %s25, 1
      %p99 = por %p97, %p98
      %p100 = scmp.ne.s32.totalorder %s91, %s92
      %p101 = scmp.eq.s32.totalorder %s25, 0
      %p102 = por %p100, %p101
      %p103 = scmp.ne.s32.totalorder %s91, %s92
      %p104 = scmp.eq.s32.totalorder %s26, 1
      %p105 = por %p103, %p104
      %p107 = scmp.ne.s32.totalorder %s92, %s106
      %p108 = scmp.eq.s32.totalorder %s26, 0
      %p109 = por %p107, %p108
      %s110 = ssub.s32 %s27, %s39
      %p111 = scmp.eq.s32.totalorder %s110, 0
      %s113 = sadd.s32 %s112, 1
      %s114 = scalar_select %p111, %s112, %s113
      %p117 = pneg %p111
      %p118 = scmp.eq.s32.totalorder %s20, 1
      %p119 = por %p117, %p118
      %p120 = scmp.ne.s32.totalorder %s112, %s115
      %p121 = scmp.eq.s32.totalorder %s20, 0
      %p122 = por %p120, %p121
      %p123 = scmp.ne.s32.totalorder %s112, %s115
      %p124 = scmp.eq.s32.totalorder %s25, 1
      %p125 = por %p123, %p124
      %p126 = scmp.ne.s32.totalorder %s115, %s116
      %p127 = scmp.eq.s32.totalorder %s25, 0
      %p128 = por %p126, %p127
      %p129 = scmp.ne.s32.totalorder %s115, %s116
      %p130 = scmp.eq.s32.totalorder %s26, 1
      %p131 = por %p129, %p130
      %p133 = scmp.ne.s32.totalorder %s116, %s132
      %p134 = scmp.eq.s32.totalorder %s26, 0
      %p135 = por %p133, %p134
      %s137 = sadd.s32 %s136, 1
      %p140 = scmp.eq.s32.totalorder %s20, 1
      %p141 = scmp.ne.s32.totalorder %s136, %s138
      %p142 = scmp.eq.s32.totalorder %s20, 0
      %p143 = por %p141, %p142
      %p144 = scmp.ne.s32.totalorder %s136, %s138
      %p145 = scmp.eq.s32.totalorder %s25, 1
      %p146 = por %p144, %p145
      %p147 = scmp.ne.s32.totalorder %s138, %s139
      %p148 = scmp.eq.s32.totalorder %s25, 0
      %p149 = por %p147, %p148
      %p150 = scmp.ne.s32.totalorder %s138, %s139
      %p151 = scmp.eq.s32.totalorder %s26, 1
      %p152 = por %p150, %p151
      %p154 = scmp.ne.s32.totalorder %s139, %s153
      %p155 = scmp.eq.s32.totalorder %s26, 0
      %p156 = por %p154, %p155
      %s158 = sadd.s32 %s157, 1
      %p161 = scmp.eq.s32.totalorder %s20, 1
      %p162 = scmp.ne.s32.totalorder %s157, %s159
      %p163 = scmp.eq.s32.totalorder %s20, 0
      %p164 = por %p162, %p163
      %p165 = scmp.ne.s32.totalorder %s157, %s159
      %p166 = scmp.eq.s32.totalorder %s25, 1
      %p167 = por %p165, %p166
      %p168 = scmp.ne.s32.totalorder %s159, %s160
      %p169 = scmp.eq.s32.totalorder %s25, 0
      %p170 = por %p168, %p169
      %p171 = scmp.ne.s32.totalorder %s159, %s160
      %p172 = scmp.eq.s32.totalorder %s26, 1
      %p173 = por %p171, %p172
      %p175 = scmp.ne.s32.totalorder %s160, %s174
      %p176 = scmp.eq.s32.totalorder %s26, 0
      %p177 = por %p175, %p176
      %s178 = ssub.s32 %s28, %s35
      %s179 = ssub.s32 %s27, %s39
      %s180 = sor.u32 %s178, %s179
      %p181 = scmp.eq.s32.totalorder %s180, 0
      %s183 = sadd.s32 %s182, 1
      %s184 = scalar_select %p181, %s182, %s183
      %p187 = pneg %p181
      %p188 = scmp.eq.s32.totalorder %s20, 1
      %p189 = por %p187, %p188
      %p190 = scmp.ne.s32.totalorder %s182, %s185
      %p191 = scmp.eq.s32.totalorder %s20, 0
      %p192 = por %p190, %p191
      %p193 = scmp.ne.s32.totalorder %s182, %s185
      %p194 = scmp.eq.s32.totalorder %s25, 1
      %p195 = por %p193, %p194
      %p196 = scmp.ne.s32.totalorder %s185, %s186
      %p197 = scmp.eq.s32.totalorder %s25, 0
      %p198 = por %p196, %p197
      %p199 = scmp.ne.s32.totalorder %s185, %s186
      %p200 = scmp.eq.s32.totalorder %s26, 1
      %p201 = por %p199, %p200
      %p203 = scmp.ne.s32.totalorder %s186, %s202
      %p204 = scmp.eq.s32.totalorder %s26, 0
      %p205 = por %p203, %p204
      %p206 = scmp.le.s32.totalorder 1, %s20
      %p207 = scmp.lt.s32.totalorder %s20, 3
      %p208 = pnand %p206, %p207
      %p209 = pneg %p208
      // Predicated region
      $region9: #{tpu_custom_call.1} parent=5 // pred_check
        _
      $region10: #{tpu_custom_call.1} parent=5 // pred_check_branch
        %211 = sbr.rel (%p208) target = $region12
      $region11: #{tpu_custom_call.1} parent=5 // pred_region
        %s212 = ssub.s32 %s20, 1
        // Predicated region
        $region13: #{tpu_custom_call.1} parent=11 // pred_check
          %p213 = pneg %p81
        $region14: #{tpu_custom_call.1} parent=11 // pred_check_branch
          %215 = sbr.rel (%p213) target = $region16
        $region15: #{tpu_custom_call.1} parent=11 // pred_region
          %s217 = ssub.s32 256, 256
          %218 = vsyncadd [#allocation8], %s217
          %s219 = sshll.u32 [#allocation7], 4
          %s220 = int_to_ptr.vmem [resolvable:$true] %s219
          %225 = dma.hbm_to_vmem [thread:$0]  %s1, 256, %s220, [#allocation8], 64, 64, 4
        $region16: #{tpu_custom_call.1} parent=11 // pred_fallthru
          _
        // Predicated region
        $region17: #{tpu_custom_call.1} parent=11 // pred_check
          %p226 = pneg %p102
        $region18: #{tpu_custom_call.1} parent=11 // pred_check_branch
          %228 = sbr.rel (%p226) target = $region20
        $region19: #{tpu_custom_call.1} parent=11 // pred_region
          _
        $region20: #{tpu_custom_call.1} parent=11 // pred_fallthru
          _
        // Predicated region
        $region21: #{tpu_custom_call.1} parent=11 // pred_check
          %p229 = pneg %p128
        $region22: #{tpu_custom_call.1} parent=11 // pred_check_branch
          %231 = sbr.rel (%p229) target = $region24
        $region23: #{tpu_custom_call.1} parent=11 // pred_region
          %s232 = smul.u32 2, %s29
          %s234 = ssub.s32 2048, 2048
          %235 = vsyncadd [#allocation8], %s234
          %s236 = smul.addr %s232, 2
          %s237 = smul.addr %s236, 128
          %s238 = scalar_lea.hbm %s3, %s237
          %s239 = sshll.u32 [#allocation9], 4
          %s240 = int_to_ptr.vmem [resolvable:$true] %s239
          %245 = dma.hbm_to_vmem [thread:$0]  %s238, 2048, %s240, [#allocation8], 128, 128, 8
        $region24: #{tpu_custom_call.1} parent=11 // pred_fallthru
          _
        // Predicated region
        $region25: #{tpu_custom_call.1} parent=11 // pred_check
          %p246 = pneg %p149
        $region26: #{tpu_custom_call.1} parent=11 // pred_check_branch
          %248 = sbr.rel (%p246) target = $region28
        $region27: #{tpu_custom_call.1} parent=11 // pred_region
          %s250 = ssub.s32 256, 256
          %251 = vsyncadd [#allocation11], %s250
          %s252 = sshll.u32 [#allocation10], 4
          %s253 = int_to_ptr.vmem [resolvable:$true] %s252
          %258 = dma.hbm_to_vmem [thread:$0]  %s4, 256, %s253, [#allocation11], 64, 64, 4
        $region28: #{tpu_custom_call.1} parent=11 // pred_fallthru
          _
        // Predicated region
        $region29: #{tpu_custom_call.1} parent=11 // pred_check
          %p259 = pneg %p170
        $region30: #{tpu_custom_call.1} parent=11 // pred_check_branch
          %261 = sbr.rel (%p259) target = $region32
        $region31: #{tpu_custom_call.1} parent=11 // pred_region
          _
        $region32: #{tpu_custom_call.1} parent=11 // pred_fallthru
          _
      $region12: #{tpu_custom_call.1} parent=5 // pred_fallthru
        _
      %p262 = scmp.lt.s32.totalorder %s20, 2
      // Predicated region
      $region33: #{tpu_custom_call.1} parent=5 // pred_check
        %p263 = pneg %p262
      $region34: #{tpu_custom_call.1} parent=5 // pred_check_branch
        %265 = sbr.rel (%p263) target = $region36
      $region35: #{tpu_custom_call.1} parent=5 // pred_region
        // Predicated region
        $region37: #{tpu_custom_call.1} parent=35 // pred_check
          %p266 = pneg %p54
        $region38: #{tpu_custom_call.1} parent=35 // pred_check_branch
          %268 = sbr.rel (%p266) target = $region40
        $region39: #{tpu_custom_call.1} parent=35 // pred_region
          %s269 = sand.u32 %s44, 1
          %s270 = scalar_lea.sflag [#allocation5], %s269
          %s271 = sand.u32 %s44, 1
          %s272 = smul.addr %s271, 64
          %s273 = scalar_lea.vmem [#allocation4], %s272
          %s274 = smul.u32 2, %s28
          %s275 = smul.u32 2, %s27
          %s277 = ssub.s32 1024, 1024
          %278 = vsyncadd %s270, %s277
          %s279 = smul.addr %s275, 2
          %s280 = smul.addr %s274, 4
          %s281 = sadd.s32 %s279, %s280
          %s282 = smul.addr %s281, 128
          %s283 = scalar_lea.hbm %s0, %s282
          %s284 = sshll.u32 %s273, 4
          %s285 = int_to_ptr.vmem [resolvable:$true] %s284
          %290 = dma.hbm_to_vmem [thread:$0]  %s283, 1024, %s285, %s270, 128, 128, 8
        $region40: #{tpu_custom_call.1} parent=35 // pred_fallthru
          _
      $region36: #{tpu_custom_call.1} parent=5 // pred_fallthru
        _
      %p291 = scmp.le.s32.totalorder 1, %s20
      %p292 = scmp.lt.s32.totalorder %s20, 3
      %p293 = pnand %p291, %p292
      %p294 = pneg %p293
      // Predicated region
      $region41: #{tpu_custom_call.1} parent=5 // pred_check
        _
      $region42: #{tpu_custom_call.1} parent=5 // pred_check_branch
        %296 = sbr.rel (%p293) target = $region44
      $region43: #{tpu_custom_call.1} parent=5 // pred_region
        %s297 = ssub.s32 %s20, 1
        %s298 = sand.u32 %s47, 1
        %s299 = scalar_lea.sflag [#allocation5], %s298
        %s300 = sand.u32 %s47, 1
        %s301 = smul.addr %s300, 64
        %s302 = scalar_lea.vmem [#allocation4], %s301
        // Predicated region
        $region45: #{tpu_custom_call.1} parent=43 // pred_check
          %p303 = pneg %p60
        $region46: #{tpu_custom_call.1} parent=43 // pred_check_branch
          %305 = sbr.rel (%p303) target = $region48
        $region47: #{tpu_custom_call.1} parent=43 // pred_region
          %306 = dma.done %s299, 1024
        $region48: #{tpu_custom_call.1} parent=43 // pred_fallthru
          _
        // Predicated region
        $region49: #{tpu_custom_call.1} parent=43 // pred_check
          %p307 = pneg %p81
        $region50: #{tpu_custom_call.1} parent=43 // pred_check_branch
          %309 = sbr.rel (%p307) target = $region52
        $region51: #{tpu_custom_call.1} parent=43 // pred_region
          %310 = dma.done [#allocation8], 256
        $region52: #{tpu_custom_call.1} parent=43 // pred_fallthru
          _
        // Predicated region
        $region53: #{tpu_custom_call.1} parent=43 // pred_check
          %p311 = pneg %p128
        $region54: #{tpu_custom_call.1} parent=43 // pred_check_branch
          %313 = sbr.rel (%p311) target = $region56
        $region55: #{tpu_custom_call.1} parent=43 // pred_region
          %314 = dma.done [#allocation8], 2048
        $region56: #{tpu_custom_call.1} parent=43 // pred_fallthru
          _
        // Predicated region
        $region57: #{tpu_custom_call.1} parent=43 // pred_check
          %p315 = pneg %p149
        $region58: #{tpu_custom_call.1} parent=43 // pred_check_branch
          %317 = sbr.rel (%p315) target = $region60
        $region59: #{tpu_custom_call.1} parent=43 // pred_region
          %318 = dma.done [#allocation11], 256
        $region60: #{tpu_custom_call.1} parent=43 // pred_fallthru
          _
        %s319 = sand.u32 %s47, 1
        %s320 = scalar_lea.sflag [#allocation5], %s319
        %s321 = sand.u32 %s47, 1
        %s322 = smul.addr %s321, 64
        %s323 = scalar_lea.vmem [#allocation4], %s322
        %p324 = pneg %p60
        %p325 = pneg %p57
        %p326 = pneg %p81
        %p327 = pneg %p78
        %p328 = pneg %p102
        %p329 = pneg %p99
        %p330 = pneg %p128
        %p331 = pneg %p125
        %p332 = pneg %p149
        %p333 = pneg %p146
        %p334 = pneg %p170
        %p335 = pneg %p167
        %p336 = pneg %p198
        %p337 = pneg %p195
        %s338 = sand.u32 %s185, 1
        %s339 = scalar_lea.sflag [#allocation6], %s338
        %s340 = sand.u32 %s185, 1
        %s341 = smul.addr %s340, 64
        %s342 = scalar_lea.vmem [#allocation12], %s341
        %s343 = smul.u32 2, %s30
        %s344 = smul.u32 2, %s29
        %s345 = smul.u32 2, %s29
        %s346 = smul.u32 2, %s30
        %s347 = smul.u32 2, %s29
        %v349 = vld [vmem:[%s302] sm:$0xff]
        %v350 = vld [vmem:[%s302 + $0x8] sm:$0xff]
        %v351 = vld [vmem:[%s302 + $0x10] sm:$0xff]
        %v352 = vld [vmem:[%s302 + $0x18] sm:$0xff]
        %v353 = vld [vmem:[%s302 + $0x20] sm:$0xff]
        %v354 = vld [vmem:[%s302 + $0x28] sm:$0xff]
        %v355 = vld [vmem:[%s302 + $0x30] sm:$0xff]
        %v356 = vld [vmem:[%s302 + $0x38] sm:$0xff]
        %v357 = vpack.c.bf16 %v350, %v349
        %v358 = vpack.c.bf16 %v352, %v351
        %v359 = vpack.c.bf16 %v354, %v353
        %v360 = vpack.c.bf16 %v356, %v355
        %v361 = vld [vmem:[#allocation7] sm:$0xf]
        %v362 = vld [vmem:[#allocation7 + $0x4] sm:$0xf]
        %v363 = vld [vmem:[#allocation7 + $0x8] sm:$0xf]
        %v364 = vld [vmem:[#allocation7 + $0xc] sm:$0xf]
        %v365 = vld [vmem:[%s2] sm:$0x1]
        %v367 = vlaneseq
        %v368 = vshrl.u32 %v367, 7
        %v369 = vsub.s32 0, %v368
        %v370 = vrot.slane %v365, %v369
        %v376 = vunpack.c.l.b16 %v361
        %v377 = vunpack.c.l.b16 %v362
        %v378 = vunpack.c.l.b16 %v363
        %v379 = vunpack.c.l.b16 %v364
        %v380 = vpack.c.b16 %v377, %v376
        %v381 = vpack.c.b16 %v379, %v378
        %vm384 = vcmask 261120
        %v386 = vsel %vm384, %v357, 0
        %v389 = vsel %vm384, %v358, 0
        %v392 = vsel %vm384, %v359, 0
        %v395 = vsel %vm384, %v360, 0
        %397 = vmatprep.subr.bf16.mxu0 0
        %398 = vmatpush1.bf16.msra.mxu0 %v380
        %399 = vmatprep.subr.bf16.mxu0 0
        %400 = vmatpush1.bf16.msra.mxu0 %v381
        %401 = vmatprep.subr.bf16.mxu0 0
        %402 = vmatpush1.bf16.msra.mxu0 0
        %403 = vmatprep.subr.bf16.mxu0 0
        %404 = vmatpush1.bf16.msra.mxu0 0
        %405 = vmatprep.subr.bf16.mxu0 0
        %406 = vmatpush1.bf16.msra.mxu0 0
        %407 = vmatprep.subr.bf16.mxu0 0
        %408 = vmatpush1.bf16.msra.mxu0 0
        %409 = vmatprep.subr.bf16.mxu0 0
        %410 = vmatpush1.bf16.msra.mxu0 0
        %411 = vmatprep.subr.bf16.mxu0 0
        %412 = vmatpush1.bf16.msra.mxu0 0
        %413 = vmatprep.subr.bf16.mxu0 0
        %414 = vmatpush1.bf16.msra.mxu0 0
        %415 = vmatprep.subr.bf16.mxu0 0
        %416 = vmatpush1.bf16.msra.mxu0 0
        %417 = vmatprep.subr.bf16.mxu0 0
        %418 = vmatpush1.bf16.msra.mxu0 0
        %419 = vmatprep.subr.bf16.mxu0 0
        %420 = vmatpush1.bf16.msra.mxu0 0
        %421 = vmatprep.subr.bf16.mxu0 0
        %422 = vmatpush1.bf16.msra.mxu0 0
        %423 = vmatprep.subr.bf16.mxu0 0
        %424 = vmatpush1.bf16.msra.mxu0 0
        %425 = vmatprep.subr.bf16.mxu0 0
        %426 = vmatpush1.bf16.msra.mxu0 0
        %427 = vmatprep.subr.bf16.mxu0 0
        %428 = vmatpush1.bf16.msra.mxu0 0
        %429 = vmatprep.mubr.bf16.mxu0 0
        %430 = vmatmul.mubr.bf16.gmra.mrb[0].mxu0 %v386
        %v431 = vpop.f32.mrb[0].mxu0
        %v432 = vadd.f32 %v370, %v431
        %v433 = vpop.f32.mrb[0].mxu0
        %v434 = vpop.f32.mrb[0].mxu0
        %v435 = vadd.f32 %v370, %v434
        %v436 = vpop.f32.mrb[0].mxu0
        %437 = vmatprep.mubr.bf16.mxu0 0
        %438 = vmatmul.mubr.bf16.gmra.mrb[0].mxu0 %v389
        %v439 = vpop.f32.mrb[0].mxu0
        %v440 = vadd.f32 %v370, %v439
        %v441 = vpop.f32.mrb[0].mxu0
        %v442 = vpop.f32.mrb[0].mxu0
        %v443 = vadd.f32 %v370, %v442
        %v444 = vpop.f32.mrb[0].mxu0
        %445 = vmatprep.mubr.bf16.mxu0 0
        %446 = vmatmul.mubr.bf16.gmra.mrb[0].mxu0 %v392
        %v447 = vpop.f32.mrb[0].mxu0
        %v448 = vadd.f32 %v370, %v447
        %v449 = vpop.f32.mrb[0].mxu0
        %v450 = vpop.f32.mrb[0].mxu0
        %v451 = vadd.f32 %v370, %v450
        %v452 = vpop.f32.mrb[0].mxu0
        %453 = vmatprep.mubr.bf16.mxu0 0
        %454 = vmatmul.mubr.bf16.gmra.mrb[0].mxu0 %v395
        %v455 = vpop.f32.mrb[0].mxu0
        %v456 = vadd.f32 %v370, %v455
        %v457 = vpop.f32.mrb[0].mxu0
        %v458 = vpop.f32.mrb[0].mxu0
        %v459 = vadd.f32 %v370, %v458
        %v460 = vpop.f32.mrb[0].mxu0
        %461 = vdwg.mxu0
        %v462 = vpack.c.bf16 %v435, %v432
        %v463 = vpack.c.bf16 %v443, %v440
        %v464 = vpack.c.bf16 %v451, %v448
        %v465 = vpack.c.bf16 %v459, %v456
        %vm466 = vcmask 785408
        %467 = vst.msk [vmem:[#allocation2] sm:$0xff] %vm466, %v462
        %468 = vst.msk [vmem:[#allocation2 + $0x8] sm:$0xff] %vm466, %v463
        %469 = vst.msk [vmem:[#allocation2 + $0x10] sm:$0xff] %vm466, %v464
        %470 = vst.msk [vmem:[#allocation2 + $0x18] sm:$0xff] %vm466, %v465
        %v471 = vld [vmem:[#allocation2] sm:$0xff]
        %v472 = vld [vmem:[#allocation2 + $0x8] sm:$0xff]
        %v473 = vld [vmem:[#allocation2 + $0x10] sm:$0xff]
        %v474 = vld [vmem:[#allocation2 + $0x18] sm:$0xff]
        %476 = vrot.lane.b32.xlu0 %v471, 96
        %v477 = vpop.permute.xlu0 %476
        %vm478 = vcmask 64512
        %v480 = vsel %vm478, %v471, 0
        %v483 = vsel %vm478, %v477, 0
        %485 = vmatprep.subr.bf16.mxu0 0
        %486 = vmatpush1.bf16.xpose.msra.mxu0 %v483
        %487 = vmatprep.subr.bf16.mxu0 0
        %488 = vmatpush1.bf16.xpose.msra.mxu0 0
        %489 = vmatprep.subr.bf16.mxu0 0
        %490 = vmatpush1.bf16.xpose.msra.mxu0 0
        %491 = vmatprep.subr.bf16.mxu0 0
        %492 = vmatpush1.bf16.xpose.msra.mxu0 0
        %493 = vmatprep.subr.bf16.mxu0 0
        %494 = vmatpush1.bf16.xpose.msra.mxu0 0
        %495 = vmatprep.subr.bf16.mxu0 0
        %496 = vmatpush1.bf16.xpose.msra.mxu0 0
        %497 = vmatprep.subr.bf16.mxu0 0
        %498 = vmatpush1.bf16.xpose.msra.mxu0 0
        %499 = vmatprep.subr.bf16.mxu0 0
        %500 = vmatpush1.bf16.xpose.msra.mxu0 0
        %501 = vmatprep.subr.bf16.mxu0 0
        %502 = vmatpush1.bf16.xpose.msra.mxu0 0
        %503 = vmatprep.subr.bf16.mxu0 0
        %504 = vmatpush1.bf16.xpose.msra.mxu0 0
        %505 = vmatprep.subr.bf16.mxu0 0
        %506 = vmatpush1.bf16.xpose.msra.mxu0 0
        %507 = vmatprep.subr.bf16.mxu0 0
        %508 = vmatpush1.bf16.xpose.msra.mxu0 0
        %509 = vmatprep.subr.bf16.mxu0 0
        %510 = vmatpush1.bf16.xpose.msra.mxu0 0
        %511 = vmatprep.subr.bf16.mxu0 0
        %512 = vmatpush1.bf16.xpose.msra.mxu0 0
        %513 = vmatprep.subr.bf16.mxu0 0
        %514 = vmatpush1.bf16.xpose.msra.mxu0 0
        %515 = vmatprep.subr.bf16.mxu0 0
        %516 = vmatpush1.bf16.xpose.msra.mxu0 0
        %517 = vmatprep.mubr.bf16.mxu0 0
        %518 = vmatmul.mubr.bf16.gmra.mrb[0].mxu0 %v480
        %v519 = vpop.f32.mrb[0].mxu0
        %v520 = vadd.f32 0.0, %v519
        %v521 = vpop.f32.mrb[0].mxu0
        %v522 = vpop.f32.mrb[0].mxu0
        %v523 = vadd.f32 0.0, %v522
        %v524 = vpop.f32.mrb[0].mxu0
        %525 = vdwg.mxu0
        %527 = vrot.lane.b32.xlu0 %v472, 96
        %v528 = vpop.permute.xlu0 %527
        %v530 = vsel %vm478, %v472, 0
        %v533 = vsel %vm478, %v528, 0
        %535 = vmatprep.subr.bf16.mxu0 0
        %536 = vmatpush1.bf16.xpose.msra.mxu0 %v533
        %537 = vmatprep.subr.bf16.mxu0 0
        %538 = vmatpush1.bf16.xpose.msra.mxu0 0
        %539 = vmatprep.subr.bf16.mxu0 0
        %540 = vmatpush1.bf16.xpose.msra.mxu0 0
        %541 = vmatprep.subr.bf16.mxu0 0
        %542 = vmatpush1.bf16.xpose.msra.mxu0 0
        %543 = vmatprep.subr.bf16.mxu0 0
        %544 = vmatpush1.bf16.xpose.msra.mxu0 0
        %545 = vmatprep.subr.bf16.mxu0 0
        %546 = vmatpush1.bf16.xpose.msra.mxu0 0
        %547 = vmatprep.subr.bf16.mxu0 0
        %548 = vmatpush1.bf16.xpose.msra.mxu0 0
        %549 = vmatprep.subr.bf16.mxu0 0
        %550 = vmatpush1.bf16.xpose.msra.mxu0 0
        %551 = vmatprep.subr.bf16.mxu0 0
        %552 = vmatpush1.bf16.xpose.msra.mxu0 0
        %553 = vmatprep.subr.bf16.mxu0 0
        %554 = vmatpush1.bf16.xpose.msra.mxu0 0
        %555 = vmatprep.subr.bf16.mxu0 0
        %556 = vmatpush1.bf16.xpose.msra.mxu0 0
        %557 = vmatprep.subr.bf16.mxu0 0
        %558 = vmatpush1.bf16.xpose.msra.mxu0 0
        %559 = vmatprep.subr.bf16.mxu0 0
        %560 = vmatpush1.bf16.xpose.msra.mxu0 0
        %561 = vmatprep.subr.bf16.mxu0 0
        %562 = vmatpush1.bf16.xpose.msra.mxu0 0
        %563 = vmatprep.subr.bf16.mxu0 0
        %564 = vmatpush1.bf16.xpose.msra.mxu0 0
        %565 = vmatprep.subr.bf16.mxu0 0
        %566 = vmatpush1.bf16.xpose.msra.mxu0 0
        %567 = vmatprep.mubr.bf16.mxu0 0
        %568 = vmatmul.mubr.bf16.gmra.mrb[0].mxu0 %v530
        %v569 = vpop.f32.mrb[0].mxu0
        %v570 = vadd.f32 0.0, %v569
        %v571 = vpop.f32.mrb[0].mxu0
        %v572 = vpop.f32.mrb[0].mxu0
        %v573 = vadd.f32 0.0, %v572
        %v574 = vpop.f32.mrb[0].mxu0
        %575 = vdwg.mxu0
        %577 = vrot.lane.b32.xlu0 %v473, 96
        %v578 = vpop.permute.xlu0 %577
        %v580 = vsel %vm478, %v473, 0
        %v583 = vsel %vm478, %v578, 0
        %585 = vmatprep.subr.bf16.mxu0 0
        %586 = vmatpush1.bf16.xpose.msra.mxu0 %v583
        %587 = vmatprep.subr.bf16.mxu0 0
        %588 = vmatpush1.bf16.xpose.msra.mxu0 0
        %589 = vmatprep.subr.bf16.mxu0 0
        %590 = vmatpush1.bf16.xpose.msra.mxu0 0
        %591 = vmatprep.subr.bf16.mxu0 0
        %592 = vmatpush1.bf16.xpose.msra.mxu0 0
        %593 = vmatprep.subr.bf16.mxu0 0
        %594 = vmatpush1.bf16.xpose.msra.mxu0 0
        %595 = vmatprep.subr.bf16.mxu0 0
        %596 = vmatpush1.bf16.xpose.msra.mxu0 0
        %597 = vmatprep.subr.bf16.mxu0 0
        %598 = vmatpush1.bf16.xpose.msra.mxu0 0
        %599 = vmatprep.subr.bf16.mxu0 0
        %600 = vmatpush1.bf16.xpose.msra.mxu0 0
        %601 = vmatprep.subr.bf16.mxu0 0
        %602 = vmatpush1.bf16.xpose.msra.mxu0 0
        %603 = vmatprep.subr.bf16.mxu0 0
        %604 = vmatpush1.bf16.xpose.msra.mxu0 0
        %605 = vmatprep.subr.bf16.mxu0 0
        %606 = vmatpush1.bf16.xpose.msra.mxu0 0
        %607 = vmatprep.subr.bf16.mxu0 0
        %608 = vmatpush1.bf16.xpose.msra.mxu0 0
        %609 = vmatprep.subr.bf16.mxu0 0
        %610 = vmatpush1.bf16.xpose.msra.mxu0 0
        %611 = vmatprep.subr.bf16.mxu0 0
        %612 = vmatpush1.bf16.xpose.msra.mxu0 0
        %613 = vmatprep.subr.bf16.mxu0 0
        %614 = vmatpush1.bf16.xpose.msra.mxu0 0
        %615 = vmatprep.subr.bf16.mxu0 0
        %616 = vmatpush1.bf16.xpose.msra.mxu0 0
        %617 = vmatprep.mubr.bf16.mxu0 0
        %618 = vmatmul.mubr.bf16.gmra.mrb[0].mxu0 %v580
        %v619 = vpop.f32.mrb[0].mxu0
        %v620 = vadd.f32 0.0, %v619
        %v621 = vpop.f32.mrb[0].mxu0
        %v622 = vpop.f32.mrb[0].mxu0
        %v623 = vadd.f32 0.0, %v622
        %v624 = vpop.f32.mrb[0].mxu0
        %625 = vdwg.mxu0
        %627 = vrot.lane.b32.xlu0 %v474, 96
        %v628 = vpop.permute.xlu0 %627
        %v630 = vsel %vm478, %v474, 0
        %v633 = vsel %vm478, %v628, 0
        %635 = vmatprep.subr.bf16.mxu0 0
        %636 = vmatpush1.bf16.xpose.msra.mxu0 %v633
        %637 = vmatprep.subr.bf16.mxu0 0
        %638 = vmatpush1.bf16.xpose.msra.mxu0 0
        %639 = vmatprep.subr.bf16.mxu0 0
        %640 = vmatpush1.bf16.xpose.msra.mxu0 0
        %641 = vmatprep.subr.bf16.mxu0 0
        %642 = vmatpush1.bf16.xpose.msra.mxu0 0
        %643 = vmatprep.subr.bf16.mxu0 0
        %644 = vmatpush1.bf16.xpose.msra.mxu0 0
        %645 = vmatprep.subr.bf16.mxu0 0
        %646 = vmatpush1.bf16.xpose.msra.mxu0 0
        %647 = vmatprep.subr.bf16.mxu0 0
        %648 = vmatpush1.bf16.xpose.msra.mxu0 0
        %649 = vmatprep.subr.bf16.mxu0 0
        %650 = vmatpush1.bf16.xpose.msra.mxu0 0
        %651 = vmatprep.subr.bf16.mxu0 0
        %652 = vmatpush1.bf16.xpose.msra.mxu0 0
        %653 = vmatprep.subr.bf16.mxu0 0
        %654 = vmatpush1.bf16.xpose.msra.mxu0 0
        %655 = vmatprep.subr.bf16.mxu0 0
        %656 = vmatpush1.bf16.xpose.msra.mxu0 0
        %657 = vmatprep.subr.bf16.mxu0 0
        %658 = vmatpush1.bf16.xpose.msra.mxu0 0
        %659 = vmatprep.subr.bf16.mxu0 0
        %660 = vmatpush1.bf16.xpose.msra.mxu0 0
        %661 = vmatprep.subr.bf16.mxu0 0
        %662 = vmatpush1.bf16.xpose.msra.mxu0 0
        %663 = vmatprep.subr.bf16.mxu0 0
        %664 = vmatpush1.bf16.xpose.msra.mxu0 0
        %665 = vmatprep.subr.bf16.mxu0 0
        %666 = vmatpush1.bf16.xpose.msra.mxu0 0
        %667 = vmatprep.mubr.bf16.mxu0 0
        %668 = vmatmul.mubr.bf16.gmra.mrb[0].mxu0 %v630
        %v669 = vpop.f32.mrb[0].mxu0
        %v670 = vadd.f32 0.0, %v669
        %v671 = vpop.f32.mrb[0].mxu0
        %v672 = vpop.f32.mrb[0].mxu0
        %v673 = vadd.f32 0.0, %v672
        %v674 = vpop.f32.mrb[0].mxu0
        %675 = vdwg.mxu0
        %v676 = vld [vmem:[#allocation9] sm:$0xff]
        %v677 = vld [vmem:[#allocation9 + $0x8] sm:$0xff]
        %v678 = vld [vmem:[#allocation9 + $0x10] sm:$0xff]
        %v679 = vld [vmem:[#allocation9 + $0x18] sm:$0xff]
        %v680 = vadd.f32 %v520, %v676
        %v681 = vadd.f32 %v523, %v677
        %v682 = vadd.f32 %v570, %v678
        %v683 = vadd.f32 %v573, %v679
        %v684 = vadd.f32 %v620, %v676
        %v685 = vadd.f32 %v623, %v677
        %v686 = vadd.f32 %v670, %v678
        %v687 = vadd.f32 %v673, %v679
        %vm688 = vcmask 130048
        %v689 = vsel %vm688, %v680, -inf
        %690 = vmax.xlane.f32.xlu0 %v689
        %v691 = vpop.xlane.xlu0 %690
        %v692 = vsel %vm688, %v681, -inf
        %693 = vmax.xlane.f32.xlu0 %v692
        %v694 = vpop.xlane.xlu0 %693
        %v695 = vsel %vm688, %v682, -inf
        %696 = vmax.xlane.f32.xlu0 %v695
        %v697 = vpop.xlane.xlu0 %696
        %v698 = vsel %vm688, %v683, -inf
        %699 = vmax.xlane.f32.xlu0 %v698
        %v700 = vpop.xlane.xlu0 %699
        %v701 = vsel %vm688, %v684, -inf
        %702 = vmax.xlane.f32.xlu0 %v701
        %v703 = vpop.xlane.xlu0 %702
        %v704 = vsel %vm688, %v685, -inf
        %705 = vmax.xlane.f32.xlu0 %v704
        %v706 = vpop.xlane.xlu0 %705
        %v707 = vsel %vm688, %v686, -inf
        %708 = vmax.xlane.f32.xlu0 %v707
        %v709 = vpop.xlane.xlu0 %708
        %v710 = vsel %vm688, %v687, -inf
        %711 = vmax.xlane.f32.xlu0 %v710
        %v712 = vpop.xlane.xlu0 %711
        %v713 = vsub.f32 %v680, %v691
        %v714 = vsub.f32 %v681, %v694
        %v715 = vsub.f32 %v682, %v697
        %v716 = vsub.f32 %v683, %v700
        %v717 = vsub.f32 %v684, %v703
        %v718 = vsub.f32 %v685, %v706
        %v719 = vsub.f32 %v686, %v709
        %v720 = vsub.f32 %v687, %v712
        %v721 = vmul.f32 %v713, 1.442695
        %v722 = vpow.pop %v721
        %v723 = vmul.f32 %v714, 1.442695
        %v724 = vpow.pop %v723
        %v725 = vmul.f32 %v715, 1.442695
        %v726 = vpow.pop %v725
        %v727 = vmul.f32 %v716, 1.442695
        %v728 = vpow.pop %v727
        %v729 = vmul.f32 %v717, 1.442695
        %v730 = vpow.pop %v729
        %v731 = vmul.f32 %v718, 1.442695
        %v732 = vpow.pop %v731
        %v733 = vmul.f32 %v719, 1.442695
        %v734 = vpow.pop %v733
        %v735 = vmul.f32 %v720, 1.442695
        %v736 = vpow.pop %v735
        %v737 = vsel %vm688, %v722, 0.0
        %738 = vadd.xlane.f32.xlu0 %v737
        %v739 = vpop.xlane.xlu0 %738
        %v740 = vsel %vm688, %v724, 0.0
        %741 = vadd.xlane.f32.xlu0 %v740
        %v742 = vpop.xlane.xlu0 %741
        %v743 = vsel %vm688, %v726, 0.0
        %744 = vadd.xlane.f32.xlu0 %v743
        %v745 = vpop.xlane.xlu0 %744
        %v746 = vsel %vm688, %v728, 0.0
        %747 = vadd.xlane.f32.xlu0 %v746
        %v748 = vpop.xlane.xlu0 %747
        %v749 = vsel %vm688, %v730, 0.0
        %750 = vadd.xlane.f32.xlu0 %v749
        %v751 = vpop.xlane.xlu0 %750
        %v752 = vsel %vm688, %v732, 0.0
        %753 = vadd.xlane.f32.xlu0 %v752
        %v754 = vpop.xlane.xlu0 %753
        %v755 = vsel %vm688, %v734, 0.0
        %756 = vadd.xlane.f32.xlu0 %v755
        %v757 = vpop.xlane.xlu0 %756
        %v758 = vsel %vm688, %v736, 0.0
        %759 = vadd.xlane.f32.xlu0 %v758
        %v760 = vpop.xlane.xlu0 %759
        %v761 = vrcp.pop %v739
        %v762 = vrcp.pop %v742
        %v763 = vrcp.pop %v745
        %v764 = vrcp.pop %v748
        %v765 = vrcp.pop %v751
        %v766 = vrcp.pop %v754
        %v767 = vrcp.pop %v757
        %v768 = vrcp.pop %v760
        %v769 = vmul.f32 %v722, %v761
        %v770 = vmul.f32 %v724, %v762
        %v771 = vmul.f32 %v726, %v763
        %v772 = vmul.f32 %v728, %v764
        %v773 = vmul.f32 %v730, %v765
        %v774 = vmul.f32 %v732, %v766
        %v775 = vmul.f32 %v734, %v767
        %v776 = vmul.f32 %v736, %v768
        %v777 = vpack.c.bf16 %v770, %v769
        %v778 = vpack.c.bf16 %v772, %v771
        %v779 = vpack.c.bf16 %v774, %v773
        %v780 = vpack.c.bf16 %v776, %v775
        %781 = vrot.lane.b32.xlu0 %v471, 64
        %v782 = vpop.permute.xlu0 %781
        %v785 = vsel %vm688, %v777, 0
        %787 = vmatprep.subr.bf16.mxu0 0
        %788 = vmatpush1.bf16.msra.mxu0 %v782
        %789 = vmatprep.subr.bf16.mxu0 0
        %790 = vmatpush1.bf16.msra.mxu0 0
        %791 = vmatprep.subr.bf16.mxu0 0
        %792 = vmatpush1.bf16.msra.mxu0 0
        %793 = vmatprep.subr.bf16.mxu0 0
        %794 = vmatpush1.bf16.msra.mxu0 0
        %795 = vmatprep.subr.bf16.mxu0 0
        %796 = vmatpush1.bf16.msra.mxu0 0
        %797 = vmatprep.subr.bf16.mxu0 0
        %798 = vmatpush1.bf16.msra.mxu0 0
        %799 = vmatprep.subr.bf16.mxu0 0
        %800 = vmatpush1.bf16.msra.mxu0 0
        %801 = vmatprep.subr.bf16.mxu0 0
        %802 = vmatpush1.bf16.msra.mxu0 0
        %803 = vmatprep.subr.bf16.mxu0 0
        %804 = vmatpush1.bf16.msra.mxu0 0
        %805 = vmatprep.subr.bf16.mxu0 0
        %806 = vmatpush1.bf16.msra.mxu0 0
        %807 = vmatprep.subr.bf16.mxu0 0
        %808 = vmatpush1.bf16.msra.mxu0 0
        %809 = vmatprep.subr.bf16.mxu0 0
        %810 = vmatpush1.bf16.msra.mxu0 0
        %811 = vmatprep.subr.bf16.mxu0 0
        %812 = vmatpush1.bf16.msra.mxu0 0
        %813 = vmatprep.subr.bf16.mxu0 0
        %814 = vmatpush1.bf16.msra.mxu0 0
        %815 = vmatprep.subr.bf16.mxu0 0
        %816 = vmatpush1.bf16.msra.mxu0 0
        %817 = vmatprep.subr.bf16.mxu0 0
        %818 = vmatpush1.bf16.msra.mxu0 0
        %819 = vmatprep.mubr.bf16.mxu0 0
        %820 = vmatmul.mubr.bf16.gmra.mrb[0].mxu0 %v785
        %v821 = vpop.f32.mrb[0].mxu0
        %v822 = vadd.f32 0.0, %v821
        %v823 = vpop.f32.mrb[0].mxu0
        %v824 = vpop.f32.mrb[0].mxu0
        %v825 = vadd.f32 0.0, %v824
        %v826 = vpop.f32.mrb[0].mxu0
        %827 = vdwg.mxu0
        %828 = vrot.lane.b32.xlu0 %v472, 64
        %v829 = vpop.permute.xlu0 %828
        %v832 = vsel %vm688, %v778, 0
        %834 = vmatprep.subr.bf16.mxu0 0
        %835 = vmatpush1.bf16.msra.mxu0 %v829
        %836 = vmatprep.subr.bf16.mxu0 0
        %837 = vmatpush1.bf16.msra.mxu0 0
        %838 = vmatprep.subr.bf16.mxu0 0
        %839 = vmatpush1.bf16.msra.mxu0 0
        %840 = vmatprep.subr.bf16.mxu0 0
        %841 = vmatpush1.bf16.msra.mxu0 0
        %842 = vmatprep.subr.bf16.mxu0 0
        %843 = vmatpush1.bf16.msra.mxu0 0
        %844 = vmatprep.subr.bf16.mxu0 0
        %845 = vmatpush1.bf16.msra.mxu0 0
        %846 = vmatprep.subr.bf16.mxu0 0
        %847 = vmatpush1.bf16.msra.mxu0 0
        %848 = vmatprep.subr.bf16.mxu0 0
        %849 = vmatpush1.bf16.msra.mxu0 0
        %850 = vmatprep.subr.bf16.mxu0 0
        %851 = vmatpush1.bf16.msra.mxu0 0
        %852 = vmatprep.subr.bf16.mxu0 0
        %853 = vmatpush1.bf16.msra.mxu0 0
        %854 = vmatprep.subr.bf16.mxu0 0
        %855 = vmatpush1.bf16.msra.mxu0 0
        %856 = vmatprep.subr.bf16.mxu0 0
        %857 = vmatpush1.bf16.msra.mxu0 0
        %858 = vmatprep.subr.bf16.mxu0 0
        %859 = vmatpush1.bf16.msra.mxu0 0
        %860 = vmatprep.subr.bf16.mxu0 0
        %861 = vmatpush1.bf16.msra.mxu0 0
        %862 = vmatprep.subr.bf16.mxu0 0
        %863 = vmatpush1.bf16.msra.mxu0 0
        %864 = vmatprep.subr.bf16.mxu0 0
        %865 = vmatpush1.bf16.msra.mxu0 0
        %866 = vmatprep.mubr.bf16.mxu0 0
        %867 = vmatmul.mubr.bf16.gmra.mrb[0].mxu0 %v832
        %v868 = vpop.f32.mrb[0].mxu0
        %v869 = vadd.f32 0.0, %v868
        %v870 = vpop.f32.mrb[0].mxu0
        %v871 = vpop.f32.mrb[0].mxu0
        %v872 = vadd.f32 0.0, %v871
        %v873 = vpop.f32.mrb[0].mxu0
        %874 = vdwg.mxu0
        %875 = vrot.lane.b32.xlu0 %v473, 64
        %v876 = vpop.permute.xlu0 %875
        %v879 = vsel %vm688, %v779, 0
        %881 = vmatprep.subr.bf16.mxu0 0
        %882 = vmatpush1.bf16.msra.mxu0 %v876
        %883 = vmatprep.subr.bf16.mxu0 0
        %884 = vmatpush1.bf16.msra.mxu0 0
        %885 = vmatprep.subr.bf16.mxu0 0
        %886 = vmatpush1.bf16.msra.mxu0 0
        %887 = vmatprep.subr.bf16.mxu0 0
        %888 = vmatpush1.bf16.msra.mxu0 0
        %889 = vmatprep.subr.bf16.mxu0 0
        %890 = vmatpush1.bf16.msra.mxu0 0
        %891 = vmatprep.subr.bf16.mxu0 0
        %892 = vmatpush1.bf16.msra.mxu0 0
        %893 = vmatprep.subr.bf16.mxu0 0
        %894 = vmatpush1.bf16.msra.mxu0 0
        %895 = vmatprep.subr.bf16.mxu0 0
        %896 = vmatpush1.bf16.msra.mxu0 0
        %897 = vmatprep.subr.bf16.mxu0 0
        %898 = vmatpush1.bf16.msra.mxu0 0
        %899 = vmatprep.subr.bf16.mxu0 0
        %900 = vmatpush1.bf16.msra.mxu0 0
        %901 = vmatprep.subr.bf16.mxu0 0
        %902 = vmatpush1.bf16.msra.mxu0 0
        %903 = vmatprep.subr.bf16.mxu0 0
        %904 = vmatpush1.bf16.msra.mxu0 0
        %905 = vmatprep.subr.bf16.mxu0 0
        %906 = vmatpush1.bf16.msra.mxu0 0
        %907 = vmatprep.subr.bf16.mxu0 0
        %908 = vmatpush1.bf16.msra.mxu0 0
        %909 = vmatprep.subr.bf16.mxu0 0
        %910 = vmatpush1.bf16.msra.mxu0 0
        %911 = vmatprep.subr.bf16.mxu0 0
        %912 = vmatpush1.bf16.msra.mxu0 0
        %913 = vmatprep.mubr.bf16.mxu0 0
        %914 = vmatmul.mubr.bf16.gmra.mrb[0].mxu0 %v879
        %v915 = vpop.f32.mrb[0].mxu0
        %v916 = vadd.f32 0.0, %v915
        %v917 = vpop.f32.mrb[0].mxu0
        %v918 = vpop.f32.mrb[0].mxu0
        %v919 = vadd.f32 0.0, %v918
        %v920 = vpop.f32.mrb[0].mxu0
        %921 = vdwg.mxu0
        %922 = vrot.lane.b32.xlu0 %v474, 64
        %v923 = vpop.permute.xlu0 %922
        %v926 = vsel %vm688, %v780, 0
        %928 = vmatprep.subr.bf16.mxu0 0
        %929 = vmatpush1.bf16.msra.mxu0 %v923
        %930 = vmatprep.subr.bf16.mxu0 0
        %931 = vmatpush1.bf16.msra.mxu0 0
        %932 = vmatprep.subr.bf16.mxu0 0
        %933 = vmatpush1.bf16.msra.mxu0 0
        %934 = vmatprep.subr.bf16.mxu0 0
        %935 = vmatpush1.bf16.msra.mxu0 0
        %936 = vmatprep.subr.bf16.mxu0 0
        %937 = vmatpush1.bf16.msra.mxu0 0
        %938 = vmatprep.subr.bf16.mxu0 0
        %939 = vmatpush1.bf16.msra.mxu0 0
        %940 = vmatprep.subr.bf16.mxu0 0
        %941 = vmatpush1.bf16.msra.mxu0 0
        %942 = vmatprep.subr.bf16.mxu0 0
        %943 = vmatpush1.bf16.msra.mxu0 0
        %944 = vmatprep.subr.bf16.mxu0 0
        %945 = vmatpush1.bf16.msra.mxu0 0
        %946 = vmatprep.subr.bf16.mxu0 0
        %947 = vmatpush1.bf16.msra.mxu0 0
        %948 = vmatprep.subr.bf16.mxu0 0
        %949 = vmatpush1.bf16.msra.mxu0 0
        %950 = vmatprep.subr.bf16.mxu0 0
        %951 = vmatpush1.bf16.msra.mxu0 0
        %952 = vmatprep.subr.bf16.mxu0 0
        %953 = vmatpush1.bf16.msra.mxu0 0
        %954 = vmatprep.subr.bf16.mxu0 0
        %955 = vmatpush1.bf16.msra.mxu0 0
        %956 = vmatprep.subr.bf16.mxu0 0
        %957 = vmatpush1.bf16.msra.mxu0 0
        %958 = vmatprep.subr.bf16.mxu0 0
        %959 = vmatpush1.bf16.msra.mxu0 0
        %960 = vmatprep.mubr.bf16.mxu0 0
        %961 = vmatmul.mubr.bf16.gmra.mrb[0].mxu0 %v926
        %v962 = vpop.f32.mrb[0].mxu0
        %v963 = vadd.f32 0.0, %v962
        %v964 = vpop.f32.mrb[0].mxu0
        %v965 = vpop.f32.mrb[0].mxu0
        %v966 = vadd.f32 0.0, %v965
        %v967 = vpop.f32.mrb[0].mxu0
        %968 = vdwg.mxu0
        %v969 = vpack.c.bf16 %v825, %v822
        %v970 = vpack.c.bf16 %v872, %v869
        %v971 = vpack.c.bf16 %v919, %v916
        %v972 = vpack.c.bf16 %v966, %v963
        %973 = vst.msk [vmem:[#allocation3] sm:$0xff] %vm478, %v969
        %974 = vst.msk [vmem:[#allocation3 + $0x8] sm:$0xff] %vm478, %v970
        %975 = vst.msk [vmem:[#allocation3 + $0x10] sm:$0xff] %vm478, %v971
        %976 = vst.msk [vmem:[#allocation3 + $0x18] sm:$0xff] %vm478, %v972
        %v977 = vld [vmem:[#allocation2] sm:$0xff]
        %v978 = vld [vmem:[#allocation2 + $0x8] sm:$0xff]
        %v979 = vld [vmem:[#allocation2 + $0x10] sm:$0xff]
        %v980 = vld [vmem:[#allocation2 + $0x18] sm:$0xff]
        %982 = vrot.lane.b32.xlu0 %v977, 120
        %v983 = vpop.permute.xlu0 %982
        %984 = vrot.lane.b32.xlu0 %v977, 88
        %v985 = vpop.permute.xlu0 %984
        %v987 = vsel %vm478, %v983, 0
        %v990 = vsel %vm478, %v985, 0
        %992 = vmatprep.subr.bf16.mxu0 0
        %993 = vmatpush1.bf16.xpose.msra.mxu0 %v990
        %994 = vmatprep.subr.bf16.mxu0 0
        %995 = vmatpush1.bf16.xpose.msra.mxu0 0
        %996 = vmatprep.subr.bf16.mxu0 0
        %997 = vmatpush1.bf16.xpose.msra.mxu0 0
        %998 = vmatprep.subr.bf16.mxu0 0
        %999 = vmatpush1.bf16.xpose.msra.mxu0 0
        %1000 = vmatprep.subr.bf16.mxu0 0
        %1001 = vmatpush1.bf16.xpose.msra.mxu0 0
        %1002 = vmatprep.subr.bf16.mxu0 0
        %1003 = vmatpush1.bf16.xpose.msra.mxu0 0
        %1004 = vmatprep.subr.bf16.mxu0 0
        %1005 = vmatpush1.bf16.xpose.msra.mxu0 0
        %1006 = vmatprep.subr.bf16.mxu0 0
        %1007 = vmatpush1.bf16.xpose.msra.mxu0 0
        %1008 = vmatprep.subr.bf16.mxu0 0
        %1009 = vmatpush1.bf16.xpose.msra.mxu0 0
        %1010 = vmatprep.subr.bf16.mxu0 0
        %1011 = vmatpush1.bf16.xpose.msra.mxu0 0
        %1012 = vmatprep.subr.bf16.mxu0 0
        %1013 = vmatpush1.bf16.xpose.msra.mxu0 0
        %1014 = vmatprep.subr.bf16.mxu0 0
        %1015 = vmatpush1.bf16.xpose.msra.mxu0 0
        %1016 = vmatprep.subr.bf16.mxu0 0
        %1017 = vmatpush1.bf16.xpose.msra.mxu0 0
        %1018 = vmatprep.subr.bf16.mxu0 0
        %1019 = vmatpush1.bf16.xpose.msra.mxu0 0
        %1020 = vmatprep.subr.bf16.mxu0 0
        %1021 = vmatpush1.bf16.xpose.msra.mxu0 0
        %1022 = vmatprep.subr.bf16.mxu0 0
        %1023 = vmatpush1.bf16.xpose.msra.mxu0 0
        %1024 = vmatprep.mubr.bf16.mxu0 0
        %1025 = vmatmul.mubr.bf16.gmra.mrb[0].mxu0 %v987
        %v1026 = vpop.f32.mrb[0].mxu0
        %v1027 = vadd.f32 0.0, %v1026
        %v1028 = vpop.f32.mrb[0].mxu0
        %v1029 = vpop.f32.mrb[0].mxu0
        %v1030 = vadd.f32 0.0, %v1029
        %v1031 = vpop.f32.mrb[0].mxu0
        %1032 = vdwg.mxu0
        %1034 = vrot.lane.b32.xlu0 %v978, 120
        %v1035 = vpop.permute.xlu0 %1034
        %1036 = vrot.lane.b32.xlu0 %v978, 88
        %v1037 = vpop.permute.xlu0 %1036
        %v1039 = vsel %vm478, %v1035, 0
        %v1042 = vsel %vm478, %v1037, 0
        %1044 = vmatprep.subr.bf16.mxu0 0
        %1045 = vmatpush1.bf16.xpose.msra.mxu0 %v1042
        %1046 = vmatprep.subr.bf16.mxu0 0
        %1047 = vmatpush1.bf16.xpose.msra.mxu0 0
        %1048 = vmatprep.subr.bf16.mxu0 0
        %1049 = vmatpush1.bf16.xpose.msra.mxu0 0
        %1050 = vmatprep.subr.bf16.mxu0 0
        %1051 = vmatpush1.bf16.xpose.msra.mxu0 0
        %1052 = vmatprep.subr.bf16.mxu0 0
        %1053 = vmatpush1.bf16.xpose.msra.mxu0 0
        %1054 = vmatprep.subr.bf16.mxu0 0
        %1055 = vmatpush1.bf16.xpose.msra.mxu0 0
        %1056 = vmatprep.subr.bf16.mxu0 0
        %1057 = vmatpush1.bf16.xpose.msra.mxu0 0
        %1058 = vmatprep.subr.bf16.mxu0 0
        %1059 = vmatpush1.bf16.xpose.msra.mxu0 0
        %1060 = vmatprep.subr.bf16.mxu0 0
        %1061 = vmatpush1.bf16.xpose.msra.mxu0 0
        %1062 = vmatprep.subr.bf16.mxu0 0
        %1063 = vmatpush1.bf16.xpose.msra.mxu0 0
        %1064 = vmatprep.subr.bf16.mxu0 0
        %1065 = vmatpush1.bf16.xpose.msra.mxu0 0
        %1066 = vmatprep.subr.bf16.mxu0 0
        %1067 = vmatpush1.bf16.xpose.msra.mxu0 0
        %1068 = vmatprep.subr.bf16.mxu0 0
        %1069 = vmatpush1.bf16.xpose.msra.mxu0 0
        %1070 = vmatprep.subr.bf16.mxu0 0
        %1071 = vmatpush1.bf16.xpose.msra.mxu0 0
        %1072 = vmatprep.subr.bf16.mxu0 0
        %1073 = vmatpush1.bf16.xpose.msra.mxu0 0
        %1074 = vmatprep.subr.bf16.mxu0 0
        %1075 = vmatpush1.bf16.xpose.msra.mxu0 0
        %1076 = vmatprep.mubr.bf16.mxu0 0
        %1077 = vmatmul.mubr.bf16.gmra.mrb[0].mxu0 %v1039
        %v1078 = vpop.f32.mrb[0].mxu0
        %v1079 = vadd.f32 0.0, %v1078
        %v1080 = vpop.f32.mrb[0].mxu0
        %v1081 = vpop.f32.mrb[0].mxu0
        %v1082 = vadd.f32 0.0, %v1081
        %v1083 = vpop.f32.mrb[0].mxu0
        %1084 = vdwg.mxu0
        %1086 = vrot.lane.b32.xlu0 %v979, 120
        %v1087 = vpop.permute.xlu0 %1086
        %1088 = vrot.lane.b32.xlu0 %v979, 88
        %v1089 = vpop.permute.xlu0 %1088
        %v1091 = vsel %vm478, %v1087, 0
        %v1094 = vsel %vm478, %v1089, 0
        %1096 = vmatprep.subr.bf16.mxu0 0
        %1097 = vmatpush1.bf16.xpose.msra.mxu0 %v1094
        %1098 = vmatprep.subr.bf16.mxu0 0
        %1099 = vmatpush1.bf16.xpose.msra.mxu0 0
        %1100 = vmatprep.subr.bf16.mxu0 0
        %1101 = vmatpush1.bf16.xpose.msra.mxu0 0
        %1102 = vmatprep.subr.bf16.mxu0 0
        %1103 = vmatpush1.bf16.xpose.msra.mxu0 0
        %1104 = vmatprep.subr.bf16.mxu0 0
        %1105 = vmatpush1.bf16.xpose.msra.mxu0 0
        %1106 = vmatprep.subr.bf16.mxu0 0
        %1107 = vmatpush1.bf16.xpose.msra.mxu0 0
        %1108 = vmatprep.subr.bf16.mxu0 0
        %1109 = vmatpush1.bf16.xpose.msra.mxu0 0
        %1110 = vmatprep.subr.bf16.mxu0 0
        %1111 = vmatpush1.bf16.xpose.msra.mxu0 0
        %1112 = vmatprep.subr.bf16.mxu0 0
        %1113 = vmatpush1.bf16.xpose.msra.mxu0 0
        %1114 = vmatprep.subr.bf16.mxu0 0
        %1115 = vmatpush1.bf16.xpose.msra.mxu0 0
        %1116 = vmatprep.subr.bf16.mxu0 0
        %1117 = vmatpush1.bf16.xpose.msra.mxu0 0
        %1118 = vmatprep.subr.bf16.mxu0 0
        %1119 = vmatpush1.bf16.xpose.msra.mxu0 0
        %1120 = vmatprep.subr.bf16.mxu0 0
        %1121 = vmatpush1.bf16.xpose.msra.mxu0 0
        %1122 = vmatprep.subr.bf16.mxu0 0
        %1123 = vmatpush1.bf16.xpose.msra.mxu0 0
        %1124 = vmatprep.subr.bf16.mxu0 0
        %1125 = vmatpush1.bf16.xpose.msra.mxu0 0
        %1126 = vmatprep.subr.bf16.mxu0 0
        %1127 = vmatpush1.bf16.xpose.msra.mxu0 0
        %1128 = vmatprep.mubr.bf16.mxu0 0
        %1129 = vmatmul.mubr.bf16.gmra.mrb[0].mxu0 %v1091
        %v1130 = vpop.f32.mrb[0].mxu0
        %v1131 = vadd.f32 0.0, %v1130
        %v1132 = vpop.f32.mrb[0].mxu0
        %v1133 = vpop.f32.mrb[0].mxu0
        %v1134 = vadd.f32 0.0, %v1133
        %v1135 = vpop.f32.mrb[0].mxu0
        %1136 = vdwg.mxu0
        %1138 = vrot.lane.b32.xlu0 %v980, 120
        %v1139 = vpop.permute.xlu0 %1138
        %1140 = vrot.lane.b32.xlu0 %v980, 88
        %v1141 = vpop.permute.xlu0 %1140
        %v1143 = vsel %vm478, %v1139, 0
        %v1146 = vsel %vm478, %v1141, 0
        %1148 = vmatprep.subr.bf16.mxu0 0
        %1149 = vmatpush1.bf16.xpose.msra.mxu0 %v1146
        %1150 = vmatprep.subr.bf16.mxu0 0
        %1151 = vmatpush1.bf16.xpose.msra.mxu0 0
        %1152 = vmatprep.subr.bf16.mxu0 0
        %1153 = vmatpush1.bf16.xpose.msra.mxu0 0
        %1154 = vmatprep.subr.bf16.mxu0 0
        %1155 = vmatpush1.bf16.xpose.msra.mxu0 0
        %1156 = vmatprep.subr.bf16.mxu0 0
        %1157 = vmatpush1.bf16.xpose.msra.mxu0 0
        %1158 = vmatprep.subr.bf16.mxu0 0
        %1159 = vmatpush1.bf16.xpose.msra.mxu0 0
        %1160 = vmatprep.subr.bf16.mxu0 0
        %1161 = vmatpush1.bf16.xpose.msra.mxu0 0
        %1162 = vmatprep.subr.bf16.mxu0 0
        %1163 = vmatpush1.bf16.xpose.msra.mxu0 0
        %1164 = vmatprep.subr.bf16.mxu0 0
        %1165 = vmatpush1.bf16.xpose.msra.mxu0 0
        %1166 = vmatprep.subr.bf16.mxu0 0
        %1167 = vmatpush1.bf16.xpose.msra.mxu0 0
        %1168 = vmatprep.subr.bf16.mxu0 0
        %1169 = vmatpush1.bf16.xpose.msra.mxu0 0
        %1170 = vmatprep.subr.bf16.mxu0 0
        %1171 = vmatpush1.bf16.xpose.msra.mxu0 0
        %1172 = vmatprep.subr.bf16.mxu0 0
        %1173 = vmatpush1.bf16.xpose.msra.mxu0 0
        %1174 = vmatprep.subr.bf16.mxu0 0
        %1175 = vmatpush1.bf16.xpose.msra.mxu0 0
        %1176 = vmatprep.subr.bf16.mxu0 0
        %1177 = vmatpush1.bf16.xpose.msra.mxu0 0
        %1178 = vmatprep.subr.bf16.mxu0 0
        %1179 = vmatpush1.bf16.xpose.msra.mxu0 0
        %1180 = vmatprep.mubr.bf16.mxu0 0
        %1181 = vmatmul.mubr.bf16.gmra.mrb[0].mxu0 %v1143
        %v1182 = vpop.f32.mrb[0].mxu0
        %v1183 = vadd.f32 0.0, %v1182
        %v1184 = vpop.f32.mrb[0].mxu0
        %v1185 = vpop.f32.mrb[0].mxu0
        %v1186 = vadd.f32 0.0, %v1185
        %v1187 = vpop.f32.mrb[0].mxu0
        %1188 = vdwg.mxu0
        %s1189 = scalar_lea.vmem [#allocation9], 32
        %v1190 = vld [vmem:[%s1189] sm:$0xff]
        %v1191 = vld [vmem:[%s1189 + $0x8] sm:$0xff]
        %v1192 = vld [vmem:[%s1189 + $0x10] sm:$0xff]
        %v1193 = vld [vmem:[%s1189 + $0x18] sm:$0xff]
        %v1194 = vadd.f32 %v1027, %v1190
        %v1195 = vadd.f32 %v1030, %v1191
        %v1196 = vadd.f32 %v1079, %v1192
        %v1197 = vadd.f32 %v1082, %v1193
        %v1198 = vadd.f32 %v1131, %v1190
        %v1199 = vadd.f32 %v1134, %v1191
        %v1200 = vadd.f32 %v1183, %v1192
        %v1201 = vadd.f32 %v1186, %v1193
        %v1202 = vsel %vm688, %v1194, -inf
        %1203 = vmax.xlane.f32.xlu0 %v1202
        %v1204 = vpop.xlane.xlu0 %1203
        %v1205 = vsel %vm688, %v1195, -inf
        %1206 = vmax.xlane.f32.xlu0 %v1205
        %v1207 = vpop.xlane.xlu0 %1206
        %v1208 = vsel %vm688, %v1196, -inf
        %1209 = vmax.xlane.f32.xlu0 %v1208
        %v1210 = vpop.xlane.xlu0 %1209
        %v1211 = vsel %vm688, %v1197, -inf
        %1212 = vmax.xlane.f32.xlu0 %v1211
        %v1213 = vpop.xlane.xlu0 %1212
        %v1214 = vsel %vm688, %v1198, -inf
        %1215 = vmax.xlane.f32.xlu0 %v1214
        %v1216 = vpop.xlane.xlu0 %1215
        %v1217 = vsel %vm688, %v1199, -inf
        %1218 = vmax.xlane.f32.xlu0 %v1217
        %v1219 = vpop.xlane.xlu0 %1218
        %v1220 = vsel %vm688, %v1200, -inf
        %1221 = vmax.xlane.f32.xlu0 %v1220
        %v1222 = vpop.xlane.xlu0 %1221
        %v1223 = vsel %vm688, %v1201, -inf
        %1224 = vmax.xlane.f32.xlu0 %v1223
        %v1225 = vpop.xlane.xlu0 %1224
        %v1226 = vsub.f32 %v1194, %v1204
        %v1227 = vsub.f32 %v1195, %v1207
        %v1228 = vsub.f32 %v1196, %v1210
        %v1229 = vsub.f32 %v1197, %v1213
        %v1230 = vsub.f32 %v1198, %v1216
        %v1231 = vsub.f32 %v1199, %v1219
        %v1232 = vsub.f32 %v1200, %v1222
        %v1233 = vsub.f32 %v1201, %v1225
        %v1234 = vmul.f32 %v1226, 1.442695
        %v1235 = vpow.pop %v1234
        %v1236 = vmul.f32 %v1227, 1.442695
        %v1237 = vpow.pop %v1236
        %v1238 = vmul.f32 %v1228, 1.442695
        %v1239 = vpow.pop %v1238
        %v1240 = vmul.f32 %v1229, 1.442695
        %v1241 = vpow.pop %v1240
        %v1242 = vmul.f32 %v1230, 1.442695
        %v1243 = vpow.pop %v1242
        %v1244 = vmul.f32 %v1231, 1.442695
        %v1245 = vpow.pop %v1244
        %v1246 = vmul.f32 %v1232, 1.442695
        %v1247 = vpow.pop %v1246
        %v1248 = vmul.f32 %v1233, 1.442695
        %v1249 = vpow.pop %v1248
        %v1250 = vsel %vm688, %v1235, 0.0
        %1251 = vadd.xlane.f32.xlu0 %v1250
        %v1252 = vpop.xlane.xlu0 %1251
        %v1253 = vsel %vm688, %v1237, 0.0
        %1254 = vadd.xlane.f32.xlu0 %v1253
        %v1255 = vpop.xlane.xlu0 %1254
        %v1256 = vsel %vm688, %v1239, 0.0
        %1257 = vadd.xlane.f32.xlu0 %v1256
        %v1258 = vpop.xlane.xlu0 %1257
        %v1259 = vsel %vm688, %v1241, 0.0
        %1260 = vadd.xlane.f32.xlu0 %v1259
        %v1261 = vpop.xlane.xlu0 %1260
        %v1262 = vsel %vm688, %v1243, 0.0
        %1263 = vadd.xlane.f32.xlu0 %v1262
        %v1264 = vpop.xlane.xlu0 %1263
        %v1265 = vsel %vm688, %v1245, 0.0
        %1266 = vadd.xlane.f32.xlu0 %v1265
        %v1267 = vpop.xlane.xlu0 %1266
        %v1268 = vsel %vm688, %v1247, 0.0
        %1269 = vadd.xlane.f32.xlu0 %v1268
        %v1270 = vpop.xlane.xlu0 %1269
        %v1271 = vsel %vm688, %v1249, 0.0
        %1272 = vadd.xlane.f32.xlu0 %v1271
        %v1273 = vpop.xlane.xlu0 %1272
        %v1274 = vrcp.pop %v1252
        %v1275 = vrcp.pop %v1255
        %v1276 = vrcp.pop %v1258
        %v1277 = vrcp.pop %v1261
        %v1278 = vrcp.pop %v1264
        %v1279 = vrcp.pop %v1267
        %v1280 = vrcp.pop %v1270
        %v1281 = vrcp.pop %v1273
        %v1282 = vmul.f32 %v1235, %v1274
        %v1283 = vmul.f32 %v1237, %v1275
        %v1284 = vmul.f32 %v1239, %v1276
        %v1285 = vmul.f32 %v1241, %v1277
        %v1286 = vmul.f32 %v1243, %v1278
        %v1287 = vmul.f32 %v1245, %v1279
        %v1288 = vmul.f32 %v1247, %v1280
        %v1289 = vmul.f32 %v1249, %v1281
        %v1290 = vpack.c.bf16 %v1283, %v1282
        %v1291 = vpack.c.bf16 %v1285, %v1284
        %v1292 = vpack.c.bf16 %v1287, %v1286
        %v1293 = vpack.c.bf16 %v1289, %v1288
        %1294 = vrot.lane.b32.xlu0 %v977, 56
        %v1295 = vpop.permute.xlu0 %1294
        %v1298 = vsel %vm688, %v1290, 0
        %1300 = vmatprep.subr.bf16.mxu0 0
        %1301 = vmatpush1.bf16.msra.mxu0 %v1295
        %1302 = vmatprep.subr.bf16.mxu0 0
        %1303 = vmatpush1.bf16.msra.mxu0 0
        %1304 = vmatprep.subr.bf16.mxu0 0
        %1305 = vmatpush1.bf16.msra.mxu0 0
        %1306 = vmatprep.subr.bf16.mxu0 0
        %1307 = vmatpush1.bf16.msra.mxu0 0
        %1308 = vmatprep.subr.bf16.mxu0 0
        %1309 = vmatpush1.bf16.msra.mxu0 0
        %1310 = vmatprep.subr.bf16.mxu0 0
        %1311 = vmatpush1.bf16.msra.mxu0 0
        %1312 = vmatprep.subr.bf16.mxu0 0
        %1313 = vmatpush1.bf16.msra.mxu0 0
        %1314 = vmatprep.subr.bf16.mxu0 0
        %1315 = vmatpush1.bf16.msra.mxu0 0
        %1316 = vmatprep.subr.bf16.mxu0 0
        %1317 = vmatpush1.bf16.msra.mxu0 0
        %1318 = vmatprep.subr.bf16.mxu0 0
        %1319 = vmatpush1.bf16.msra.mxu0 0
        %1320 = vmatprep.subr.bf16.mxu0 0
        %1321 = vmatpush1.bf16.msra.mxu0 0
        %1322 = vmatprep.subr.bf16.mxu0 0
        %1323 = vmatpush1.bf16.msra.mxu0 0
        %1324 = vmatprep.subr.bf16.mxu0 0
        %1325 = vmatpush1.bf16.msra.mxu0 0
        %1326 = vmatprep.subr.bf16.mxu0 0
        %1327 = vmatpush1.bf16.msra.mxu0 0
        %1328 = vmatprep.subr.bf16.mxu0 0
        %1329 = vmatpush1.bf16.msra.mxu0 0
        %1330 = vmatprep.subr.bf16.mxu0 0
        %1331 = vmatpush1.bf16.msra.mxu0 0
        %1332 = vmatprep.mubr.bf16.mxu0 0
        %1333 = vmatmul.mubr.bf16.gmra.mrb[0].mxu0 %v1298
        %v1334 = vpop.f32.mrb[0].mxu0
        %v1335 = vadd.f32 0.0, %v1334
        %v1336 = vpop.f32.mrb[0].mxu0
        %v1337 = vpop.f32.mrb[0].mxu0
        %v1338 = vadd.f32 0.0, %v1337
        %v1339 = vpop.f32.mrb[0].mxu0
        %1340 = vdwg.mxu0
        %1341 = vrot.lane.b32.xlu0 %v978, 56
        %v1342 = vpop.permute.xlu0 %1341
        %v1345 = vsel %vm688, %v1291, 0
        %1347 = vmatprep.subr.bf16.mxu0 0
        %1348 = vmatpush1.bf16.msra.mxu0 %v1342
        %1349 = vmatprep.subr.bf16.mxu0 0
        %1350 = vmatpush1.bf16.msra.mxu0 0
        %1351 = vmatprep.subr.bf16.mxu0 0
        %1352 = vmatpush1.bf16.msra.mxu0 0
        %1353 = vmatprep.subr.bf16.mxu0 0
        %1354 = vmatpush1.bf16.msra.mxu0 0
        %1355 = vmatprep.subr.bf16.mxu0 0
        %1356 = vmatpush1.bf16.msra.mxu0 0
        %1357 = vmatprep.subr.bf16.mxu0 0
        %1358 = vmatpush1.bf16.msra.mxu0 0
        %1359 = vmatprep.subr.bf16.mxu0 0
        %1360 = vmatpush1.bf16.msra.mxu0 0
        %1361 = vmatprep.subr.bf16.mxu0 0
        %1362 = vmatpush1.bf16.msra.mxu0 0
        %1363 = vmatprep.subr.bf16.mxu0 0
        %1364 = vmatpush1.bf16.msra.mxu0 0
        %1365 = vmatprep.subr.bf16.mxu0 0
        %1366 = vmatpush1.bf16.msra.mxu0 0
        %1367 = vmatprep.subr.bf16.mxu0 0
        %1368 = vmatpush1.bf16.msra.mxu0 0
        %1369 = vmatprep.subr.bf16.mxu0 0
        %1370 = vmatpush1.bf16.msra.mxu0 0
        %1371 = vmatprep.subr.bf16.mxu0 0
        %1372 = vmatpush1.bf16.msra.mxu0 0
        %1373 = vmatprep.subr.bf16.mxu0 0
        %1374 = vmatpush1.bf16.msra.mxu0 0
        %1375 = vmatprep.subr.bf16.mxu0 0
        %1376 = vmatpush1.bf16.msra.mxu0 0
        %1377 = vmatprep.subr.bf16.mxu0 0
        %1378 = vmatpush1.bf16.msra.mxu0 0
        %1379 = vmatprep.mubr.bf16.mxu0 0
        %1380 = vmatmul.mubr.bf16.gmra.mrb[0].mxu0 %v1345
        %v1381 = vpop.f32.mrb[0].mxu0
        %v1382 = vadd.f32 0.0, %v1381
        %v1383 = vpop.f32.mrb[0].mxu0
        %v1384 = vpop.f32.mrb[0].mxu0
        %v1385 = vadd.f32 0.0, %v1384
        %v1386 = vpop.f32.mrb[0].mxu0
        %1387 = vdwg.mxu0
        %1388 = vrot.lane.b32.xlu0 %v979, 56
        %v1389 = vpop.permute.xlu0 %1388
        %v1392 = vsel %vm688, %v1292, 0
        %1394 = vmatprep.subr.bf16.mxu0 0
        %1395 = vmatpush1.bf16.msra.mxu0 %v1389
        %1396 = vmatprep.subr.bf16.mxu0 0
        %1397 = vmatpush1.bf16.msra.mxu0 0
        %1398 = vmatprep.subr.bf16.mxu0 0
        %1399 = vmatpush1.bf16.msra.mxu0 0
        %1400 = vmatprep.subr.bf16.mxu0 0
        %1401 = vmatpush1.bf16.msra.mxu0 0
        %1402 = vmatprep.subr.bf16.mxu0 0
        %1403 = vmatpush1.bf16.msra.mxu0 0
        %1404 = vmatprep.subr.bf16.mxu0 0
        %1405 = vmatpush1.bf16.msra.mxu0 0
        %1406 = vmatprep.subr.bf16.mxu0 0
        %1407 = vmatpush1.bf16.msra.mxu0 0
        %1408 = vmatprep.subr.bf16.mxu0 0
        %1409 = vmatpush1.bf16.msra.mxu0 0
        %1410 = vmatprep.subr.bf16.mxu0 0
        %1411 = vmatpush1.bf16.msra.mxu0 0
        %1412 = vmatprep.subr.bf16.mxu0 0
        %1413 = vmatpush1.bf16.msra.mxu0 0
        %1414 = vmatprep.subr.bf16.mxu0 0
        %1415 = vmatpush1.bf16.msra.mxu0 0
        %1416 = vmatprep.subr.bf16.mxu0 0
        %1417 = vmatpush1.bf16.msra.mxu0 0
        %1418 = vmatprep.subr.bf16.mxu0 0
        %1419 = vmatpush1.bf16.msra.mxu0 0
        %1420 = vmatprep.subr.bf16.mxu0 0
        %1421 = vmatpush1.bf16.msra.mxu0 0
        %1422 = vmatprep.subr.bf16.mxu0 0
        %1423 = vmatpush1.bf16.msra.mxu0 0
        %1424 = vmatprep.subr.bf16.mxu0 0
        %1425 = vmatpush1.bf16.msra.mxu0 0
        %1426 = vmatprep.mubr.bf16.mxu0 0
        %1427 = vmatmul.mubr.bf16.gmra.mrb[0].mxu0 %v1392
        %v1428 = vpop.f32.mrb[0].mxu0
        %v1429 = vadd.f32 0.0, %v1428
        %v1430 = vpop.f32.mrb[0].mxu0
        %v1431 = vpop.f32.mrb[0].mxu0
        %v1432 = vadd.f32 0.0, %v1431
        %v1433 = vpop.f32.mrb[0].mxu0
        %1434 = vdwg.mxu0
        %1435 = vrot.lane.b32.xlu0 %v980, 56
        %v1436 = vpop.permute.xlu0 %1435
        %v1439 = vsel %vm688, %v1293, 0
        %1441 = vmatprep.subr.bf16.mxu0 0
        %1442 = vmatpush1.bf16.msra.mxu0 %v1436
        %1443 = vmatprep.subr.bf16.mxu0 0
        %1444 = vmatpush1.bf16.msra.mxu0 0
        %1445 = vmatprep.subr.bf16.mxu0 0
        %1446 = vmatpush1.bf16.msra.mxu0 0
        %1447 = vmatprep.subr.bf16.mxu0 0
        %1448 = vmatpush1.bf16.msra.mxu0 0
        %1449 = vmatprep.subr.bf16.mxu0 0
        %1450 = vmatpush1.bf16.msra.mxu0 0
        %1451 = vmatprep.subr.bf16.mxu0 0
        %1452 = vmatpush1.bf16.msra.mxu0 0
        %1453 = vmatprep.subr.bf16.mxu0 0
        %1454 = vmatpush1.bf16.msra.mxu0 0
        %1455 = vmatprep.subr.bf16.mxu0 0
        %1456 = vmatpush1.bf16.msra.mxu0 0
        %1457 = vmatprep.subr.bf16.mxu0 0
        %1458 = vmatpush1.bf16.msra.mxu0 0
        %1459 = vmatprep.subr.bf16.mxu0 0
        %1460 = vmatpush1.bf16.msra.mxu0 0
        %1461 = vmatprep.subr.bf16.mxu0 0
        %1462 = vmatpush1.bf16.msra.mxu0 0
        %1463 = vmatprep.subr.bf16.mxu0 0
        %1464 = vmatpush1.bf16.msra.mxu0 0
        %1465 = vmatprep.subr.bf16.mxu0 0
        %1466 = vmatpush1.bf16.msra.mxu0 0
        %1467 = vmatprep.subr.bf16.mxu0 0
        %1468 = vmatpush1.bf16.msra.mxu0 0
        %1469 = vmatprep.subr.bf16.mxu0 0
        %1470 = vmatpush1.bf16.msra.mxu0 0
        %1471 = vmatprep.subr.bf16.mxu0 0
        %1472 = vmatpush1.bf16.msra.mxu0 0
        %1473 = vmatprep.mubr.bf16.mxu0 0
        %1474 = vmatmul.mubr.bf16.gmra.mrb[0].mxu0 %v1439
        %v1475 = vpop.f32.mrb[0].mxu0
        %v1476 = vadd.f32 0.0, %v1475
        %v1477 = vpop.f32.mrb[0].mxu0
        %v1478 = vpop.f32.mrb[0].mxu0
        %v1479 = vadd.f32 0.0, %v1478
        %v1480 = vpop.f32.mrb[0].mxu0
        %1481 = vdwg.mxu0
        %v1482 = vpack.c.bf16 %v1338, %v1335
        %v1483 = vpack.c.bf16 %v1385, %v1382
        %v1484 = vpack.c.bf16 %v1432, %v1429
        %v1485 = vpack.c.bf16 %v1479, %v1476
        %1490 = vrot.lane.b32.xlu0 %v1482, 8
        %v1491 = vpop.permute.xlu0 %1490
        %1492 = vrot.lane.b32.xlu0 %v1483, 8
        %v1493 = vpop.permute.xlu0 %1492
        %1494 = vrot.lane.b32.xlu0 %v1484, 8
        %v1495 = vpop.permute.xlu0 %1494
        %1496 = vrot.lane.b32.xlu0 %v1485, 8
        %v1497 = vpop.permute.xlu0 %1496
        %vm1502 = vcmask 130112
        %1503 = vst.msk [vmem:[#allocation3] sm:$0xff] %vm1502, %v1491
        %1504 = vst.msk [vmem:[#allocation3 + $0x8] sm:$0xff] %vm1502, %v1493
        %1505 = vst.msk [vmem:[#allocation3 + $0x10] sm:$0xff] %vm1502, %v1495
        %1506 = vst.msk [vmem:[#allocation3 + $0x18] sm:$0xff] %vm1502, %v1497
        %v1507 = vld [vmem:[#allocation2] sm:$0xff]
        %v1508 = vld [vmem:[#allocation2 + $0x8] sm:$0xff]
        %v1509 = vld [vmem:[#allocation2 + $0x10] sm:$0xff]
        %v1510 = vld [vmem:[#allocation2 + $0x18] sm:$0xff]
        %1512 = vrot.lane.b32.xlu0 %v1507, 112
        %v1513 = vpop.permute.xlu0 %1512
        %1514 = vrot.lane.b32.xlu0 %v1507, 80
        %v1515 = vpop.permute.xlu0 %1514
        %v1517 = vsel %vm478, %v1513, 0
        %v1520 = vsel %vm478, %v1515, 0
        %1522 = vmatprep.subr.bf16.mxu0 0
        %1523 = vmatpush1.bf16.xpose.msra.mxu0 %v1520
        %1524 = vmatprep.subr.bf16.mxu0 0
        %1525 = vmatpush1.bf16.xpose.msra.mxu0 0
        %1526 = vmatprep.subr.bf16.mxu0 0
        %1527 = vmatpush1.bf16.xpose.msra.mxu0 0
        %1528 = vmatprep.subr.bf16.mxu0 0
        %1529 = vmatpush1.bf16.xpose.msra.mxu0 0
        %1530 = vmatprep.subr.bf16.mxu0 0
        %1531 = vmatpush1.bf16.xpose.msra.mxu0 0
        %1532 = vmatprep.subr.bf16.mxu0 0
        %1533 = vmatpush1.bf16.xpose.msra.mxu0 0
        %1534 = vmatprep.subr.bf16.mxu0 0
        %1535 = vmatpush1.bf16.xpose.msra.mxu0 0
        %1536 = vmatprep.subr.bf16.mxu0 0
        %1537 = vmatpush1.bf16.xpose.msra.mxu0 0
        %1538 = vmatprep.subr.bf16.mxu0 0
        %1539 = vmatpush1.bf16.xpose.msra.mxu0 0
        %1540 = vmatprep.subr.bf16.mxu0 0
        %1541 = vmatpush1.bf16.xpose.msra.mxu0 0
        %1542 = vmatprep.subr.bf16.mxu0 0
        %1543 = vmatpush1.bf16.xpose.msra.mxu0 0
        %1544 = vmatprep.subr.bf16.mxu0 0
        %1545 = vmatpush1.bf16.xpose.msra.mxu0 0
        %1546 = vmatprep.subr.bf16.mxu0 0
        %1547 = vmatpush1.bf16.xpose.msra.mxu0 0
        %1548 = vmatprep.subr.bf16.mxu0 0
        %1549 = vmatpush1.bf16.xpose.msra.mxu0 0
        %1550 = vmatprep.subr.bf16.mxu0 0
        %1551 = vmatpush1.bf16.xpose.msra.mxu0 0
        %1552 = vmatprep.subr.bf16.mxu0 0
        %1553 = vmatpush1.bf16.xpose.msra.mxu0 0
        %1554 = vmatprep.mubr.bf16.mxu0 0
        %1555 = vmatmul.mubr.bf16.gmra.mrb[0].mxu0 %v1517
        %v1556 = vpop.f32.mrb[0].mxu0
        %v1557 = vadd.f32 0.0, %v1556
        %v1558 = vpop.f32.mrb[0].mxu0
        %v1559 = vpop.f32.mrb[0].mxu0
        %v1560 = vadd.f32 0.0, %v1559
        %v1561 = vpop.f32.mrb[0].mxu0
        %1562 = vdwg.mxu0
        %1564 = vrot.lane.b32.xlu0 %v1508, 112
        %v1565 = vpop.permute.xlu0 %1564
        %1566 = vrot.lane.b32.xlu0 %v1508, 80
        %v1567 = vpop.permute.xlu0 %1566
        %v1569 = vsel %vm478, %v1565, 0
        %v1572 = vsel %vm478, %v1567, 0
        %1574 = vmatprep.subr.bf16.mxu0 0
        %1575 = vmatpush1.bf16.xpose.msra.mxu0 %v1572
        %1576 = vmatprep.subr.bf16.mxu0 0
        %1577 = vmatpush1.bf16.xpose.msra.mxu0 0
        %1578 = vmatprep.subr.bf16.mxu0 0
        %1579 = vmatpush1.bf16.xpose.msra.mxu0 0
        %1580 = vmatprep.subr.bf16.mxu0 0
        %1581 = vmatpush1.bf16.xpose.msra.mxu0 0
        %1582 = vmatprep.subr.bf16.mxu0 0
        %1583 = vmatpush1.bf16.xpose.msra.mxu0 0
        %1584 = vmatprep.subr.bf16.mxu0 0
        %1585 = vmatpush1.bf16.xpose.msra.mxu0 0
        %1586 = vmatprep.subr.bf16.mxu0 0
        %1587 = vmatpush1.bf16.xpose.msra.mxu0 0
        %1588 = vmatprep.subr.bf16.mxu0 0
        %1589 = vmatpush1.bf16.xpose.msra.mxu0 0
        %1590 = vmatprep.subr.bf16.mxu0 0
        %1591 = vmatpush1.bf16.xpose.msra.mxu0 0
        %1592 = vmatprep.subr.bf16.mxu0 0
        %1593 = vmatpush1.bf16.xpose.msra.mxu0 0
        %1594 = vmatprep.subr.bf16.mxu0 0
        %1595 = vmatpush1.bf16.xpose.msra.mxu0 0
        %1596 = vmatprep.subr.bf16.mxu0 0
        %1597 = vmatpush1.bf16.xpose.msra.mxu0 0
        %1598 = vmatprep.subr.bf16.mxu0 0
        %1599 = vmatpush1.bf16.xpose.msra.mxu0 0
        %1600 = vmatprep.subr.bf16.mxu0 0
        %1601 = vmatpush1.bf16.xpose.msra.mxu0 0
        %1602 = vmatprep.subr.bf16.mxu0 0
        %1603 = vmatpush1.bf16.xpose.msra.mxu0 0
        %1604 = vmatprep.subr.bf16.mxu0 0
        %1605 = vmatpush1.bf16.xpose.msra.mxu0 0
        %1606 = vmatprep.mubr.bf16.mxu0 0
        %1607 = vmatmul.mubr.bf16.gmra.mrb[0].mxu0 %v1569
        %v1608 = vpop.f32.mrb[0].mxu0
        %v1609 = vadd.f32 0.0, %v1608
        %v1610 = vpop.f32.mrb[0].mxu0
        %v1611 = vpop.f32.mrb[0].mxu0
        %v1612 = vadd.f32 0.0, %v1611
        %v1613 = vpop.f32.mrb[0].mxu0
        %1614 = vdwg.mxu0
        %1616 = vrot.lane.b32.xlu0 %v1509, 112
        %v1617 = vpop.permute.xlu0 %1616
        %1618 = vrot.lane.b32.xlu0 %v1509, 80
        %v1619 = vpop.permute.xlu0 %1618
        %v1621 = vsel %vm478, %v1617, 0
        %v1624 = vsel %vm478, %v1619, 0
        %1626 = vmatprep.subr.bf16.mxu0 0
        %1627 = vmatpush1.bf16.xpose.msra.mxu0 %v1624
        %1628 = vmatprep.subr.bf16.mxu0 0
        %1629 = vmatpush1.bf16.xpose.msra.mxu0 0
        %1630 = vmatprep.subr.bf16.mxu0 0
        %1631 = vmatpush1.bf16.xpose.msra.mxu0 0
        %1632 = vmatprep.subr.bf16.mxu0 0
        %1633 = vmatpush1.bf16.xpose.msra.mxu0 0
        %1634 = vmatprep.subr.bf16.mxu0 0
        %1635 = vmatpush1.bf16.xpose.msra.mxu0 0
        %1636 = vmatprep.subr.bf16.mxu0 0
        %1637 = vmatpush1.bf16.xpose.msra.mxu0 0
        %1638 = vmatprep.subr.bf16.mxu0 0
        %1639 = vmatpush1.bf16.xpose.msra.mxu0 0
        %1640 = vmatprep.subr.bf16.mxu0 0
        %1641 = vmatpush1.bf16.xpose.msra.mxu0 0
        %1642 = vmatprep.subr.bf16.mxu0 0
        %1643 = vmatpush1.bf16.xpose.msra.mxu0 0
        %1644 = vmatprep.subr.bf16.mxu0 0
        %1645 = vmatpush1.bf16.xpose.msra.mxu0 0
        %1646 = vmatprep.subr.bf16.mxu0 0
        %1647 = vmatpush1.bf16.xpose.msra.mxu0 0
        %1648 = vmatprep.subr.bf16.mxu0 0
        %1649 = vmatpush1.bf16.xpose.msra.mxu0 0
        %1650 = vmatprep.subr.bf16.mxu0 0
        %1651 = vmatpush1.bf16.xpose.msra.mxu0 0
        %1652 = vmatprep.subr.bf16.mxu0 0
        %1653 = vmatpush1.bf16.xpose.msra.mxu0 0
        %1654 = vmatprep.subr.bf16.mxu0 0
        %1655 = vmatpush1.bf16.xpose.msra.mxu0 0
        %1656 = vmatprep.subr.bf16.mxu0 0
        %1657 = vmatpush1.bf16.xpose.msra.mxu0 0
        %1658 = vmatprep.mubr.bf16.mxu0 0
        %1659 = vmatmul.mubr.bf16.gmra.mrb[0].mxu0 %v1621
        %v1660 = vpop.f32.mrb[0].mxu0
        %v1661 = vadd.f32 0.0, %v1660
        %v1662 = vpop.f32.mrb[0].mxu0
        %v1663 = vpop.f32.mrb[0].mxu0
        %v1664 = vadd.f32 0.0, %v1663
        %v1665 = vpop.f32.mrb[0].mxu0
        %1666 = vdwg.mxu0
        %1668 = vrot.lane.b32.xlu0 %v1510, 112
        %v1669 = vpop.permute.xlu0 %1668
        %1670 = vrot.lane.b32.xlu0 %v1510, 80
        %v1671 = vpop.permute.xlu0 %1670
        %v1673 = vsel %vm478, %v1669, 0
        %v1676 = vsel %vm478, %v1671, 0
        %1678 = vmatprep.subr.bf16.mxu0 0
        %1679 = vmatpush1.bf16.xpose.msra.mxu0 %v1676
        %1680 = vmatprep.subr.bf16.mxu0 0
        %1681 = vmatpush1.bf16.xpose.msra.mxu0 0
        %1682 = vmatprep.subr.bf16.mxu0 0
        %1683 = vmatpush1.bf16.xpose.msra.mxu0 0
        %1684 = vmatprep.subr.bf16.mxu0 0
        %1685 = vmatpush1.bf16.xpose.msra.mxu0 0
        %1686 = vmatprep.subr.bf16.mxu0 0
        %1687 = vmatpush1.bf16.xpose.msra.mxu0 0
        %1688 = vmatprep.subr.bf16.mxu0 0
        %1689 = vmatpush1.bf16.xpose.msra.mxu0 0
        %1690 = vmatprep.subr.bf16.mxu0 0
        %1691 = vmatpush1.bf16.xpose.msra.mxu0 0
        %1692 = vmatprep.subr.bf16.mxu0 0
        %1693 = vmatpush1.bf16.xpose.msra.mxu0 0
        %1694 = vmatprep.subr.bf16.mxu0 0
        %1695 = vmatpush1.bf16.xpose.msra.mxu0 0
        %1696 = vmatprep.subr.bf16.mxu0 0
        %1697 = vmatpush1.bf16.xpose.msra.mxu0 0
        %1698 = vmatprep.subr.bf16.mxu0 0
        %1699 = vmatpush1.bf16.xpose.msra.mxu0 0
        %1700 = vmatprep.subr.bf16.mxu0 0
        %1701 = vmatpush1.bf16.xpose.msra.mxu0 0
        %1702 = vmatprep.subr.bf16.mxu0 0
        %1703 = vmatpush1.bf16.xpose.msra.mxu0 0
        %1704 = vmatprep.subr.bf16.mxu0 0
        %1705 = vmatpush1.bf16.xpose.msra.mxu0 0
        %1706 = vmatprep.subr.bf16.mxu0 0
        %1707 = vmatpush1.bf16.xpose.msra.mxu0 0
        %1708 = vmatprep.subr.bf16.mxu0 0
        %1709 = vmatpush1.bf16.xpose.msra.mxu0 0
        %1710 = vmatprep.mubr.bf16.mxu0 0
        %1711 = vmatmul.mubr.bf16.gmra.mrb[0].mxu0 %v1673
        %v1712 = vpop.f32.mrb[0].mxu0
        %v1713 = vadd.f32 0.0, %v1712
        %v1714 = vpop.f32.mrb[0].mxu0
        %v1715 = vpop.f32.mrb[0].mxu0
        %v1716 = vadd.f32 0.0, %v1715
        %v1717 = vpop.f32.mrb[0].mxu0
        %1718 = vdwg.mxu0
        %s1719 = scalar_lea.vmem [#allocation9], 64
        %v1720 = vld [vmem:[%s1719] sm:$0xff]
        %v1721 = vld [vmem:[%s1719 + $0x8] sm:$0xff]
        %v1722 = vld [vmem:[%s1719 + $0x10] sm:$0xff]
        %v1723 = vld [vmem:[%s1719 + $0x18] sm:$0xff]
        %v1724 = vadd.f32 %v1557, %v1720
        %v1725 = vadd.f32 %v1560, %v1721
        %v1726 = vadd.f32 %v1609, %v1722
        %v1727 = vadd.f32 %v1612, %v1723
        %v1728 = vadd.f32 %v1661, %v1720
        %v1729 = vadd.f32 %v1664, %v1721
        %v1730 = vadd.f32 %v1713, %v1722
        %v1731 = vadd.f32 %v1716, %v1723
        %v1732 = vsel %vm688, %v1724, -inf
        %1733 = vmax.xlane.f32.xlu0 %v1732
        %v1734 = vpop.xlane.xlu0 %1733
        %v1735 = vsel %vm688, %v1725, -inf
        %1736 = vmax.xlane.f32.xlu0 %v1735
        %v1737 = vpop.xlane.xlu0 %1736
        %v1738 = vsel %vm688, %v1726, -inf
        %1739 = vmax.xlane.f32.xlu0 %v1738
        %v1740 = vpop.xlane.xlu0 %1739
        %v1741 = vsel %vm688, %v1727, -inf
        %1742 = vmax.xlane.f32.xlu0 %v1741
        %v1743 = vpop.xlane.xlu0 %1742
        %v1744 = vsel %vm688, %v1728, -inf
        %1745 = vmax.xlane.f32.xlu0 %v1744
        %v1746 = vpop.xlane.xlu0 %1745
        %v1747 = vsel %vm688, %v1729, -inf
        %1748 = vmax.xlane.f32.xlu0 %v1747
        %v1749 = vpop.xlane.xlu0 %1748
        %v1750 = vsel %vm688, %v1730, -inf
        %1751 = vmax.xlane.f32.xlu0 %v1750
        %v1752 = vpop.xlane.xlu0 %1751
        %v1753 = vsel %vm688, %v1731, -inf
        %1754 = vmax.xlane.f32.xlu0 %v1753
        %v1755 = vpop.xlane.xlu0 %1754
        %v1756 = vsub.f32 %v1724, %v1734
        %v1757 = vsub.f32 %v1725, %v1737
        %v1758 = vsub.f32 %v1726, %v1740
        %v1759 = vsub.f32 %v1727, %v1743
        %v1760 = vsub.f32 %v1728, %v1746
        %v1761 = vsub.f32 %v1729, %v1749
        %v1762 = vsub.f32 %v1730, %v1752
        %v1763 = vsub.f32 %v1731, %v1755
        %v1764 = vmul.f32 %v1756, 1.442695
        %v1765 = vpow.pop %v1764
        %v1766 = vmul.f32 %v1757, 1.442695
        %v1767 = vpow.pop %v1766
        %v1768 = vmul.f32 %v1758, 1.442695
        %v1769 = vpow.pop %v1768
        %v1770 = vmul.f32 %v1759, 1.442695
        %v1771 = vpow.pop %v1770
        %v1772 = vmul.f32 %v1760, 1.442695
        %v1773 = vpow.pop %v1772
        %v1774 = vmul.f32 %v1761, 1.442695
        %v1775 = vpow.pop %v1774
        %v1776 = vmul.f32 %v1762, 1.442695
        %v1777 = vpow.pop %v1776
        %v1778 = vmul.f32 %v1763, 1.442695
        %v1779 = vpow.pop %v1778
        %v1780 = vsel %vm688, %v1765, 0.0
        %1781 = vadd.xlane.f32.xlu0 %v1780
        %v1782 = vpop.xlane.xlu0 %1781
        %v1783 = vsel %vm688, %v1767, 0.0
        %1784 = vadd.xlane.f32.xlu0 %v1783
        %v1785 = vpop.xlane.xlu0 %1784
        %v1786 = vsel %vm688, %v1769, 0.0
        %1787 = vadd.xlane.f32.xlu0 %v1786
        %v1788 = vpop.xlane.xlu0 %1787
        %v1789 = vsel %vm688, %v1771, 0.0
        %1790 = vadd.xlane.f32.xlu0 %v1789
        %v1791 = vpop.xlane.xlu0 %1790
        %v1792 = vsel %vm688, %v1773, 0.0
        %1793 = vadd.xlane.f32.xlu0 %v1792
        %v1794 = vpop.xlane.xlu0 %1793
        %v1795 = vsel %vm688, %v1775, 0.0
        %1796 = vadd.xlane.f32.xlu0 %v1795
        %v1797 = vpop.xlane.xlu0 %1796
        %v1798 = vsel %vm688, %v1777, 0.0
        %1799 = vadd.xlane.f32.xlu0 %v1798
        %v1800 = vpop.xlane.xlu0 %1799
        %v1801 = vsel %vm688, %v1779, 0.0
        %1802 = vadd.xlane.f32.xlu0 %v1801
        %v1803 = vpop.xlane.xlu0 %1802
        %v1804 = vrcp.pop %v1782
        %v1805 = vrcp.pop %v1785
        %v1806 = vrcp.pop %v1788
        %v1807 = vrcp.pop %v1791
        %v1808 = vrcp.pop %v1794
        %v1809 = vrcp.pop %v1797
        %v1810 = vrcp.pop %v1800
        %v1811 = vrcp.pop %v1803
        %v1812 = vmul.f32 %v1765, %v1804
        %v1813 = vmul.f32 %v1767, %v1805
        %v1814 = vmul.f32 %v1769, %v1806
        %v1815 = vmul.f32 %v1771, %v1807
        %v1816 = vmul.f32 %v1773, %v1808
        %v1817 = vmul.f32 %v1775, %v1809
        %v1818 = vmul.f32 %v1777, %v1810
        %v1819 = vmul.f32 %v1779, %v1811
        %v1820 = vpack.c.bf16 %v1813, %v1812
        %v1821 = vpack.c.bf16 %v1815, %v1814
        %v1822 = vpack.c.bf16 %v1817, %v1816
        %v1823 = vpack.c.bf16 %v1819, %v1818
        %1824 = vrot.lane.b32.xlu0 %v1507, 48
        %v1825 = vpop.permute.xlu0 %1824
        %v1828 = vsel %vm688, %v1820, 0
        %1830 = vmatprep.subr.bf16.mxu0 0
        %1831 = vmatpush1.bf16.msra.mxu0 %v1825
        %1832 = vmatprep.subr.bf16.mxu0 0
        %1833 = vmatpush1.bf16.msra.mxu0 0
        %1834 = vmatprep.subr.bf16.mxu0 0
        %1835 = vmatpush1.bf16.msra.mxu0 0
        %1836 = vmatprep.subr.bf16.mxu0 0
        %1837 = vmatpush1.bf16.msra.mxu0 0
        %1838 = vmatprep.subr.bf16.mxu0 0
        %1839 = vmatpush1.bf16.msra.mxu0 0
        %1840 = vmatprep.subr.bf16.mxu0 0
        %1841 = vmatpush1.bf16.msra.mxu0 0
        %1842 = vmatprep.subr.bf16.mxu0 0
        %1843 = vmatpush1.bf16.msra.mxu0 0
        %1844 = vmatprep.subr.bf16.mxu0 0
        %1845 = vmatpush1.bf16.msra.mxu0 0
        %1846 = vmatprep.subr.bf16.mxu0 0
        %1847 = vmatpush1.bf16.msra.mxu0 0
        %1848 = vmatprep.subr.bf16.mxu0 0
        %1849 = vmatpush1.bf16.msra.mxu0 0
        %1850 = vmatprep.subr.bf16.mxu0 0
        %1851 = vmatpush1.bf16.msra.mxu0 0
        %1852 = vmatprep.subr.bf16.mxu0 0
        %1853 = vmatpush1.bf16.msra.mxu0 0
        %1854 = vmatprep.subr.bf16.mxu0 0
        %1855 = vmatpush1.bf16.msra.mxu0 0
        %1856 = vmatprep.subr.bf16.mxu0 0
        %1857 = vmatpush1.bf16.msra.mxu0 0
        %1858 = vmatprep.subr.bf16.mxu0 0
        %1859 = vmatpush1.bf16.msra.mxu0 0
        %1860 = vmatprep.subr.bf16.mxu0 0
        %1861 = vmatpush1.bf16.msra.mxu0 0
        %1862 = vmatprep.mubr.bf16.mxu0 0
        %1863 = vmatmul.mubr.bf16.gmra.mrb[0].mxu0 %v1828
        %v1864 = vpop.f32.mrb[0].mxu0
        %v1865 = vadd.f32 0.0, %v1864
        %v1866 = vpop.f32.mrb[0].mxu0
        %v1867 = vpop.f32.mrb[0].mxu0
        %v1868 = vadd.f32 0.0, %v1867
        %v1869 = vpop.f32.mrb[0].mxu0
        %1870 = vdwg.mxu0
        %1871 = vrot.lane.b32.xlu0 %v1508, 48
        %v1872 = vpop.permute.xlu0 %1871
        %v1875 = vsel %vm688, %v1821, 0
        %1877 = vmatprep.subr.bf16.mxu0 0
        %1878 = vmatpush1.bf16.msra.mxu0 %v1872
        %1879 = vmatprep.subr.bf16.mxu0 0
        %1880 = vmatpush1.bf16.msra.mxu0 0
        %1881 = vmatprep.subr.bf16.mxu0 0
        %1882 = vmatpush1.bf16.msra.mxu0 0
        %1883 = vmatprep.subr.bf16.mxu0 0
        %1884 = vmatpush1.bf16.msra.mxu0 0
        %1885 = vmatprep.subr.bf16.mxu0 0
        %1886 = vmatpush1.bf16.msra.mxu0 0
        %1887 = vmatprep.subr.bf16.mxu0 0
        %1888 = vmatpush1.bf16.msra.mxu0 0
        %1889 = vmatprep.subr.bf16.mxu0 0
        %1890 = vmatpush1.bf16.msra.mxu0 0
        %1891 = vmatprep.subr.bf16.mxu0 0
        %1892 = vmatpush1.bf16.msra.mxu0 0
        %1893 = vmatprep.subr.bf16.mxu0 0
        %1894 = vmatpush1.bf16.msra.mxu0 0
        %1895 = vmatprep.subr.bf16.mxu0 0
        %1896 = vmatpush1.bf16.msra.mxu0 0
        %1897 = vmatprep.subr.bf16.mxu0 0
        %1898 = vmatpush1.bf16.msra.mxu0 0
        %1899 = vmatprep.subr.bf16.mxu0 0
        %1900 = vmatpush1.bf16.msra.mxu0 0
        %1901 = vmatprep.subr.bf16.mxu0 0
        %1902 = vmatpush1.bf16.msra.mxu0 0
        %1903 = vmatprep.subr.bf16.mxu0 0
        %1904 = vmatpush1.bf16.msra.mxu0 0
        %1905 = vmatprep.subr.bf16.mxu0 0
        %1906 = vmatpush1.bf16.msra.mxu0 0
        %1907 = vmatprep.subr.bf16.mxu0 0
        %1908 = vmatpush1.bf16.msra.mxu0 0
        %1909 = vmatprep.mubr.bf16.mxu0 0
        %1910 = vmatmul.mubr.bf16.gmra.mrb[0].mxu0 %v1875
        %v1911 = vpop.f32.mrb[0].mxu0
        %v1912 = vadd.f32 0.0, %v1911
        %v1913 = vpop.f32.mrb[0].mxu0
        %v1914 = vpop.f32.mrb[0].mxu0
        %v1915 = vadd.f32 0.0, %v1914
        %v1916 = vpop.f32.mrb[0].mxu0
        %1917 = vdwg.mxu0
        %1918 = vrot.lane.b32.xlu0 %v1509, 48
        %v1919 = vpop.permute.xlu0 %1918
        %v1922 = vsel %vm688, %v1822, 0
        %1924 = vmatprep.subr.bf16.mxu0 0
        %1925 = vmatpush1.bf16.msra.mxu0 %v1919
        %1926 = vmatprep.subr.bf16.mxu0 0
        %1927 = vmatpush1.bf16.msra.mxu0 0
        %1928 = vmatprep.subr.bf16.mxu0 0
        %1929 = vmatpush1.bf16.msra.mxu0 0
        %1930 = vmatprep.subr.bf16.mxu0 0
        %1931 = vmatpush1.bf16.msra.mxu0 0
        %1932 = vmatprep.subr.bf16.mxu0 0
        %1933 = vmatpush1.bf16.msra.mxu0 0
        %1934 = vmatprep.subr.bf16.mxu0 0
        %1935 = vmatpush1.bf16.msra.mxu0 0
        %1936 = vmatprep.subr.bf16.mxu0 0
        %1937 = vmatpush1.bf16.msra.mxu0 0
        %1938 = vmatprep.subr.bf16.mxu0 0
        %1939 = vmatpush1.bf16.msra.mxu0 0
        %1940 = vmatprep.subr.bf16.mxu0 0
        %1941 = vmatpush1.bf16.msra.mxu0 0
        %1942 = vmatprep.subr.bf16.mxu0 0
        %1943 = vmatpush1.bf16.msra.mxu0 0
        %1944 = vmatprep.subr.bf16.mxu0 0
        %1945 = vmatpush1.bf16.msra.mxu0 0
        %1946 = vmatprep.subr.bf16.mxu0 0
        %1947 = vmatpush1.bf16.msra.mxu0 0
        %1948 = vmatprep.subr.bf16.mxu0 0
        %1949 = vmatpush1.bf16.msra.mxu0 0
        %1950 = vmatprep.subr.bf16.mxu0 0
        %1951 = vmatpush1.bf16.msra.mxu0 0
        %1952 = vmatprep.subr.bf16.mxu0 0
        %1953 = vmatpush1.bf16.msra.mxu0 0
        %1954 = vmatprep.subr.bf16.mxu0 0
        %1955 = vmatpush1.bf16.msra.mxu0 0
        %1956 = vmatprep.mubr.bf16.mxu0 0
        %1957 = vmatmul.mubr.bf16.gmra.mrb[0].mxu0 %v1922
        %v1958 = vpop.f32.mrb[0].mxu0
        %v1959 = vadd.f32 0.0, %v1958
        %v1960 = vpop.f32.mrb[0].mxu0
        %v1961 = vpop.f32.mrb[0].mxu0
        %v1962 = vadd.f32 0.0, %v1961
        %v1963 = vpop.f32.mrb[0].mxu0
        %1964 = vdwg.mxu0
        %1965 = vrot.lane.b32.xlu0 %v1510, 48
        %v1966 = vpop.permute.xlu0 %1965
        %v1969 = vsel %vm688, %v1823, 0
        %1971 = vmatprep.subr.bf16.mxu0 0
        %1972 = vmatpush1.bf16.msra.mxu0 %v1966
        %1973 = vmatprep.subr.bf16.mxu0 0
        %1974 = vmatpush1.bf16.msra.mxu0 0
        %1975 = vmatprep.subr.bf16.mxu0 0
        %1976 = vmatpush1.bf16.msra.mxu0 0
        %1977 = vmatprep.subr.bf16.mxu0 0
        %1978 = vmatpush1.bf16.msra.mxu0 0
        %1979 = vmatprep.subr.bf16.mxu0 0
        %1980 = vmatpush1.bf16.msra.mxu0 0
        %1981 = vmatprep.subr.bf16.mxu0 0
        %1982 = vmatpush1.bf16.msra.mxu0 0
        %1983 = vmatprep.subr.bf16.mxu0 0
        %1984 = vmatpush1.bf16.msra.mxu0 0
        %1985 = vmatprep.subr.bf16.mxu0 0
        %1986 = vmatpush1.bf16.msra.mxu0 0
        %1987 = vmatprep.subr.bf16.mxu0 0
        %1988 = vmatpush1.bf16.msra.mxu0 0
        %1989 = vmatprep.subr.bf16.mxu0 0
        %1990 = vmatpush1.bf16.msra.mxu0 0
        %1991 = vmatprep.subr.bf16.mxu0 0
        %1992 = vmatpush1.bf16.msra.mxu0 0
        %1993 = vmatprep.subr.bf16.mxu0 0
        %1994 = vmatpush1.bf16.msra.mxu0 0
        %1995 = vmatprep.subr.bf16.mxu0 0
        %1996 = vmatpush1.bf16.msra.mxu0 0
        %1997 = vmatprep.subr.bf16.mxu0 0
        %1998 = vmatpush1.bf16.msra.mxu0 0
        %1999 = vmatprep.subr.bf16.mxu0 0
        %2000 = vmatpush1.bf16.msra.mxu0 0
        %2001 = vmatprep.subr.bf16.mxu0 0
        %2002 = vmatpush1.bf16.msra.mxu0 0
        %2003 = vmatprep.mubr.bf16.mxu0 0
        %2004 = vmatmul.mubr.bf16.gmra.mrb[0].mxu0 %v1969
        %v2005 = vpop.f32.mrb[0].mxu0
        %v2006 = vadd.f32 0.0, %v2005
        %v2007 = vpop.f32.mrb[0].mxu0
        %v2008 = vpop.f32.mrb[0].mxu0
        %v2009 = vadd.f32 0.0, %v2008
        %v2010 = vpop.f32.mrb[0].mxu0
        %2011 = vdwg.mxu0
        %v2012 = vpack.c.bf16 %v1868, %v1865
        %v2013 = vpack.c.bf16 %v1915, %v1912
        %v2014 = vpack.c.bf16 %v1962, %v1959
        %v2015 = vpack.c.bf16 %v2009, %v2006
        %2020 = vrot.lane.b32.xlu0 %v2012, 16
        %v2021 = vpop.permute.xlu0 %2020
        %2022 = vrot.lane.b32.xlu0 %v2013, 16
        %v2023 = vpop.permute.xlu0 %2022
        %2024 = vrot.lane.b32.xlu0 %v2014, 16
        %v2025 = vpop.permute.xlu0 %2024
        %2026 = vrot.lane.b32.xlu0 %v2015, 16
        %v2027 = vpop.permute.xlu0 %2026
        %vm2032 = vcmask 195712
        %2033 = vst.msk [vmem:[#allocation3] sm:$0xff] %vm2032, %v2021
        %2034 = vst.msk [vmem:[#allocation3 + $0x8] sm:$0xff] %vm2032, %v2023
        %2035 = vst.msk [vmem:[#allocation3 + $0x10] sm:$0xff] %vm2032, %v2025
        %2036 = vst.msk [vmem:[#allocation3 + $0x18] sm:$0xff] %vm2032, %v2027
        %v2037 = vld [vmem:[#allocation2] sm:$0xff]
        %v2038 = vld [vmem:[#allocation2 + $0x8] sm:$0xff]
        %v2039 = vld [vmem:[#allocation2 + $0x10] sm:$0xff]
        %v2040 = vld [vmem:[#allocation2 + $0x18] sm:$0xff]
        %2042 = vrot.lane.b32.xlu0 %v2037, 104
        %v2043 = vpop.permute.xlu0 %2042
        %2044 = vrot.lane.b32.xlu0 %v2037, 72
        %v2045 = vpop.permute.xlu0 %2044
        %v2047 = vsel %vm478, %v2043, 0
        %v2050 = vsel %vm478, %v2045, 0
        %2052 = vmatprep.subr.bf16.mxu0 0
        %2053 = vmatpush1.bf16.xpose.msra.mxu0 %v2050
        %2054 = vmatprep.subr.bf16.mxu0 0
        %2055 = vmatpush1.bf16.xpose.msra.mxu0 0
        %2056 = vmatprep.subr.bf16.mxu0 0
        %2057 = vmatpush1.bf16.xpose.msra.mxu0 0
        %2058 = vmatprep.subr.bf16.mxu0 0
        %2059 = vmatpush1.bf16.xpose.msra.mxu0 0
        %2060 = vmatprep.subr.bf16.mxu0 0
        %2061 = vmatpush1.bf16.xpose.msra.mxu0 0
        %2062 = vmatprep.subr.bf16.mxu0 0
        %2063 = vmatpush1.bf16.xpose.msra.mxu0 0
        %2064 = vmatprep.subr.bf16.mxu0 0
        %2065 = vmatpush1.bf16.xpose.msra.mxu0 0
        %2066 = vmatprep.subr.bf16.mxu0 0
        %2067 = vmatpush1.bf16.xpose.msra.mxu0 0
        %2068 = vmatprep.subr.bf16.mxu0 0
        %2069 = vmatpush1.bf16.xpose.msra.mxu0 0
        %2070 = vmatprep.subr.bf16.mxu0 0
        %2071 = vmatpush1.bf16.xpose.msra.mxu0 0
        %2072 = vmatprep.subr.bf16.mxu0 0
        %2073 = vmatpush1.bf16.xpose.msra.mxu0 0
        %2074 = vmatprep.subr.bf16.mxu0 0
        %2075 = vmatpush1.bf16.xpose.msra.mxu0 0
        %2076 = vmatprep.subr.bf16.mxu0 0
        %2077 = vmatpush1.bf16.xpose.msra.mxu0 0
        %2078 = vmatprep.subr.bf16.mxu0 0
        %2079 = vmatpush1.bf16.xpose.msra.mxu0 0
        %2080 = vmatprep.subr.bf16.mxu0 0
        %2081 = vmatpush1.bf16.xpose.msra.mxu0 0
        %2082 = vmatprep.subr.bf16.mxu0 0
        %2083 = vmatpush1.bf16.xpose.msra.mxu0 0
        %2084 = vmatprep.mubr.bf16.mxu0 0
        %2085 = vmatmul.mubr.bf16.gmra.mrb[0].mxu0 %v2047
        %v2086 = vpop.f32.mrb[0].mxu0
        %v2087 = vadd.f32 0.0, %v2086
        %v2088 = vpop.f32.mrb[0].mxu0
        %v2089 = vpop.f32.mrb[0].mxu0
        %v2090 = vadd.f32 0.0, %v2089
        %v2091 = vpop.f32.mrb[0].mxu0
        %2092 = vdwg.mxu0
        %2094 = vrot.lane.b32.xlu0 %v2038, 104
        %v2095 = vpop.permute.xlu0 %2094
        %2096 = vrot.lane.b32.xlu0 %v2038, 72
        %v2097 = vpop.permute.xlu0 %2096
        %v2099 = vsel %vm478, %v2095, 0
        %v2102 = vsel %vm478, %v2097, 0
        %2104 = vmatprep.subr.bf16.mxu0 0
        %2105 = vmatpush1.bf16.xpose.msra.mxu0 %v2102
        %2106 = vmatprep.subr.bf16.mxu0 0
        %2107 = vmatpush1.bf16.xpose.msra.mxu0 0
        %2108 = vmatprep.subr.bf16.mxu0 0
        %2109 = vmatpush1.bf16.xpose.msra.mxu0 0
        %2110 = vmatprep.subr.bf16.mxu0 0
        %2111 = vmatpush1.bf16.xpose.msra.mxu0 0
        %2112 = vmatprep.subr.bf16.mxu0 0
        %2113 = vmatpush1.bf16.xpose.msra.mxu0 0
        %2114 = vmatprep.subr.bf16.mxu0 0
        %2115 = vmatpush1.bf16.xpose.msra.mxu0 0
        %2116 = vmatprep.subr.bf16.mxu0 0
        %2117 = vmatpush1.bf16.xpose.msra.mxu0 0
        %2118 = vmatprep.subr.bf16.mxu0 0
        %2119 = vmatpush1.bf16.xpose.msra.mxu0 0
        %2120 = vmatprep.subr.bf16.mxu0 0
        %2121 = vmatpush1.bf16.xpose.msra.mxu0 0
        %2122 = vmatprep.subr.bf16.mxu0 0
        %2123 = vmatpush1.bf16.xpose.msra.mxu0 0
        %2124 = vmatprep.subr.bf16.mxu0 0
        %2125 = vmatpush1.bf16.xpose.msra.mxu0 0
        %2126 = vmatprep.subr.bf16.mxu0 0
        %2127 = vmatpush1.bf16.xpose.msra.mxu0 0
        %2128 = vmatprep.subr.bf16.mxu0 0
        %2129 = vmatpush1.bf16.xpose.msra.mxu0 0
        %2130 = vmatprep.subr.bf16.mxu0 0
        %2131 = vmatpush1.bf16.xpose.msra.mxu0 0
        %2132 = vmatprep.subr.bf16.mxu0 0
        %2133 = vmatpush1.bf16.xpose.msra.mxu0 0
        %2134 = vmatprep.subr.bf16.mxu0 0
        %2135 = vmatpush1.bf16.xpose.msra.mxu0 0
        %2136 = vmatprep.mubr.bf16.mxu0 0
        %2137 = vmatmul.mubr.bf16.gmra.mrb[0].mxu0 %v2099
        %v2138 = vpop.f32.mrb[0].mxu0
        %v2139 = vadd.f32 0.0, %v2138
        %v2140 = vpop.f32.mrb[0].mxu0
        %v2141 = vpop.f32.mrb[0].mxu0
        %v2142 = vadd.f32 0.0, %v2141
        %v2143 = vpop.f32.mrb[0].mxu0
        %2144 = vdwg.mxu0
        %2146 = vrot.lane.b32.xlu0 %v2039, 104
        %v2147 = vpop.permute.xlu0 %2146
        %2148 = vrot.lane.b32.xlu0 %v2039, 72
        %v2149 = vpop.permute.xlu0 %2148
        %v2151 = vsel %vm478, %v2147, 0
        %v2154 = vsel %vm478, %v2149, 0
        %2156 = vmatprep.subr.bf16.mxu0 0
        %2157 = vmatpush1.bf16.xpose.msra.mxu0 %v2154
        %2158 = vmatprep.subr.bf16.mxu0 0
        %2159 = vmatpush1.bf16.xpose.msra.mxu0 0
        %2160 = vmatprep.subr.bf16.mxu0 0
        %2161 = vmatpush1.bf16.xpose.msra.mxu0 0
        %2162 = vmatprep.subr.bf16.mxu0 0
        %2163 = vmatpush1.bf16.xpose.msra.mxu0 0
        %2164 = vmatprep.subr.bf16.mxu0 0
        %2165 = vmatpush1.bf16.xpose.msra.mxu0 0
        %2166 = vmatprep.subr.bf16.mxu0 0
        %2167 = vmatpush1.bf16.xpose.msra.mxu0 0
        %2168 = vmatprep.subr.bf16.mxu0 0
        %2169 = vmatpush1.bf16.xpose.msra.mxu0 0
        %2170 = vmatprep.subr.bf16.mxu0 0
        %2171 = vmatpush1.bf16.xpose.msra.mxu0 0
        %2172 = vmatprep.subr.bf16.mxu0 0
        %2173 = vmatpush1.bf16.xpose.msra.mxu0 0
        %2174 = vmatprep.subr.bf16.mxu0 0
        %2175 = vmatpush1.bf16.xpose.msra.mxu0 0
        %2176 = vmatprep.subr.bf16.mxu0 0
        %2177 = vmatpush1.bf16.xpose.msra.mxu0 0
        %2178 = vmatprep.subr.bf16.mxu0 0
        %2179 = vmatpush1.bf16.xpose.msra.mxu0 0
        %2180 = vmatprep.subr.bf16.mxu0 0
        %2181 = vmatpush1.bf16.xpose.msra.mxu0 0
        %2182 = vmatprep.subr.bf16.mxu0 0
        %2183 = vmatpush1.bf16.xpose.msra.mxu0 0
        %2184 = vmatprep.subr.bf16.mxu0 0
        %2185 = vmatpush1.bf16.xpose.msra.mxu0 0
        %2186 = vmatprep.subr.bf16.mxu0 0
        %2187 = vmatpush1.bf16.xpose.msra.mxu0 0
        %2188 = vmatprep.mubr.bf16.mxu0 0
        %2189 = vmatmul.mubr.bf16.gmra.mrb[0].mxu0 %v2151
        %v2190 = vpop.f32.mrb[0].mxu0
        %v2191 = vadd.f32 0.0, %v2190
        %v2192 = vpop.f32.mrb[0].mxu0
        %v2193 = vpop.f32.mrb[0].mxu0
        %v2194 = vadd.f32 0.0, %v2193
        %v2195 = vpop.f32.mrb[0].mxu0
        %2196 = vdwg.mxu0
        %2198 = vrot.lane.b32.xlu0 %v2040, 104
        %v2199 = vpop.permute.xlu0 %2198
        %2200 = vrot.lane.b32.xlu0 %v2040, 72
        %v2201 = vpop.permute.xlu0 %2200
        %v2203 = vsel %vm478, %v2199, 0
        %v2206 = vsel %vm478, %v2201, 0
        %2208 = vmatprep.subr.bf16.mxu0 0
        %2209 = vmatpush1.bf16.xpose.msra.mxu0 %v2206
        %2210 = vmatprep.subr.bf16.mxu0 0
        %2211 = vmatpush1.bf16.xpose.msra.mxu0 0
        %2212 = vmatprep.subr.bf16.mxu0 0
        %2213 = vmatpush1.bf16.xpose.msra.mxu0 0
        %2214 = vmatprep.subr.bf16.mxu0 0
        %2215 = vmatpush1.bf16.xpose.msra.mxu0 0
        %2216 = vmatprep.subr.bf16.mxu0 0
        %2217 = vmatpush1.bf16.xpose.msra.mxu0 0
        %2218 = vmatprep.subr.bf16.mxu0 0
        %2219 = vmatpush1.bf16.xpose.msra.mxu0 0
        %2220 = vmatprep.subr.bf16.mxu0 0
        %2221 = vmatpush1.bf16.xpose.msra.mxu0 0
        %2222 = vmatprep.subr.bf16.mxu0 0
        %2223 = vmatpush1.bf16.xpose.msra.mxu0 0
        %2224 = vmatprep.subr.bf16.mxu0 0
        %2225 = vmatpush1.bf16.xpose.msra.mxu0 0
        %2226 = vmatprep.subr.bf16.mxu0 0
        %2227 = vmatpush1.bf16.xpose.msra.mxu0 0
        %2228 = vmatprep.subr.bf16.mxu0 0
        %2229 = vmatpush1.bf16.xpose.msra.mxu0 0
        %2230 = vmatprep.subr.bf16.mxu0 0
        %2231 = vmatpush1.bf16.xpose.msra.mxu0 0
        %2232 = vmatprep.subr.bf16.mxu0 0
        %2233 = vmatpush1.bf16.xpose.msra.mxu0 0
        %2234 = vmatprep.subr.bf16.mxu0 0
        %2235 = vmatpush1.bf16.xpose.msra.mxu0 0
        %2236 = vmatprep.subr.bf16.mxu0 0
        %2237 = vmatpush1.bf16.xpose.msra.mxu0 0
        %2238 = vmatprep.subr.bf16.mxu0 0
        %2239 = vmatpush1.bf16.xpose.msra.mxu0 0
        %2240 = vmatprep.mubr.bf16.mxu0 0
        %2241 = vmatmul.mubr.bf16.gmra.mrb[0].mxu0 %v2203
        %v2242 = vpop.f32.mrb[0].mxu0
        %v2243 = vadd.f32 0.0, %v2242
        %v2244 = vpop.f32.mrb[0].mxu0
        %v2245 = vpop.f32.mrb[0].mxu0
        %v2246 = vadd.f32 0.0, %v2245
        %v2247 = vpop.f32.mrb[0].mxu0
        %2248 = vdwg.mxu0
        %s2249 = scalar_lea.vmem [#allocation9], 96
        %v2250 = vld [vmem:[%s2249] sm:$0xff]
        %v2251 = vld [vmem:[%s2249 + $0x8] sm:$0xff]
        %v2252 = vld [vmem:[%s2249 + $0x10] sm:$0xff]
        %v2253 = vld [vmem:[%s2249 + $0x18] sm:$0xff]
        %v2254 = vadd.f32 %v2087, %v2250
        %v2255 = vadd.f32 %v2090, %v2251
        %v2256 = vadd.f32 %v2139, %v2252
        %v2257 = vadd.f32 %v2142, %v2253
        %v2258 = vadd.f32 %v2191, %v2250
        %v2259 = vadd.f32 %v2194, %v2251
        %v2260 = vadd.f32 %v2243, %v2252
        %v2261 = vadd.f32 %v2246, %v2253
        %v2262 = vsel %vm688, %v2254, -inf
        %2263 = vmax.xlane.f32.xlu0 %v2262
        %v2264 = vpop.xlane.xlu0 %2263
        %v2265 = vsel %vm688, %v2255, -inf
        %2266 = vmax.xlane.f32.xlu0 %v2265
        %v2267 = vpop.xlane.xlu0 %2266
        %v2268 = vsel %vm688, %v2256, -inf
        %2269 = vmax.xlane.f32.xlu0 %v2268
        %v2270 = vpop.xlane.xlu0 %2269
        %v2271 = vsel %vm688, %v2257, -inf
        %2272 = vmax.xlane.f32.xlu0 %v2271
        %v2273 = vpop.xlane.xlu0 %2272
        %v2274 = vsel %vm688, %v2258, -inf
        %2275 = vmax.xlane.f32.xlu0 %v2274
        %v2276 = vpop.xlane.xlu0 %2275
        %v2277 = vsel %vm688, %v2259, -inf
        %2278 = vmax.xlane.f32.xlu0 %v2277
        %v2279 = vpop.xlane.xlu0 %2278
        %v2280 = vsel %vm688, %v2260, -inf
        %2281 = vmax.xlane.f32.xlu0 %v2280
        %v2282 = vpop.xlane.xlu0 %2281
        %v2283 = vsel %vm688, %v2261, -inf
        %2284 = vmax.xlane.f32.xlu0 %v2283
        %v2285 = vpop.xlane.xlu0 %2284
        %v2286 = vsub.f32 %v2254, %v2264
        %v2287 = vsub.f32 %v2255, %v2267
        %v2288 = vsub.f32 %v2256, %v2270
        %v2289 = vsub.f32 %v2257, %v2273
        %v2290 = vsub.f32 %v2258, %v2276
        %v2291 = vsub.f32 %v2259, %v2279
        %v2292 = vsub.f32 %v2260, %v2282
        %v2293 = vsub.f32 %v2261, %v2285
        %v2294 = vmul.f32 %v2286, 1.442695
        %v2295 = vpow.pop %v2294
        %v2296 = vmul.f32 %v2287, 1.442695
        %v2297 = vpow.pop %v2296
        %v2298 = vmul.f32 %v2288, 1.442695
        %v2299 = vpow.pop %v2298
        %v2300 = vmul.f32 %v2289, 1.442695
        %v2301 = vpow.pop %v2300
        %v2302 = vmul.f32 %v2290, 1.442695
        %v2303 = vpow.pop %v2302
        %v2304 = vmul.f32 %v2291, 1.442695
        %v2305 = vpow.pop %v2304
        %v2306 = vmul.f32 %v2292, 1.442695
        %v2307 = vpow.pop %v2306
        %v2308 = vmul.f32 %v2293, 1.442695
        %v2309 = vpow.pop %v2308
        %v2310 = vsel %vm688, %v2295, 0.0
        %2311 = vadd.xlane.f32.xlu0 %v2310
        %v2312 = vpop.xlane.xlu0 %2311
        %v2313 = vsel %vm688, %v2297, 0.0
        %2314 = vadd.xlane.f32.xlu0 %v2313
        %v2315 = vpop.xlane.xlu0 %2314
        %v2316 = vsel %vm688, %v2299, 0.0
        %2317 = vadd.xlane.f32.xlu0 %v2316
        %v2318 = vpop.xlane.xlu0 %2317
        %v2319 = vsel %vm688, %v2301, 0.0
        %2320 = vadd.xlane.f32.xlu0 %v2319
        %v2321 = vpop.xlane.xlu0 %2320
        %v2322 = vsel %vm688, %v2303, 0.0
        %2323 = vadd.xlane.f32.xlu0 %v2322
        %v2324 = vpop.xlane.xlu0 %2323
        %v2325 = vsel %vm688, %v2305, 0.0
        %2326 = vadd.xlane.f32.xlu0 %v2325
        %v2327 = vpop.xlane.xlu0 %2326
        %v2328 = vsel %vm688, %v2307, 0.0
        %2329 = vadd.xlane.f32.xlu0 %v2328
        %v2330 = vpop.xlane.xlu0 %2329
        %v2331 = vsel %vm688, %v2309, 0.0
        %2332 = vadd.xlane.f32.xlu0 %v2331
        %v2333 = vpop.xlane.xlu0 %2332
        %v2334 = vrcp.pop %v2312
        %v2335 = vrcp.pop %v2315
        %v2336 = vrcp.pop %v2318
        %v2337 = vrcp.pop %v2321
        %v2338 = vrcp.pop %v2324
        %v2339 = vrcp.pop %v2327
        %v2340 = vrcp.pop %v2330
        %v2341 = vrcp.pop %v2333
        %v2342 = vmul.f32 %v2295, %v2334
        %v2343 = vmul.f32 %v2297, %v2335
        %v2344 = vmul.f32 %v2299, %v2336
        %v2345 = vmul.f32 %v2301, %v2337
        %v2346 = vmul.f32 %v2303, %v2338
        %v2347 = vmul.f32 %v2305, %v2339
        %v2348 = vmul.f32 %v2307, %v2340
        %v2349 = vmul.f32 %v2309, %v2341
        %v2350 = vpack.c.bf16 %v2343, %v2342
        %v2351 = vpack.c.bf16 %v2345, %v2344
        %v2352 = vpack.c.bf16 %v2347, %v2346
        %v2353 = vpack.c.bf16 %v2349, %v2348
        %2354 = vrot.lane.b32.xlu0 %v2037, 40
        %v2355 = vpop.permute.xlu0 %2354
        %v2358 = vsel %vm688, %v2350, 0
        %2360 = vmatprep.subr.bf16.mxu0 0
        %2361 = vmatpush1.bf16.msra.mxu0 %v2355
        %2362 = vmatprep.subr.bf16.mxu0 0
        %2363 = vmatpush1.bf16.msra.mxu0 0
        %2364 = vmatprep.subr.bf16.mxu0 0
        %2365 = vmatpush1.bf16.msra.mxu0 0
        %2366 = vmatprep.subr.bf16.mxu0 0
        %2367 = vmatpush1.bf16.msra.mxu0 0
        %2368 = vmatprep.subr.bf16.mxu0 0
        %2369 = vmatpush1.bf16.msra.mxu0 0
        %2370 = vmatprep.subr.bf16.mxu0 0
        %2371 = vmatpush1.bf16.msra.mxu0 0
        %2372 = vmatprep.subr.bf16.mxu0 0
        %2373 = vmatpush1.bf16.msra.mxu0 0
        %2374 = vmatprep.subr.bf16.mxu0 0
        %2375 = vmatpush1.bf16.msra.mxu0 0
        %2376 = vmatprep.subr.bf16.mxu0 0
        %2377 = vmatpush1.bf16.msra.mxu0 0
        %2378 = vmatprep.subr.bf16.mxu0 0
        %2379 = vmatpush1.bf16.msra.mxu0 0
        %2380 = vmatprep.subr.bf16.mxu0 0
        %2381 = vmatpush1.bf16.msra.mxu0 0
        %2382 = vmatprep.subr.bf16.mxu0 0
        %2383 = vmatpush1.bf16.msra.mxu0 0
        %2384 = vmatprep.subr.bf16.mxu0 0
        %2385 = vmatpush1.bf16.msra.mxu0 0
        %2386 = vmatprep.subr.bf16.mxu0 0
        %2387 = vmatpush1.bf16.msra.mxu0 0
        %2388 = vmatprep.subr.bf16.mxu0 0
        %2389 = vmatpush1.bf16.msra.mxu0 0
        %2390 = vmatprep.subr.bf16.mxu0 0
        %2391 = vmatpush1.bf16.msra.mxu0 0
        %2392 = vmatprep.mubr.bf16.mxu0 0
        %2393 = vmatmul.mubr.bf16.gmra.mrb[0].mxu0 %v2358
        %v2394 = vpop.f32.mrb[0].mxu0
        %v2395 = vadd.f32 0.0, %v2394
        %v2396 = vpop.f32.mrb[0].mxu0
        %v2397 = vpop.f32.mrb[0].mxu0
        %v2398 = vadd.f32 0.0, %v2397
        %v2399 = vpop.f32.mrb[0].mxu0
        %2400 = vdwg.mxu0
        %2401 = vrot.lane.b32.xlu0 %v2038, 40
        %v2402 = vpop.permute.xlu0 %2401
        %v2405 = vsel %vm688, %v2351, 0
        %2407 = vmatprep.subr.bf16.mxu0 0
        %2408 = vmatpush1.bf16.msra.mxu0 %v2402
        %2409 = vmatprep.subr.bf16.mxu0 0
        %2410 = vmatpush1.bf16.msra.mxu0 0
        %2411 = vmatprep.subr.bf16.mxu0 0
        %2412 = vmatpush1.bf16.msra.mxu0 0
        %2413 = vmatprep.subr.bf16.mxu0 0
        %2414 = vmatpush1.bf16.msra.mxu0 0
        %2415 = vmatprep.subr.bf16.mxu0 0
        %2416 = vmatpush1.bf16.msra.mxu0 0
        %2417 = vmatprep.subr.bf16.mxu0 0
        %2418 = vmatpush1.bf16.msra.mxu0 0
        %2419 = vmatprep.subr.bf16.mxu0 0
        %2420 = vmatpush1.bf16.msra.mxu0 0
        %2421 = vmatprep.subr.bf16.mxu0 0
        %2422 = vmatpush1.bf16.msra.mxu0 0
        %2423 = vmatprep.subr.bf16.mxu0 0
        %2424 = vmatpush1.bf16.msra.mxu0 0
        %2425 = vmatprep.subr.bf16.mxu0 0
        %2426 = vmatpush1.bf16.msra.mxu0 0
        %2427 = vmatprep.subr.bf16.mxu0 0
        %2428 = vmatpush1.bf16.msra.mxu0 0
        %2429 = vmatprep.subr.bf16.mxu0 0
        %2430 = vmatpush1.bf16.msra.mxu0 0
        %2431 = vmatprep.subr.bf16.mxu0 0
        %2432 = vmatpush1.bf16.msra.mxu0 0
        %2433 = vmatprep.subr.bf16.mxu0 0
        %2434 = vmatpush1.bf16.msra.mxu0 0
        %2435 = vmatprep.subr.bf16.mxu0 0
        %2436 = vmatpush1.bf16.msra.mxu0 0
        %2437 = vmatprep.subr.bf16.mxu0 0
        %2438 = vmatpush1.bf16.msra.mxu0 0
        %2439 = vmatprep.mubr.bf16.mxu0 0
        %2440 = vmatmul.mubr.bf16.gmra.mrb[0].mxu0 %v2405
        %v2441 = vpop.f32.mrb[0].mxu0
        %v2442 = vadd.f32 0.0, %v2441
        %v2443 = vpop.f32.mrb[0].mxu0
        %v2444 = vpop.f32.mrb[0].mxu0
        %v2445 = vadd.f32 0.0, %v2444
        %v2446 = vpop.f32.mrb[0].mxu0
        %2447 = vdwg.mxu0
        %2448 = vrot.lane.b32.xlu0 %v2039, 40
        %v2449 = vpop.permute.xlu0 %2448
        %v2452 = vsel %vm688, %v2352, 0
        %2454 = vmatprep.subr.bf16.mxu0 0
        %2455 = vmatpush1.bf16.msra.mxu0 %v2449
        %2456 = vmatprep.subr.bf16.mxu0 0
        %2457 = vmatpush1.bf16.msra.mxu0 0
        %2458 = vmatprep.subr.bf16.mxu0 0
        %2459 = vmatpush1.bf16.msra.mxu0 0
        %2460 = vmatprep.subr.bf16.mxu0 0
        %2461 = vmatpush1.bf16.msra.mxu0 0
        %2462 = vmatprep.subr.bf16.mxu0 0
        %2463 = vmatpush1.bf16.msra.mxu0 0
        %2464 = vmatprep.subr.bf16.mxu0 0
        %2465 = vmatpush1.bf16.msra.mxu0 0
        %2466 = vmatprep.subr.bf16.mxu0 0
        %2467 = vmatpush1.bf16.msra.mxu0 0
        %2468 = vmatprep.subr.bf16.mxu0 0
        %2469 = vmatpush1.bf16.msra.mxu0 0
        %2470 = vmatprep.subr.bf16.mxu0 0
        %2471 = vmatpush1.bf16.msra.mxu0 0
        %2472 = vmatprep.subr.bf16.mxu0 0
        %2473 = vmatpush1.bf16.msra.mxu0 0
        %2474 = vmatprep.subr.bf16.mxu0 0
        %2475 = vmatpush1.bf16.msra.mxu0 0
        %2476 = vmatprep.subr.bf16.mxu0 0
        %2477 = vmatpush1.bf16.msra.mxu0 0
        %2478 = vmatprep.subr.bf16.mxu0 0
        %2479 = vmatpush1.bf16.msra.mxu0 0
        %2480 = vmatprep.subr.bf16.mxu0 0
        %2481 = vmatpush1.bf16.msra.mxu0 0
        %2482 = vmatprep.subr.bf16.mxu0 0
        %2483 = vmatpush1.bf16.msra.mxu0 0
        %2484 = vmatprep.subr.bf16.mxu0 0
        %2485 = vmatpush1.bf16.msra.mxu0 0
        %2486 = vmatprep.mubr.bf16.mxu0 0
        %2487 = vmatmul.mubr.bf16.gmra.mrb[0].mxu0 %v2452
        %v2488 = vpop.f32.mrb[0].mxu0
        %v2489 = vadd.f32 0.0, %v2488
        %v2490 = vpop.f32.mrb[0].mxu0
        %v2491 = vpop.f32.mrb[0].mxu0
        %v2492 = vadd.f32 0.0, %v2491
        %v2493 = vpop.f32.mrb[0].mxu0
        %2494 = vdwg.mxu0
        %2495 = vrot.lane.b32.xlu0 %v2040, 40
        %v2496 = vpop.permute.xlu0 %2495
        %v2499 = vsel %vm688, %v2353, 0
        %2501 = vmatprep.subr.bf16.mxu0 0
        %2502 = vmatpush1.bf16.msra.mxu0 %v2496
        %2503 = vmatprep.subr.bf16.mxu0 0
        %2504 = vmatpush1.bf16.msra.mxu0 0
        %2505 = vmatprep.subr.bf16.mxu0 0
        %2506 = vmatpush1.bf16.msra.mxu0 0
        %2507 = vmatprep.subr.bf16.mxu0 0
        %2508 = vmatpush1.bf16.msra.mxu0 0
        %2509 = vmatprep.subr.bf16.mxu0 0
        %2510 = vmatpush1.bf16.msra.mxu0 0
        %2511 = vmatprep.subr.bf16.mxu0 0
        %2512 = vmatpush1.bf16.msra.mxu0 0
        %2513 = vmatprep.subr.bf16.mxu0 0
        %2514 = vmatpush1.bf16.msra.mxu0 0
        %2515 = vmatprep.subr.bf16.mxu0 0
        %2516 = vmatpush1.bf16.msra.mxu0 0
        %2517 = vmatprep.subr.bf16.mxu0 0
        %2518 = vmatpush1.bf16.msra.mxu0 0
        %2519 = vmatprep.subr.bf16.mxu0 0
        %2520 = vmatpush1.bf16.msra.mxu0 0
        %2521 = vmatprep.subr.bf16.mxu0 0
        %2522 = vmatpush1.bf16.msra.mxu0 0
        %2523 = vmatprep.subr.bf16.mxu0 0
        %2524 = vmatpush1.bf16.msra.mxu0 0
        %2525 = vmatprep.subr.bf16.mxu0 0
        %2526 = vmatpush1.bf16.msra.mxu0 0
        %2527 = vmatprep.subr.bf16.mxu0 0
        %2528 = vmatpush1.bf16.msra.mxu0 0
        %2529 = vmatprep.subr.bf16.mxu0 0
        %2530 = vmatpush1.bf16.msra.mxu0 0
        %2531 = vmatprep.subr.bf16.mxu0 0
        %2532 = vmatpush1.bf16.msra.mxu0 0
        %2533 = vmatprep.mubr.bf16.mxu0 0
        %2534 = vmatmul.mubr.bf16.gmra.mrb[0].mxu0 %v2499
        %v2535 = vpop.f32.mrb[0].mxu0
        %v2536 = vadd.f32 0.0, %v2535
        %v2537 = vpop.f32.mrb[0].mxu0
        %v2538 = vpop.f32.mrb[0].mxu0
        %v2539 = vadd.f32 0.0, %v2538
        %v2540 = vpop.f32.mrb[0].mxu0
        %2541 = vdwg.mxu0
        %v2542 = vpack.c.bf16 %v2398, %v2395
        %v2543 = vpack.c.bf16 %v2445, %v2442
        %v2544 = vpack.c.bf16 %v2492, %v2489
        %v2545 = vpack.c.bf16 %v2539, %v2536
        %2550 = vrot.lane.b32.xlu0 %v2542, 24
        %v2551 = vpop.permute.xlu0 %2550
        %2552 = vrot.lane.b32.xlu0 %v2543, 24
        %v2553 = vpop.permute.xlu0 %2552
        %2554 = vrot.lane.b32.xlu0 %v2544, 24
        %v2555 = vpop.permute.xlu0 %2554
        %2556 = vrot.lane.b32.xlu0 %v2545, 24
        %v2557 = vpop.permute.xlu0 %2556
        %vm2562 = vcmask 261312
        %2563 = vst.msk [vmem:[#allocation3] sm:$0xff] %vm2562, %v2551
        %2564 = vst.msk [vmem:[#allocation3 + $0x8] sm:$0xff] %vm2562, %v2553
        %2565 = vst.msk [vmem:[#allocation3 + $0x10] sm:$0xff] %vm2562, %v2555
        %2566 = vst.msk [vmem:[#allocation3 + $0x18] sm:$0xff] %vm2562, %v2557
        %v2567 = vld [vmem:[#allocation3] sm:$0xff]
        %v2568 = vld [vmem:[#allocation3 + $0x8] sm:$0xff]
        %v2569 = vld [vmem:[#allocation3 + $0x10] sm:$0xff]
        %v2570 = vld [vmem:[#allocation3 + $0x18] sm:$0xff]
        %v2571 = vld [vmem:[#allocation10] sm:$0xf]
        %v2572 = vld [vmem:[#allocation10 + $0x4] sm:$0xf]
        %v2573 = vld [vmem:[#allocation10 + $0x8] sm:$0xf]
        %v2574 = vld [vmem:[#allocation10 + $0xc] sm:$0xf]
        %v2575 = vld [vmem:[%s5] sm:$0x1]
        %v2577 = vlaneseq
        %v2578 = vshrl.u32 %v2577, 7
        %v2579 = vsub.s32 0, %v2578
        %v2580 = vrot.slane %v2575, %v2579
        %v2586 = vunpack.c.l.b16 %v2571
        %v2587 = vunpack.c.l.b16 %v2572
        %v2588 = vunpack.c.l.b16 %v2573
        %v2589 = vunpack.c.l.b16 %v2574
        %v2590 = vpack.c.b16 %v2587, %v2586
        %v2591 = vpack.c.b16 %v2589, %v2588
        %v2595 = vsel %vm384, %v2567, 0
        %v2598 = vsel %vm384, %v2568, 0
        %v2601 = vsel %vm384, %v2569, 0
        %v2604 = vsel %vm384, %v2570, 0
        %2606 = vmatprep.subr.bf16.mxu0 0
        %2607 = vmatpush1.bf16.msra.mxu0 %v2590
        %2608 = vmatprep.subr.bf16.mxu0 0
        %2609 = vmatpush1.bf16.msra.mxu0 %v2591
        %2610 = vmatprep.subr.bf16.mxu0 0
        %2611 = vmatpush1.bf16.msra.mxu0 0
        %2612 = vmatprep.subr.bf16.mxu0 0
        %2613 = vmatpush1.bf16.msra.mxu0 0
        %2614 = vmatprep.subr.bf16.mxu0 0
        %2615 = vmatpush1.bf16.msra.mxu0 0
        %2616 = vmatprep.subr.bf16.mxu0 0
        %2617 = vmatpush1.bf16.msra.mxu0 0
        %2618 = vmatprep.subr.bf16.mxu0 0
        %2619 = vmatpush1.bf16.msra.mxu0 0
        %2620 = vmatprep.subr.bf16.mxu0 0
        %2621 = vmatpush1.bf16.msra.mxu0 0
        %2622 = vmatprep.subr.bf16.mxu0 0
        %2623 = vmatpush1.bf16.msra.mxu0 0
        %2624 = vmatprep.subr.bf16.mxu0 0
        %2625 = vmatpush1.bf16.msra.mxu0 0
        %2626 = vmatprep.subr.bf16.mxu0 0
        %2627 = vmatpush1.bf16.msra.mxu0 0
        %2628 = vmatprep.subr.bf16.mxu0 0
        %2629 = vmatpush1.bf16.msra.mxu0 0
        %2630 = vmatprep.subr.bf16.mxu0 0
        %2631 = vmatpush1.bf16.msra.mxu0 0
        %2632 = vmatprep.subr.bf16.mxu0 0
        %2633 = vmatpush1.bf16.msra.mxu0 0
        %2634 = vmatprep.subr.bf16.mxu0 0
        %2635 = vmatpush1.bf16.msra.mxu0 0
        %2636 = vmatprep.subr.bf16.mxu0 0
        %2637 = vmatpush1.bf16.msra.mxu0 0
        %2638 = vmatprep.mubr.bf16.mxu0 0
        %2639 = vmatmul.mubr.bf16.gmra.mrb[0].mxu0 %v2595
        %v2640 = vpop.f32.mrb[0].mxu0
        %v2641 = vadd.f32 %v2580, %v2640
        %v2642 = vpop.f32.mrb[0].mxu0
        %v2643 = vpop.f32.mrb[0].mxu0
        %v2644 = vadd.f32 %v2580, %v2643
        %v2645 = vpop.f32.mrb[0].mxu0
        %2646 = vmatprep.mubr.bf16.mxu0 0
        %2647 = vmatmul.mubr.bf16.gmra.mrb[0].mxu0 %v2598
        %v2648 = vpop.f32.mrb[0].mxu0
        %v2649 = vadd.f32 %v2580, %v2648
        %v2650 = vpop.f32.mrb[0].mxu0
        %v2651 = vpop.f32.mrb[0].mxu0
        %v2652 = vadd.f32 %v2580, %v2651
        %v2653 = vpop.f32.mrb[0].mxu0
        %2654 = vmatprep.mubr.bf16.mxu0 0
        %2655 = vmatmul.mubr.bf16.gmra.mrb[0].mxu0 %v2601
        %v2656 = vpop.f32.mrb[0].mxu0
        %v2657 = vadd.f32 %v2580, %v2656
        %v2658 = vpop.f32.mrb[0].mxu0
        %v2659 = vpop.f32.mrb[0].mxu0
        %v2660 = vadd.f32 %v2580, %v2659
        %v2661 = vpop.f32.mrb[0].mxu0
        %2662 = vmatprep.mubr.bf16.mxu0 0
        %2663 = vmatmul.mubr.bf16.gmra.mrb[0].mxu0 %v2604
        %v2664 = vpop.f32.mrb[0].mxu0
        %v2665 = vadd.f32 %v2580, %v2664
        %v2666 = vpop.f32.mrb[0].mxu0
        %v2667 = vpop.f32.mrb[0].mxu0
        %v2668 = vadd.f32 %v2580, %v2667
        %v2669 = vpop.f32.mrb[0].mxu0
        %2670 = vdwg.mxu0
        %2671 = vst.msk [vmem:[%s342] sm:$0xff] %vm384, %v2641
        %2672 = vst.msk [vmem:[%s342 + $0x8] sm:$0xff] %vm384, %v2644
        %2673 = vst.msk [vmem:[%s342 + $0x10] sm:$0xff] %vm384, %v2649
        %2674 = vst.msk [vmem:[%s342 + $0x18] sm:$0xff] %vm384, %v2652
        %2675 = vst.msk [vmem:[%s342 + $0x20] sm:$0xff] %vm384, %v2657
        %2676 = vst.msk [vmem:[%s342 + $0x28] sm:$0xff] %vm384, %v2660
        %2677 = vst.msk [vmem:[%s342 + $0x30] sm:$0xff] %vm384, %v2665
        %2678 = vst.msk [vmem:[%s342 + $0x38] sm:$0xff] %vm384, %v2668
        %s2679 = sand.u32 %s185, 1
        %s2680 = scalar_lea.sflag [#allocation6], %s2679
        %s2681 = sand.u32 %s185, 1
        %s2682 = smul.addr %s2681, 64
        %s2683 = scalar_lea.vmem [#allocation12], %s2682
        // Predicated region
        $region61: #{tpu_custom_call.1} parent=43 // pred_check
          %p2684 = pneg %p195
        $region62: #{tpu_custom_call.1} parent=43 // pred_check_branch
          %2686 = sbr.rel (%p2684) target = $region64
        $region63: #{tpu_custom_call.1} parent=43 // pred_region
          %s2687 = smul.u32 2, %s30
          %s2688 = smul.u32 2, %s29
          %s2690 = ssub.s32 1024, 1024
          %2691 = vsyncadd %s2680, %s2690
          %s2692 = smul.addr %s2688, 2
          %s2693 = smul.addr %s2687, 4
          %s2694 = sadd.s32 %s2692, %s2693
          %s2695 = smul.addr %s2694, 128
          %s2696 = scalar_lea.hbm %s6, %s2695
          %s2697 = sshll.u32 %s2683, 4
          %s2698 = int_to_ptr.vmem [resolvable:$true] %s2697
          %2703 = dma.vmem_to_hbm [thread:$0]  %s2698, 1024, %s2696, %s2680, 128, 128, 8
        $region64: #{tpu_custom_call.1} parent=43 // pred_fallthru
          _
      $region44: #{tpu_custom_call.1} parent=5 // pred_fallthru
        _
      %p2704 = scmp.le.s32.totalorder 2, %s20
      // Predicated region
      $region65: #{tpu_custom_call.1} parent=5 // pred_check
        %p2705 = pneg %p2704
      $region66: #{tpu_custom_call.1} parent=5 // pred_check_branch
        %2707 = sbr.rel (%p2705) target = $region68
      $region67: #{tpu_custom_call.1} parent=5 // pred_region
        %s2708 = ssub.s32 %s20, 2
        // Predicated region
        $region69: #{tpu_custom_call.1} parent=67 // pred_check
          %p2709 = pneg %p201
        $region70: #{tpu_custom_call.1} parent=67 // pred_check_branch
          %2711 = sbr.rel (%p2709) target = $region72
        $region71: #{tpu_custom_call.1} parent=67 // pred_region
          %s2712 = sand.u32 %s186, 1
          %s2713 = scalar_lea.sflag [#allocation6], %s2712
          %s2714 = sand.u32 %s186, 1
          %s2715 = smul.addr %s2714, 64
          %s2716 = scalar_lea.vmem [#allocation12], %s2715
          %2717 = dma.done %s2713, 1024
        $region72: #{tpu_custom_call.1} parent=67 // pred_fallthru
          _
      $region68: #{tpu_custom_call.1} parent=5 // pred_fallthru
        _
    $region6: #{tpu_custom_call.1} parent=1 // loop_footer
      %s24 = sadd.s32 1, %s20
    $region7: #{tpu_custom_call.1} parent=1 // loop_footer_branch
      %19 = sbr.rel target = $region3
    $region8: #{tpu_custom_call.1} parent=1 // loop_exit
      _
    %2718 = vsyncpa [#allocation5], 1
    %s2719 = scalar_lea.sflag [#allocation5], 1
    %2720 = vsyncpa %s2719, 1
    %2721 = vsyncpa [#allocation8], 1
    %2722 = vsyncpa [#allocation11], 1
    %2723 = vsyncpa [#allocation6], 1
    %s2724 = scalar_lea.sflag [#allocation6], 1
    %2725 = vsyncpa %s2724, 1

</llo_original>
